<compile_context>
chip_gen: v6e
topology: v6e:2x2x1
jax: 0.10.0
libtpu: 0.0.40
codegen_flags: <defaults>
</compile_context>

<pallas_src>
import jax
import jax.numpy as jnp
import numpy as np
from jax.experimental import pallas as pl
from jax.experimental.pallas import tpu as pltpu

DIM = 32                  # opts.satbench_dim
N_MLP_LAYERS = 2          # opts.satbench_n_mlp_layers  (Linear -> ReLU -> Linear)
N_ITERATIONS = 4          # opts.satbench_n_iterations
ACTIVATION = "relu"       # opts.satbench_activation

_VMEM = pl.BlockSpec(memory_space=pltpu.MemorySpace.VMEM)


# ---------------------------- fused Pallas kernel ----------------------------

def _ggnn_fused_kernel(
        a_cl_ref, l0_ref, c0_ref,
        # l2c MLP
        l2c_w1, l2c_b1, l2c_w2, l2c_b2,
        # c2l MLP
        c2l_w1, c2l_b1, c2l_w2, c2l_b2,
        # l2l MLP
        l2l_w1, l2l_b1, l2l_w2, l2l_b2,
        # clause GRU (stacked gates r,z,n along the last axis)
        cu_wi, cu_wh, cu_bi, cu_bh,
        # literal GRU (input weight split into [aggr | l2l] blocks)
        lu_wia, lu_wib, lu_wh, lu_bi, lu_bh,
        # outputs
        l_out_ref, c_out_ref):
    f32 = jnp.float32
    bf16 = jnp.bfloat16
    l_size, dim = l0_ref.shape

    # Incidence matrix: keep only A_cl in HBM; transpose ONCE in-kernel for the
    # literal-side aggregation (avoids storing/DMAing a second dense matrix).
    a_cl = a_cl_ref[...]                       # (C, L) float32 (small integer counts)
    a_cl_b = a_cl.astype(bf16)
    a_lc_b = a_cl.T.astype(bf16)               # (L, C)

    def mlp(x, w1, b1, w2, b2):
        # 2-layer MLP: Linear -> ReLU -> Linear, bf16 operands / f32 accumulation.
        h = jnp.dot(x.astype(bf16), w1[...], preferred_element_type=f32) + b1[...]
        h = jnp.maximum(h, 0.0)
        return jnp.dot(h.astype(bf16), w2[...], preferred_element_type=f32) + b2[...]

    def gru(gi, gh, h):
        # gi, gh: (n, 3*dim) stacked pre-activations in PyTorch GRUCell order (r, z, n).
        r = jax.nn.sigmoid(gi[:, :dim] + gh[:, :dim])
        z = jax.nn.sigmoid(gi[:, dim:2 * dim] + gh[:, dim:2 * dim])
        n = jnp.tanh(gi[:, 2 * dim:] + r * gh[:, 2 * dim:])
        return (1.0 - z) * n + z * h

    l_emb = l0_ref[...]                        # float32 state
    c_emb = c0_ref[...]
    l_out_ref[0] = l_emb
    c_out_ref[0] = c_emb

    # Row-parity mask for the pairwise literal flip (row 2i <-> row 2i+1).
    row_par = jax.lax.broadcasted_iota(jnp.int32, (l_size, dim), 0) % 2

    # N_ITERATIONS is a small static constant: unroll in-kernel (single pallas_call).
    for it in range(N_ITERATIONS):
        # messages (computed from the *current* embeddings, before any update)
        l_msg = mlp(l_emb, l2c_w1, l2c_b1, l2c_w2, l2c_b2)      # (L, dim)
        c_msg = mlp(c_emb, c2l_w1, c2l_b1, c2l_w2, c2l_b2)      # (C, dim)

        # positive/negative literal flip fused in-kernel: swap adjacent rows via
        # sublane rolls (XLU) + parity select (VPU).
        up = pltpu.roll(l_emb, l_size - 1, 0)                   # row i -> l_emb[i+1]
        down = pltpu.roll(l_emb, 1, 0)                          # row i -> l_emb[i-1]
        l2l_feat = jnp.where(row_par == 0, up, down)
        l2l_msg = mlp(l2l_feat, l2l_w1, l2l_b1, l2l_w2, l2l_b2)  # (L, dim)

        # ---- clause update: aggr = scatter_sum(l_msg[l_edge], c_edge) == A_cl @ l_msg
        aggr_c = jnp.dot(a_cl_b, l_msg.astype(bf16), preferred_element_type=f32)
        gi_c = jnp.dot(aggr_c.astype(bf16), cu_wi[...], preferred_element_type=f32) + cu_bi[...]
        gh_c = jnp.dot(c_emb.astype(bf16), cu_wh[...], preferred_element_type=f32) + cu_bh[...]
        c_emb = gru(gi_c, gh_c, c_emb)
        c_out_ref[it + 1] = c_emb

        # ---- literal update: aggr = A_cl^T @ c_msg ; input = concat([aggr, l2l_msg])
        # The concat is fused into the gate matmuls as aggr @ Wa + l2l @ Wb.
        aggr_l = jnp.dot(a_lc_b, c_msg.astype(bf16), preferred_element_type=f32)
        gi_l = (jnp.dot(aggr_l.astype(bf16), lu_wia[...], preferred_element_type=f32)
                + jnp.dot(l2l_msg.astype(bf16), lu_wib[...], preferred_element_type=f32)
                + lu_bi[...])
        gh_l = jnp.dot(l_emb.astype(bf16), lu_wh[...], preferred_element_type=f32) + lu_bh[...]
        l_emb = gru(gi_l, gh_l, l_emb)
        l_out_ref[it + 1] = l_emb


# ---------------------------- forward (glue + fused kernel) ----------------------------

def _flatten_params_for_kernel(params):
    """Fixed kernel-argument order; weight matrices cast to bf16, biases stay f32."""
    bf16 = jnp.bfloat16

    def cast_mlp(p):
        w1, b1, w2, b2 = p
        return [w1.astype(bf16), b1, w2.astype(bf16), b2]

    args = []
    args += cast_mlp(params["l2c"]) + cast_mlp(params["c2l"]) + cast_mlp(params["l2l"])
    wi, wh, bi, bh = params["c_update"]
    args += [wi.astype(bf16), wh.astype(bf16), bi, bh]
    wia, wib, wh, bi, bh = params["l_update"]
    args += [wia.astype(bf16), wib.astype(bf16), wh.astype(bf16), bi, bh]
    return args


def ggnn_lcg_forward(l_size, c_size, l_edge_index, c_edge_index, l_emb, c_emb, params):
    dim = l_emb.shape[1]
    # Dense incidence matrix: A_cl[c, l] = number of edges between clause c and literal l.
    # (edge set fixed across iterations => gather + scatter_sum == A @ feat exactly)
    A_cl = jnp.zeros((c_size, l_size), jnp.float32).at[c_edge_index, l_edge_index].add(1.0)

    kernel_args = [A_cl, l_emb, c_emb] + _flatten_params_for_kernel(params)

    # Rough advisory cost for XLA scheduling around the fused custom call.
    mm_flops_per_iter = 2 * (
        2 * l_size * dim * dim            # l2c MLP
        + 2 * c_size * dim * dim          # c2l MLP
        + 2 * l_size * dim * dim          # l2l MLP
        + c_size * l_size * dim           # A_cl @ l_msg
        + 2 * c_size * dim * 3 * dim      # clause GRU gates
        + l_size * c_size * dim           # A_cl^T @ c_msg
        + 3 * l_size * dim * 3 * dim)     # literal GRU gates
    flops = int(N_ITERATIONS * mm_flops_per_iter)
    transcendentals = int(N_ITERATIONS * 3 * (l_size + c_size) * dim)
    bytes_accessed = int(sum(int(np.prod(a.shape)) * a.dtype.itemsize for a in kernel_args)
                         + (N_ITERATIONS + 1) * (l_size + c_size) * dim * 4)

    out_shapes = (
        jax.ShapeDtypeStruct((N_ITERATIONS + 1, l_size, dim), jnp.float32),
        jax.ShapeDtypeStruct((N_ITERATIONS + 1, c_size, dim), jnp.float32),
    )
    l_stack, c_stack = pl.pallas_call(
        _ggnn_fused_kernel,
        out_shape=out_shapes,
        in_specs=[_VMEM] * len(kernel_args),
        out_specs=(_VMEM, _VMEM),
        compiler_params=pltpu.CompilerParams(vmem_limit_bytes=16 * 1024 * 1024),
        cost_estimate=pl.CostEstimate(flops=flops, transcendentals=transcendentals,
                                      bytes_accessed=bytes_accessed),
    )(*kernel_args)

    l_embs = [l_stack[i] for i in range(N_ITERATIONS + 1)]
    c_embs = [c_stack[i] for i in range(N_ITERATIONS + 1)]
    return l_embs, c_embs


# ---------------------------- deterministic parameter init ----------------------------

def init_params(key, dim):
    keys = iter(jax.random.split(key, 32))

    def uniform(shape, fan_in):
        bound = 1.0 / np.sqrt(fan_in)
        return jax.random.uniform(next(keys), shape, jnp.float32, -bound, bound)

    def weight(shape, fan_in):
        # Round weight matrices to bf16-representable values so the bf16 kernel and the
        # f32 reference use numerically identical weights.
        return uniform(shape, fan_in).astype(jnp.bfloat16).astype(jnp.float32)

    def mlp_params():
        # weights stored pre-transposed as [in, out] (y = x @ W + b)
        return (weight((dim, dim), dim), uniform((1, dim), dim),
                weight((dim, dim), dim), uniform((1, dim), dim))

    def gru_params(n_input_blocks):
        # stacked gates (r, z, n) along the last axis: W is [in, 3*dim]
        wi_blocks = tuple(weight((dim, 3 * dim), n_input_blocks * dim)
                          for _ in range(n_input_blocks))
        wh = weight((dim, 3 * dim), dim)
        bi = uniform((1, 3 * dim), dim)
        bh = uniform((1, 3 * dim), dim)
        return (*wi_blocks, wh, bi, bh)

    return {
        "l2c": mlp_params(),
        "c2l": mlp_params(),
        "l2l": mlp_params(),
        "c_update": gru_params(1),   # GRUCell(dim, dim)
        "l_update": gru_params(2),   # GRUCell(2*dim, dim) -> input weight split in two blocks
    }


# ---------------------------- pure-JAX f32 reference (gather + segment_sum) ----------------------------

def reference_forward(l_size, c_size, l_edge_index, c_edge_index, l_emb, c_emb, params):
    dim = l_emb.shape[1]

    def mlp_ref(x, w1, b1, w2, b2):
        return jnp.maximum(x @ w1 + b1, 0.0) @ w2 + b2

    def gru_ref(gi, gh, h):
        r = jax.nn.sigmoid(gi[:, :dim] + gh[:, :dim])
        z = jax.nn.sigmoid(gi[:, dim:2 * dim] + gh[:, dim:2 * dim])
        n = jnp.tanh(gi[:, 2 * dim:] + r * gh[:, 2 * dim:])
        return (1.0 - z) * n + z * h

    l_embs, c_embs = [l_emb], [c_emb]
    for _ in range(N_ITERATIONS):
        l_msg_feat = mlp_ref(l_emb, *params["l2c"])
        l2c_msg = l_msg_feat[l_edge_index]
        c_msg_feat = mlp_ref(c_emb, *params["c2l"])
        c2l_msg = c_msg_feat[c_edge_index]

        r2 = l_emb.reshape(l_size // 2, 2 * dim)
        pl_e, ul_e = r2[:, :dim], r2[:, dim:]
        l2l_feat = jnp.concatenate([ul_e, pl_e], axis=1).reshape(l_size, dim)
        l2l_msg = mlp_ref(l2l_feat, *params["l2l"])

        # clause update
        l2c_aggr = jax.ops.segment_sum(l2c_msg, c_edge_index, num_segments=c_size)
        wi, wh, bi, bh = params["c_update"]
        c_emb = gru_ref(l2c_aggr @ wi + bi, c_emb @ wh + bh, c_emb)
        c_embs.append(c_emb)

        # literal update
        c2l_aggr = jax.ops.segment_sum(c2l_msg, l_edge_index, num_segments=l_size)
        wia, wib, wh, bi, bh = params["l_update"]
        gi = c2l_aggr @ wia + l2l_msg @ wib + bi
        l_emb = gru_ref(gi, l_emb @ wh + bh, l_emb)
        l_embs.append(l_emb)
    return l_embs, c_embs


if __name__ == "__main__":
    key = jax.random.PRNGKey(0)
    k_param, k_lemb, k_cemb, k_edge = jax.random.split(key, 4)

    dim = DIM
    l_size = 16            # 8 variables -> 16 literals (l_size even by construction)
    c_size = 8
    lits_per_clause = 3
    n_edges = c_size * lits_per_clause

    params = init_params(k_param, dim)
    l_emb = jax.random.normal(k_lemb, (l_size, dim), jnp.float32)
    c_emb = jax.random.normal(k_cemb, (c_size, dim), jnp.float32)
    l_edge_index = jax.random.randint(k_edge, (n_edges,), 0, l_size, jnp.int32)
    c_edge_index = jnp.repeat(jnp.arange(c_size, dtype=jnp.int32), lits_per_clause)

    l_embs, c_embs = ggnn_lcg_forward(l_size, c_size, l_edge_index, c_edge_index,
                                      l_emb, c_emb, params)
    jax.block_until_ready(l_embs[-1])
    jax.block_until_ready(c_embs[-1])

    ref_l, ref_c = reference_forward(l_size, c_size, l_edge_index, c_edge_index,
                                     l_emb, c_emb, params)
    assert len(l_embs) == N_ITERATIONS + 1 and len(c_embs) == N_ITERATIONS + 1
    # bf16 matmul operands in the kernel vs. f32 reference (same bf16-rounded weights):
    # tolerance reflects bf16 activation rounding over 4 GRU iterations.
    assert np.allclose(np.asarray(l_embs[-1]), np.asarray(ref_l[-1]), atol=5e-2, rtol=5e-2)
    assert np.allclose(np.asarray(c_embs[-1]), np.asarray(ref_c[-1]), atol=5e-2, rtol=5e-2)

    print("KERNEL_OK")
</pallas_src>

<mosaic_0001>
module attributes {stable_mosaic.version = 11 : i64} {
  func.func @_ggnn_fused_kernel(%arg0: memref<8x16xf32, #tpu.memory_space<vmem>>, %arg1: memref<16x32xf32, #tpu.memory_space<vmem>>, %arg2: memref<8x32xf32, #tpu.memory_space<vmem>>, %arg3: memref<32x32xbf16, #tpu.memory_space<vmem>>, %arg4: memref<1x32xf32, #tpu.memory_space<vmem>>, %arg5: memref<32x32xbf16, #tpu.memory_space<vmem>>, %arg6: memref<1x32xf32, #tpu.memory_space<vmem>>, %arg7: memref<32x32xbf16, #tpu.memory_space<vmem>>, %arg8: memref<1x32xf32, #tpu.memory_space<vmem>>, %arg9: memref<32x32xbf16, #tpu.memory_space<vmem>>, %arg10: memref<1x32xf32, #tpu.memory_space<vmem>>, %arg11: memref<32x32xbf16, #tpu.memory_space<vmem>>, %arg12: memref<1x32xf32, #tpu.memory_space<vmem>>, %arg13: memref<32x32xbf16, #tpu.memory_space<vmem>>, %arg14: memref<1x32xf32, #tpu.memory_space<vmem>>, %arg15: memref<32x96xbf16, #tpu.memory_space<vmem>>, %arg16: memref<32x96xbf16, #tpu.memory_space<vmem>>, %arg17: memref<1x96xf32, #tpu.memory_space<vmem>>, %arg18: memref<1x96xf32, #tpu.memory_space<vmem>>, %arg19: memref<32x96xbf16, #tpu.memory_space<vmem>>, %arg20: memref<32x96xbf16, #tpu.memory_space<vmem>>, %arg21: memref<32x96xbf16, #tpu.memory_space<vmem>>, %arg22: memref<1x96xf32, #tpu.memory_space<vmem>>, %arg23: memref<1x96xf32, #tpu.memory_space<vmem>>, %arg24: memref<5x16x32xf32, #tpu.memory_space<vmem>>, %arg25: memref<5x8x32xf32, #tpu.memory_space<vmem>>) attributes {dimension_semantics = [], scalar_prefetch = 0 : i64, scratch_operands = 0 : i64, tpu.core_type = #tpu.core_type<tc>} {
    %c0 = arith.constant 0 : index
    %c0_0 = arith.constant 0 : index
    %0 = vector.load %arg0[%c0, %c0_0] : memref<8x16xf32, #tpu.memory_space<vmem>>, vector<8x16xf32>
    %1 = arith.truncf %0 : vector<8x16xf32> to vector<8x16xbf16>
    %2 = tpu.transpose %0, [1, 0] : vector<8x16xf32> -> vector<16x8xf32>
    %3 = arith.truncf %2 : vector<16x8xf32> to vector<16x8xbf16>
    %c0_1 = arith.constant 0 : index
    %c0_2 = arith.constant 0 : index
    %4 = vector.load %arg1[%c0_1, %c0_2] : memref<16x32xf32, #tpu.memory_space<vmem>>, vector<16x32xf32>
    %c0_3 = arith.constant 0 : index
    %c0_4 = arith.constant 0 : index
    %5 = vector.load %arg2[%c0_3, %c0_4] : memref<8x32xf32, #tpu.memory_space<vmem>>, vector<8x32xf32>
    %c0_5 = arith.constant 0 : index
    %c0_6 = arith.constant 0 : index
    %c0_7 = arith.constant 0 : index
    %6 = vector.load %arg24[%c0_5, %c0_6, %c0_7] : memref<5x16x32xf32, #tpu.memory_space<vmem>>, vector<1x16x32xf32>
    %7 = vector.shape_cast %6 : vector<1x16x32xf32> to vector<16x32xf32>
    %8 = vector.shape_cast %4 : vector<16x32xf32> to vector<1x16x32xf32>
    tpu.vector_store %arg24[%c0_5, %c0_6, %c0_7], %8 {strides = array<i32>} : memref<5x16x32xf32, #tpu.memory_space<vmem>>, vector<1x16x32xf32>,
    %c0_8 = arith.constant 0 : index
    %c0_9 = arith.constant 0 : index
    %c0_10 = arith.constant 0 : index
    %9 = vector.load %arg25[%c0_8, %c0_9, %c0_10] : memref<5x8x32xf32, #tpu.memory_space<vmem>>, vector<1x8x32xf32>
    %10 = vector.shape_cast %9 : vector<1x8x32xf32> to vector<8x32xf32>
    %11 = vector.shape_cast %5 : vector<8x32xf32> to vector<1x8x32xf32>
    tpu.vector_store %arg25[%c0_8, %c0_9, %c0_10], %11 {strides = array<i32>} : memref<5x8x32xf32, #tpu.memory_space<vmem>>, vector<1x8x32xf32>,
    %12 = tpu.iota {dimensions = array<i32: 0>} : vector<16x32xi32>
    %c2_i32 = arith.constant 2 : i32
    %c0_i32 = arith.constant 0 : i32
    %13 = arith.cmpi eq, %c2_i32, %c0_i32 : i32
    %c1_i32 = arith.constant 1 : i32
    %14 = arith.select %13, %c1_i32, %c2_i32 : i32
    %15 = vector.broadcast %14 : i32 to vector<16x32xi32>
    %16 = arith.remsi %12, %15 : vector<16x32xi32>
    %c0_i32_11 = arith.constant 0 : i32
    %17 = vector.broadcast %c0_i32_11 : i32 to vector<16x32xi32>
    %18 = arith.cmpi ne, %16, %17 : vector<16x32xi32>
    %c0_i32_12 = arith.constant 0 : i32
    %19 = vector.broadcast %c0_i32_12 : i32 to vector<16x32xi32>
    %20 = arith.cmpi slt, %16, %19 : vector<16x32xi32>
    %c0_i32_13 = arith.constant 0 : i32
    %21 = arith.cmpi slt, %14, %c0_i32_13 : i32
    %22 = vector.broadcast %21 : i1 to vector<16x32xi1>
    %23 = vector.broadcast %22 : vector<16x32xi1> to vector<16x32xi1>
    %24 = arith.xori %20, %23 : vector<16x32xi1>
    %25 = arith.andi %24, %18 : vector<16x32xi1>
    %26 = vector.broadcast %14 : i32 to vector<16x32xi32>
    %27 = arith.addi %16, %26 : vector<16x32xi32>
    %28 = arith.select %25, %27, %16 : vector<16x32xi1>, vector<16x32xi32>
    %29 = arith.truncf %4 : vector<16x32xf32> to vector<16x32xbf16>
    %c0_14 = arith.constant 0 : index
    %c0_15 = arith.constant 0 : index
    %30 = vector.load %arg3[%c0_14, %c0_15] : memref<32x32xbf16, #tpu.memory_space<vmem>>, vector<32x32xbf16>
    %cst = arith.constant dense<0.000000e+00> : vector<16x32xf32>
    %31 = tpu.matmul %29, %30, %cst {dimension_numbers = #tpu.dot_dimension_numbers<[1], [0], [0], [1], [0, 0, 1, 1], [], []>} : vector<16x32xbf16>, vector<32x32xbf16>, vector<16x32xf32> -> vector<16x32xf32>
    %c0_16 = arith.constant 0 : index
    %c0_17 = arith.constant 0 : index
    %32 = vector.load %arg4[%c0_16, %c0_17] : memref<1x32xf32, #tpu.memory_space<vmem>>, vector<1x32xf32>
    %33 = vector.broadcast %32 : vector<1x32xf32> to vector<16x32xf32>
    %34 = arith.addf %31, %33 : vector<16x32xf32>
    %cst_18 = arith.constant 0.000000e+00 : f32
    %35 = vector.broadcast %cst_18 : f32 to vector<16x32xf32>
    %36 = arith.maximumf %34, %35 : vector<16x32xf32>
    %37 = arith.truncf %36 : vector<16x32xf32> to vector<16x32xbf16>
    %c0_19 = arith.constant 0 : index
    %c0_20 = arith.constant 0 : index
    %38 = vector.load %arg5[%c0_19, %c0_20] : memref<32x32xbf16, #tpu.memory_space<vmem>>, vector<32x32xbf16>
    %cst_21 = arith.constant dense<0.000000e+00> : vector<16x32xf32>
    %39 = tpu.matmul %37, %38, %cst_21 {dimension_numbers = #tpu.dot_dimension_numbers<[1], [0], [0], [1], [0, 0, 1, 1], [], []>} : vector<16x32xbf16>, vector<32x32xbf16>, vector<16x32xf32> -> vector<16x32xf32>
    %c0_22 = arith.constant 0 : index
    %c0_23 = arith.constant 0 : index
    %40 = vector.load %arg6[%c0_22, %c0_23] : memref<1x32xf32, #tpu.memory_space<vmem>>, vector<1x32xf32>
    %41 = vector.broadcast %40 : vector<1x32xf32> to vector<16x32xf32>
    %42 = arith.addf %39, %41 : vector<16x32xf32>
    %43 = arith.truncf %5 : vector<8x32xf32> to vector<8x32xbf16>
    %c0_24 = arith.constant 0 : index
    %c0_25 = arith.constant 0 : index
    %44 = vector.load %arg7[%c0_24, %c0_25] : memref<32x32xbf16, #tpu.memory_space<vmem>>, vector<32x32xbf16>
    %cst_26 = arith.constant dense<0.000000e+00> : vector<8x32xf32>
    %45 = tpu.matmul %43, %44, %cst_26 {dimension_numbers = #tpu.dot_dimension_numbers<[1], [0], [0], [1], [0, 0, 1, 1], [], []>} : vector<8x32xbf16>, vector<32x32xbf16>, vector<8x32xf32> -> vector<8x32xf32>
    %c0_27 = arith.constant 0 : index
    %c0_28 = arith.constant 0 : index
    %46 = vector.load %arg8[%c0_27, %c0_28] : memref<1x32xf32, #tpu.memory_space<vmem>>, vector<1x32xf32>
    %47 = vector.broadcast %46 : vector<1x32xf32> to vector<8x32xf32>
    %48 = arith.addf %45, %47 : vector<8x32xf32>
    %cst_29 = arith.constant 0.000000e+00 : f32
    %49 = vector.broadcast %cst_29 : f32 to vector<8x32xf32>
    %50 = arith.maximumf %48, %49 : vector<8x32xf32>
    %51 = arith.truncf %50 : vector<8x32xf32> to vector<8x32xbf16>
    %c0_30 = arith.constant 0 : index
    %c0_31 = arith.constant 0 : index
    %52 = vector.load %arg9[%c0_30, %c0_31] : memref<32x32xbf16, #tpu.memory_space<vmem>>, vector<32x32xbf16>
    %cst_32 = arith.constant dense<0.000000e+00> : vector<8x32xf32>
    %53 = tpu.matmul %51, %52, %cst_32 {dimension_numbers = #tpu.dot_dimension_numbers<[1], [0], [0], [1], [0, 0, 1, 1], [], []>} : vector<8x32xbf16>, vector<32x32xbf16>, vector<8x32xf32> -> vector<8x32xf32>
    %c0_33 = arith.constant 0 : index
    %c0_34 = arith.constant 0 : index
    %54 = vector.load %arg10[%c0_33, %c0_34] : memref<1x32xf32, #tpu.memory_space<vmem>>, vector<1x32xf32>
    %55 = vector.broadcast %54 : vector<1x32xf32> to vector<8x32xf32>
    %56 = arith.addf %53, %55 : vector<8x32xf32>
    %c15_i32 = arith.constant 15 : i32
    %57 = tpu.dynamic_rotate %4 by %c15_i32 dim 0 : vector<16x32xf32>, i32 -> vector<16x32xf32>
    %c1_i32_35 = arith.constant 1 : i32
    %58 = tpu.dynamic_rotate %4 by %c1_i32_35 dim 0 : vector<16x32xf32>, i32 -> vector<16x32xf32>
    %c0_i32_36 = arith.constant 0 : i32
    %59 = vector.broadcast %c0_i32_36 : i32 to vector<16x32xi32>
    %60 = arith.cmpi eq, %28, %59 : vector<16x32xi32>
    %61 = arith.select %60, %57, %58 : vector<16x32xi1>, vector<16x32xf32>
    %62 = arith.truncf %61 : vector<16x32xf32> to vector<16x32xbf16>
    %c0_37 = arith.constant 0 : index
    %c0_38 = arith.constant 0 : index
    %63 = vector.load %arg11[%c0_37, %c0_38] : memref<32x32xbf16, #tpu.memory_space<vmem>>, vector<32x32xbf16>
    %cst_39 = arith.constant dense<0.000000e+00> : vector<16x32xf32>
    %64 = tpu.matmul %62, %63, %cst_39 {dimension_numbers = #tpu.dot_dimension_numbers<[1], [0], [0], [1], [0, 0, 1, 1], [], []>} : vector<16x32xbf16>, vector<32x32xbf16>, vector<16x32xf32> -> vector<16x32xf32>
    %c0_40 = arith.constant 0 : index
    %c0_41 = arith.constant 0 : index
    %65 = vector.load %arg12[%c0_40, %c0_41] : memref<1x32xf32, #tpu.memory_space<vmem>>, vector<1x32xf32>
    %66 = vector.broadcast %65 : vector<1x32xf32> to vector<16x32xf32>
    %67 = arith.addf %64, %66 : vector<16x32xf32>
    %cst_42 = arith.constant 0.000000e+00 : f32
    %68 = vector.broadcast %cst_42 : f32 to vector<16x32xf32>
    %69 = arith.maximumf %67, %68 : vector<16x32xf32>
    %70 = arith.truncf %69 : vector<16x32xf32> to vector<16x32xbf16>
    %c0_43 = arith.constant 0 : index
    %c0_44 = arith.constant 0 : index
    %71 = vector.load %arg13[%c0_43, %c0_44] : memref<32x32xbf16, #tpu.memory_space<vmem>>, vector<32x32xbf16>
    %cst_45 = arith.constant dense<0.000000e+00> : vector<16x32xf32>
    %72 = tpu.matmul %70, %71, %cst_45 {dimension_numbers = #tpu.dot_dimension_numbers<[1], [0], [0], [1], [0, 0, 1, 1], [], []>} : vector<16x32xbf16>, vector<32x32xbf16>, vector<16x32xf32> -> vector<16x32xf32>
    %c0_46 = arith.constant 0 : index
    %c0_47 = arith.constant 0 : index
    %73 = vector.load %arg14[%c0_46, %c0_47] : memref<1x32xf32, #tpu.memory_space<vmem>>, vector<1x32xf32>
    %74 = vector.broadcast %73 : vector<1x32xf32> to vector<16x32xf32>
    %75 = arith.addf %72, %74 : vector<16x32xf32>
    %76 = arith.truncf %42 : vector<16x32xf32> to vector<16x32xbf16>
    %cst_48 = arith.constant dense<0.000000e+00> : vector<8x32xf32>
    %77 = tpu.matmul %1, %76, %cst_48 {dimension_numbers = #tpu.dot_dimension_numbers<[1], [0], [0], [1], [0, 0, 1, 1], [], []>} : vector<8x16xbf16>, vector<16x32xbf16>, vector<8x32xf32> -> vector<8x32xf32>
    %78 = arith.truncf %77 : vector<8x32xf32> to vector<8x32xbf16>
    %c0_49 = arith.constant 0 : index
    %c0_50 = arith.constant 0 : index
    %79 = vector.load %arg15[%c0_49, %c0_50] : memref<32x96xbf16, #tpu.memory_space<vmem>>, vector<32x96xbf16>
    %cst_51 = arith.constant dense<0.000000e+00> : vector<8x96xf32>
    %80 = tpu.matmul %78, %79, %cst_51 {dimension_numbers = #tpu.dot_dimension_numbers<[1], [0], [0], [1], [0, 0, 1, 1], [], []>} : vector<8x32xbf16>, vector<32x96xbf16>, vector<8x96xf32> -> vector<8x96xf32>
    %c0_52 = arith.constant 0 : index
    %c0_53 = arith.constant 0 : index
    %81 = vector.load %arg17[%c0_52, %c0_53] : memref<1x96xf32, #tpu.memory_space<vmem>>, vector<1x96xf32>
    %82 = vector.broadcast %81 : vector<1x96xf32> to vector<8x96xf32>
    %83 = arith.addf %80, %82 : vector<8x96xf32>
    %84 = arith.truncf %5 : vector<8x32xf32> to vector<8x32xbf16>
    %c0_54 = arith.constant 0 : index
    %c0_55 = arith.constant 0 : index
    %85 = vector.load %arg16[%c0_54, %c0_55] : memref<32x96xbf16, #tpu.memory_space<vmem>>, vector<32x96xbf16>
    %cst_56 = arith.constant dense<0.000000e+00> : vector<8x96xf32>
    %86 = tpu.matmul %84, %85, %cst_56 {dimension_numbers = #tpu.dot_dimension_numbers<[1], [0], [0], [1], [0, 0, 1, 1], [], []>} : vector<8x32xbf16>, vector<32x96xbf16>, vector<8x96xf32> -> vector<8x96xf32>
    %c0_57 = arith.constant 0 : index
    %c0_58 = arith.constant 0 : index
    %87 = vector.load %arg18[%c0_57, %c0_58] : memref<1x96xf32, #tpu.memory_space<vmem>>, vector<1x96xf32>
    %88 = vector.broadcast %87 : vector<1x96xf32> to vector<8x96xf32>
    %89 = arith.addf %86, %88 : vector<8x96xf32>
    %90 = vector.extract_strided_slice %83 {offsets = [0, 0], sizes = [8, 32], strides = [1, 1]} : vector<8x96xf32> to vector<8x32xf32>
    %91 = vector.extract_strided_slice %89 {offsets = [0, 0], sizes = [8, 32], strides = [1, 1]} : vector<8x96xf32> to vector<8x32xf32>
    %92 = arith.addf %90, %91 : vector<8x32xf32>
    %93 = arith.negf %92 : vector<8x32xf32>
    %94 = math.exp %93 : vector<8x32xf32>
    %cst_59 = arith.constant 1.000000e+00 : f32
    %95 = vector.broadcast %cst_59 : f32 to vector<8x32xf32>
    %96 = arith.addf %95, %94 : vector<8x32xf32>
    %97 = arith.divf %95, %96 : vector<8x32xf32>
    %98 = vector.extract_strided_slice %83 {offsets = [0, 32], sizes = [8, 32], strides = [1, 1]} : vector<8x96xf32> to vector<8x32xf32>
    %99 = vector.extract_strided_slice %89 {offsets = [0, 32], sizes = [8, 32], strides = [1, 1]} : vector<8x96xf32> to vector<8x32xf32>
    %100 = arith.addf %98, %99 : vector<8x32xf32>
    %101 = arith.negf %100 : vector<8x32xf32>
    %102 = math.exp %101 : vector<8x32xf32>
    %cst_60 = arith.constant 1.000000e+00 : f32
    %103 = vector.broadcast %cst_60 : f32 to vector<8x32xf32>
    %104 = arith.addf %103, %102 : vector<8x32xf32>
    %105 = arith.divf %103, %104 : vector<8x32xf32>
    %106 = vector.extract_strided_slice %83 {offsets = [0, 64], sizes = [8, 32], strides = [1, 1]} : vector<8x96xf32> to vector<8x32xf32>
    %107 = vector.extract_strided_slice %89 {offsets = [0, 64], sizes = [8, 32], strides = [1, 1]} : vector<8x96xf32> to vector<8x32xf32>
    %108 = arith.mulf %97, %107 : vector<8x32xf32>
    %109 = arith.addf %106, %108 : vector<8x32xf32>
    %110 = math.tanh %109 : vector<8x32xf32>
    %cst_61 = arith.constant 1.000000e+00 : f32
    %111 = vector.broadcast %cst_61 : f32 to vector<8x32xf32>
    %112 = arith.subf %111, %105 : vector<8x32xf32>
    %113 = arith.mulf %112, %110 : vector<8x32xf32>
    %114 = arith.mulf %105, %5 : vector<8x32xf32>
    %115 = arith.addf %113, %114 : vector<8x32xf32>
    %c1 = arith.constant 1 : index
    %c0_62 = arith.constant 0 : index
    %c0_63 = arith.constant 0 : index
    %116 = vector.load %arg25[%c1, %c0_62, %c0_63] : memref<5x8x32xf32, #tpu.memory_space<vmem>>, vector<1x8x32xf32>
    %117 = vector.shape_cast %116 : vector<1x8x32xf32> to vector<8x32xf32>
    %118 = vector.shape_cast %115 : vector<8x32xf32> to vector<1x8x32xf32>
    tpu.vector_store %arg25[%c1, %c0_62, %c0_63], %118 {strides = array<i32>} : memref<5x8x32xf32, #tpu.memory_space<vmem>>, vector<1x8x32xf32>,
    %119 = arith.truncf %56 : vector<8x32xf32> to vector<8x32xbf16>
    %cst_64 = arith.constant dense<0.000000e+00> : vector<16x32xf32>
    %120 = tpu.matmul %3, %119, %cst_64 {dimension_numbers = #tpu.dot_dimension_numbers<[1], [0], [0], [1], [0, 0, 1, 1], [], []>} : vector<16x8xbf16>, vector<8x32xbf16>, vector<16x32xf32> -> vector<16x32xf32>
    %121 = arith.truncf %120 : vector<16x32xf32> to vector<16x32xbf16>
    %c0_65 = arith.constant 0 : index
    %c0_66 = arith.constant 0 : index
    %122 = vector.load %arg19[%c0_65, %c0_66] : memref<32x96xbf16, #tpu.memory_space<vmem>>, vector<32x96xbf16>
    %cst_67 = arith.constant dense<0.000000e+00> : vector<16x96xf32>
    %123 = tpu.matmul %121, %122, %cst_67 {dimension_numbers = #tpu.dot_dimension_numbers<[1], [0], [0], [1], [0, 0, 1, 1], [], []>} : vector<16x32xbf16>, vector<32x96xbf16>, vector<16x96xf32> -> vector<16x96xf32>
    %124 = arith.truncf %75 : vector<16x32xf32> to vector<16x32xbf16>
    %c0_68 = arith.constant 0 : index
    %c0_69 = arith.constant 0 : index
    %125 = vector.load %arg20[%c0_68, %c0_69] : memref<32x96xbf16, #tpu.memory_space<vmem>>, vector<32x96xbf16>
    %cst_70 = arith.constant dense<0.000000e+00> : vector<16x96xf32>
    %126 = tpu.matmul %124, %125, %cst_70 {dimension_numbers = #tpu.dot_dimension_numbers<[1], [0], [0], [1], [0, 0, 1, 1], [], []>} : vector<16x32xbf16>, vector<32x96xbf16>, vector<16x96xf32> -> vector<16x96xf32>
    %127 = arith.addf %123, %126 : vector<16x96xf32>
    %c0_71 = arith.constant 0 : index
    %c0_72 = arith.constant 0 : index
    %128 = vector.load %arg22[%c0_71, %c0_72] : memref<1x96xf32, #tpu.memory_space<vmem>>, vector<1x96xf32>
    %129 = vector.broadcast %128 : vector<1x96xf32> to vector<16x96xf32>
    %130 = arith.addf %127, %129 : vector<16x96xf32>
    %131 = arith.truncf %4 : vector<16x32xf32> to vector<16x32xbf16>
    %c0_73 = arith.constant 0 : index
    %c0_74 = arith.constant 0 : index
    %132 = vector.load %arg21[%c0_73, %c0_74] : memref<32x96xbf16, #tpu.memory_space<vmem>>, vector<32x96xbf16>
    %cst_75 = arith.constant dense<0.000000e+00> : vector<16x96xf32>
    %133 = tpu.matmul %131, %132, %cst_75 {dimension_numbers = #tpu.dot_dimension_numbers<[1], [0], [0], [1], [0, 0, 1, 1], [], []>} : vector<16x32xbf16>, vector<32x96xbf16>, vector<16x96xf32> -> vector<16x96xf32>
    %c0_76 = arith.constant 0 : index
    %c0_77 = arith.constant 0 : index
    %134 = vector.load %arg23[%c0_76, %c0_77] : memref<1x96xf32, #tpu.memory_space<vmem>>, vector<1x96xf32>
    %135 = vector.broadcast %134 : vector<1x96xf32> to vector<16x96xf32>
    %136 = arith.addf %133, %135 : vector<16x96xf32>
    %137 = vector.extract_strided_slice %130 {offsets = [0, 0], sizes = [16, 32], strides = [1, 1]} : vector<16x96xf32> to vector<16x32xf32>
    %138 = vector.extract_strided_slice %136 {offsets = [0, 0], sizes = [16, 32], strides = [1, 1]} : vector<16x96xf32> to vector<16x32xf32>
    %139 = arith.addf %137, %138 : vector<16x32xf32>
    %140 = arith.negf %139 : vector<16x32xf32>
    %141 = math.exp %140 : vector<16x32xf32>
    %cst_78 = arith.constant 1.000000e+00 : f32
    %142 = vector.broadcast %cst_78 : f32 to vector<16x32xf32>
    %143 = arith.addf %142, %141 : vector<16x32xf32>
    %144 = arith.divf %142, %143 : vector<16x32xf32>
    %145 = vector.extract_strided_slice %130 {offsets = [0, 32], sizes = [16, 32], strides = [1, 1]} : vector<16x96xf32> to vector<16x32xf32>
    %146 = vector.extract_strided_slice %136 {offsets = [0, 32], sizes = [16, 32], strides = [1, 1]} : vector<16x96xf32> to vector<16x32xf32>
    %147 = arith.addf %145, %146 : vector<16x32xf32>
    %148 = arith.negf %147 : vector<16x32xf32>
    %149 = math.exp %148 : vector<16x32xf32>
    %cst_79 = arith.constant 1.000000e+00 : f32
    %150 = vector.broadcast %cst_79 : f32 to vector<16x32xf32>
    %151 = arith.addf %150, %149 : vector<16x32xf32>
    %152 = arith.divf %150, %151 : vector<16x32xf32>
    %153 = vector.extract_strided_slice %130 {offsets = [0, 64], sizes = [16, 32], strides = [1, 1]} : vector<16x96xf32> to vector<16x32xf32>
    %154 = vector.extract_strided_slice %136 {offsets = [0, 64], sizes = [16, 32], strides = [1, 1]} : vector<16x96xf32> to vector<16x32xf32>
    %155 = arith.mulf %144, %154 : vector<16x32xf32>
    %156 = arith.addf %153, %155 : vector<16x32xf32>
    %157 = math.tanh %156 : vector<16x32xf32>
    %cst_80 = arith.constant 1.000000e+00 : f32
    %158 = vector.broadcast %cst_80 : f32 to vector<16x32xf32>
    %159 = arith.subf %158, %152 : vector<16x32xf32>
    %160 = arith.mulf %159, %157 : vector<16x32xf32>
    %161 = arith.mulf %152, %4 : vector<16x32xf32>
    %162 = arith.addf %160, %161 : vector<16x32xf32>
    %c1_81 = arith.constant 1 : index
    %c0_82 = arith.constant 0 : index
    %c0_83 = arith.constant 0 : index
    %163 = vector.load %arg24[%c1_81, %c0_82, %c0_83] : memref<5x16x32xf32, #tpu.memory_space<vmem>>, vector<1x16x32xf32>
    %164 = vector.shape_cast %163 : vector<1x16x32xf32> to vector<16x32xf32>
    %165 = vector.shape_cast %162 : vector<16x32xf32> to vector<1x16x32xf32>
    tpu.vector_store %arg24[%c1_81, %c0_82, %c0_83], %165 {strides = array<i32>} : memref<5x16x32xf32, #tpu.memory_space<vmem>>, vector<1x16x32xf32>,
    %166 = arith.truncf %162 : vector<16x32xf32> to vector<16x32xbf16>
    %c0_84 = arith.constant 0 : index
    %c0_85 = arith.constant 0 : index
    %167 = vector.load %arg3[%c0_84, %c0_85] : memref<32x32xbf16, #tpu.memory_space<vmem>>, vector<32x32xbf16>
    %cst_86 = arith.constant dense<0.000000e+00> : vector<16x32xf32>
    %168 = tpu.matmul %166, %167, %cst_86 {dimension_numbers = #tpu.dot_dimension_numbers<[1], [0], [0], [1], [0, 0, 1, 1], [], []>} : vector<16x32xbf16>, vector<32x32xbf16>, vector<16x32xf32> -> vector<16x32xf32>
    %c0_87 = arith.constant 0 : index
    %c0_88 = arith.constant 0 : index
    %169 = vector.load %arg4[%c0_87, %c0_88] : memref<1x32xf32, #tpu.memory_space<vmem>>, vector<1x32xf32>
    %170 = vector.broadcast %169 : vector<1x32xf32> to vector<16x32xf32>
    %171 = arith.addf %168, %170 : vector<16x32xf32>
    %cst_89 = arith.constant 0.000000e+00 : f32
    %172 = vector.broadcast %cst_89 : f32 to vector<16x32xf32>
    %173 = arith.maximumf %171, %172 : vector<16x32xf32>
    %174 = arith.truncf %173 : vector<16x32xf32> to vector<16x32xbf16>
    %c0_90 = arith.constant 0 : index
    %c0_91 = arith.constant 0 : index
    %175 = vector.load %arg5[%c0_90, %c0_91] : memref<32x32xbf16, #tpu.memory_space<vmem>>, vector<32x32xbf16>
    %cst_92 = arith.constant dense<0.000000e+00> : vector<16x32xf32>
    %176 = tpu.matmul %174, %175, %cst_92 {dimension_numbers = #tpu.dot_dimension_numbers<[1], [0], [0], [1], [0, 0, 1, 1], [], []>} : vector<16x32xbf16>, vector<32x32xbf16>, vector<16x32xf32> -> vector<16x32xf32>
    %c0_93 = arith.constant 0 : index
    %c0_94 = arith.constant 0 : index
    %177 = vector.load %arg6[%c0_93, %c0_94] : memref<1x32xf32, #tpu.memory_space<vmem>>, vector<1x32xf32>
    %178 = vector.broadcast %177 : vector<1x32xf32> to vector<16x32xf32>
    %179 = arith.addf %176, %178 : vector<16x32xf32>
    %180 = arith.truncf %115 : vector<8x32xf32> to vector<8x32xbf16>
    %c0_95 = arith.constant 0 : index
    %c0_96 = arith.constant 0 : index
    %181 = vector.load %arg7[%c0_95, %c0_96] : memref<32x32xbf16, #tpu.memory_space<vmem>>, vector<32x32xbf16>
    %cst_97 = arith.constant dense<0.000000e+00> : vector<8x32xf32>
    %182 = tpu.matmul %180, %181, %cst_97 {dimension_numbers = #tpu.dot_dimension_numbers<[1], [0], [0], [1], [0, 0, 1, 1], [], []>} : vector<8x32xbf16>, vector<32x32xbf16>, vector<8x32xf32> -> vector<8x32xf32>
    %c0_98 = arith.constant 0 : index
    %c0_99 = arith.constant 0 : index
    %183 = vector.load %arg8[%c0_98, %c0_99] : memref<1x32xf32, #tpu.memory_space<vmem>>, vector<1x32xf32>
    %184 = vector.broadcast %183 : vector<1x32xf32> to vector<8x32xf32>
    %185 = arith.addf %182, %184 : vector<8x32xf32>
    %cst_100 = arith.constant 0.000000e+00 : f32
    %186 = vector.broadcast %cst_100 : f32 to vector<8x32xf32>
    %187 = arith.maximumf %185, %186 : vector<8x32xf32>
    %188 = arith.truncf %187 : vector<8x32xf32> to vector<8x32xbf16>
    %c0_101 = arith.constant 0 : index
    %c0_102 = arith.constant 0 : index
    %189 = vector.load %arg9[%c0_101, %c0_102] : memref<32x32xbf16, #tpu.memory_space<vmem>>, vector<32x32xbf16>
    %cst_103 = arith.constant dense<0.000000e+00> : vector<8x32xf32>
    %190 = tpu.matmul %188, %189, %cst_103 {dimension_numbers = #tpu.dot_dimension_numbers<[1], [0], [0], [1], [0, 0, 1, 1], [], []>} : vector<8x32xbf16>, vector<32x32xbf16>, vector<8x32xf32> -> vector<8x32xf32>
    %c0_104 = arith.constant 0 : index
    %c0_105 = arith.constant 0 : index
    %191 = vector.load %arg10[%c0_104, %c0_105] : memref<1x32xf32, #tpu.memory_space<vmem>>, vector<1x32xf32>
    %192 = vector.broadcast %191 : vector<1x32xf32> to vector<8x32xf32>
    %193 = arith.addf %190, %192 : vector<8x32xf32>
    %c15_i32_106 = arith.constant 15 : i32
    %194 = tpu.dynamic_rotate %162 by %c15_i32_106 dim 0 : vector<16x32xf32>, i32 -> vector<16x32xf32>
    %c1_i32_107 = arith.constant 1 : i32
    %195 = tpu.dynamic_rotate %162 by %c1_i32_107 dim 0 : vector<16x32xf32>, i32 -> vector<16x32xf32>
    %c0_i32_108 = arith.constant 0 : i32
    %196 = vector.broadcast %c0_i32_108 : i32 to vector<16x32xi32>
    %197 = arith.cmpi eq, %28, %196 : vector<16x32xi32>
    %198 = arith.select %197, %194, %195 : vector<16x32xi1>, vector<16x32xf32>
    %199 = arith.truncf %198 : vector<16x32xf32> to vector<16x32xbf16>
    %c0_109 = arith.constant 0 : index
    %c0_110 = arith.constant 0 : index
    %200 = vector.load %arg11[%c0_109, %c0_110] : memref<32x32xbf16, #tpu.memory_space<vmem>>, vector<32x32xbf16>
    %cst_111 = arith.constant dense<0.000000e+00> : vector<16x32xf32>
    %201 = tpu.matmul %199, %200, %cst_111 {dimension_numbers = #tpu.dot_dimension_numbers<[1], [0], [0], [1], [0, 0, 1, 1], [], []>} : vector<16x32xbf16>, vector<32x32xbf16>, vector<16x32xf32> -> vector<16x32xf32>
    %c0_112 = arith.constant 0 : index
    %c0_113 = arith.constant 0 : index
    %202 = vector.load %arg12[%c0_112, %c0_113] : memref<1x32xf32, #tpu.memory_space<vmem>>, vector<1x32xf32>
    %203 = vector.broadcast %202 : vector<1x32xf32> to vector<16x32xf32>
    %204 = arith.addf %201, %203 : vector<16x32xf32>
    %cst_114 = arith.constant 0.000000e+00 : f32
    %205 = vector.broadcast %cst_114 : f32 to vector<16x32xf32>
    %206 = arith.maximumf %204, %205 : vector<16x32xf32>
    %207 = arith.truncf %206 : vector<16x32xf32> to vector<16x32xbf16>
    %c0_115 = arith.constant 0 : index
    %c0_116 = arith.constant 0 : index
    %208 = vector.load %arg13[%c0_115, %c0_116] : memref<32x32xbf16, #tpu.memory_space<vmem>>, vector<32x32xbf16>
    %cst_117 = arith.constant dense<0.000000e+00> : vector<16x32xf32>
    %209 = tpu.matmul %207, %208, %cst_117 {dimension_numbers = #tpu.dot_dimension_numbers<[1], [0], [0], [1], [0, 0, 1, 1], [], []>} : vector<16x32xbf16>, vector<32x32xbf16>, vector<16x32xf32> -> vector<16x32xf32>
    %c0_118 = arith.constant 0 : index
    %c0_119 = arith.constant 0 : index
    %210 = vector.load %arg14[%c0_118, %c0_119] : memref<1x32xf32, #tpu.memory_space<vmem>>, vector<1x32xf32>
    %211 = vector.broadcast %210 : vector<1x32xf32> to vector<16x32xf32>
    %212 = arith.addf %209, %211 : vector<16x32xf32>
    %213 = arith.truncf %179 : vector<16x32xf32> to vector<16x32xbf16>
    %cst_120 = arith.constant dense<0.000000e+00> : vector<8x32xf32>
    %214 = tpu.matmul %1, %213, %cst_120 {dimension_numbers = #tpu.dot_dimension_numbers<[1], [0], [0], [1], [0, 0, 1, 1], [], []>} : vector<8x16xbf16>, vector<16x32xbf16>, vector<8x32xf32> -> vector<8x32xf32>
    %215 = arith.truncf %214 : vector<8x32xf32> to vector<8x32xbf16>
    %c0_121 = arith.constant 0 : index
    %c0_122 = arith.constant 0 : index
    %216 = vector.load %arg15[%c0_121, %c0_122] : memref<32x96xbf16, #tpu.memory_space<vmem>>, vector<32x96xbf16>
    %cst_123 = arith.constant dense<0.000000e+00> : vector<8x96xf32>
    %217 = tpu.matmul %215, %216, %cst_123 {dimension_numbers = #tpu.dot_dimension_numbers<[1], [0], [0], [1], [0, 0, 1, 1], [], []>} : vector<8x32xbf16>, vector<32x96xbf16>, vector<8x96xf32> -> vector<8x96xf32>
    %c0_124 = arith.constant 0 : index
    %c0_125 = arith.constant 0 : index
    %218 = vector.load %arg17[%c0_124, %c0_125] : memref<1x96xf32, #tpu.memory_space<vmem>>, vector<1x96xf32>
    %219 = vector.broadcast %218 : vector<1x96xf32> to vector<8x96xf32>
    %220 = arith.addf %217, %219 : vector<8x96xf32>
    %221 = arith.truncf %115 : vector<8x32xf32> to vector<8x32xbf16>
    %c0_126 = arith.constant 0 : index
    %c0_127 = arith.constant 0 : index
    %222 = vector.load %arg16[%c0_126, %c0_127] : memref<32x96xbf16, #tpu.memory_space<vmem>>, vector<32x96xbf16>
    %cst_128 = arith.constant dense<0.000000e+00> : vector<8x96xf32>
    %223 = tpu.matmul %221, %222, %cst_128 {dimension_numbers = #tpu.dot_dimension_numbers<[1], [0], [0], [1], [0, 0, 1, 1], [], []>} : vector<8x32xbf16>, vector<32x96xbf16>, vector<8x96xf32> -> vector<8x96xf32>
    %c0_129 = arith.constant 0 : index
    %c0_130 = arith.constant 0 : index
    %224 = vector.load %arg18[%c0_129, %c0_130] : memref<1x96xf32, #tpu.memory_space<vmem>>, vector<1x96xf32>
    %225 = vector.broadcast %224 : vector<1x96xf32> to vector<8x96xf32>
    %226 = arith.addf %223, %225 : vector<8x96xf32>
    %227 = vector.extract_strided_slice %220 {offsets = [0, 0], sizes = [8, 32], strides = [1, 1]} : vector<8x96xf32> to vector<8x32xf32>
    %228 = vector.extract_strided_slice %226 {offsets = [0, 0], sizes = [8, 32], strides = [1, 1]} : vector<8x96xf32> to vector<8x32xf32>
    %229 = arith.addf %227, %228 : vector<8x32xf32>
    %230 = arith.negf %229 : vector<8x32xf32>
    %231 = math.exp %230 : vector<8x32xf32>
    %cst_131 = arith.constant 1.000000e+00 : f32
    %232 = vector.broadcast %cst_131 : f32 to vector<8x32xf32>
    %233 = arith.addf %232, %231 : vector<8x32xf32>
    %234 = arith.divf %232, %233 : vector<8x32xf32>
    %235 = vector.extract_strided_slice %220 {offsets = [0, 32], sizes = [8, 32], strides = [1, 1]} : vector<8x96xf32> to vector<8x32xf32>
    %236 = vector.extract_strided_slice %226 {offsets = [0, 32], sizes = [8, 32], strides = [1, 1]} : vector<8x96xf32> to vector<8x32xf32>
    %237 = arith.addf %235, %236 : vector<8x32xf32>
    %238 = arith.negf %237 : vector<8x32xf32>
    %239 = math.exp %238 : vector<8x32xf32>
    %cst_132 = arith.constant 1.000000e+00 : f32
    %240 = vector.broadcast %cst_132 : f32 to vector<8x32xf32>
    %241 = arith.addf %240, %239 : vector<8x32xf32>
    %242 = arith.divf %240, %241 : vector<8x32xf32>
    %243 = vector.extract_strided_slice %220 {offsets = [0, 64], sizes = [8, 32], strides = [1, 1]} : vector<8x96xf32> to vector<8x32xf32>
    %244 = vector.extract_strided_slice %226 {offsets = [0, 64], sizes = [8, 32], strides = [1, 1]} : vector<8x96xf32> to vector<8x32xf32>
    %245 = arith.mulf %234, %244 : vector<8x32xf32>
    %246 = arith.addf %243, %245 : vector<8x32xf32>
    %247 = math.tanh %246 : vector<8x32xf32>
    %cst_133 = arith.constant 1.000000e+00 : f32
    %248 = vector.broadcast %cst_133 : f32 to vector<8x32xf32>
    %249 = arith.subf %248, %242 : vector<8x32xf32>
    %250 = arith.mulf %249, %247 : vector<8x32xf32>
    %251 = arith.mulf %242, %115 : vector<8x32xf32>
    %252 = arith.addf %250, %251 : vector<8x32xf32>
    %c2 = arith.constant 2 : index
    %c0_134 = arith.constant 0 : index
    %c0_135 = arith.constant 0 : index
    %253 = vector.load %arg25[%c2, %c0_134, %c0_135] : memref<5x8x32xf32, #tpu.memory_space<vmem>>, vector<1x8x32xf32>
    %254 = vector.shape_cast %253 : vector<1x8x32xf32> to vector<8x32xf32>
    %255 = vector.shape_cast %252 : vector<8x32xf32> to vector<1x8x32xf32>
    tpu.vector_store %arg25[%c2, %c0_134, %c0_135], %255 {strides = array<i32>} : memref<5x8x32xf32, #tpu.memory_space<vmem>>, vector<1x8x32xf32>,
    %256 = arith.truncf %193 : vector<8x32xf32> to vector<8x32xbf16>
    %cst_136 = arith.constant dense<0.000000e+00> : vector<16x32xf32>
    %257 = tpu.matmul %3, %256, %cst_136 {dimension_numbers = #tpu.dot_dimension_numbers<[1], [0], [0], [1], [0, 0, 1, 1], [], []>} : vector<16x8xbf16>, vector<8x32xbf16>, vector<16x32xf32> -> vector<16x32xf32>
    %258 = arith.truncf %257 : vector<16x32xf32> to vector<16x32xbf16>
    %c0_137 = arith.constant 0 : index
    %c0_138 = arith.constant 0 : index
    %259 = vector.load %arg19[%c0_137, %c0_138] : memref<32x96xbf16, #tpu.memory_space<vmem>>, vector<32x96xbf16>
    %cst_139 = arith.constant dense<0.000000e+00> : vector<16x96xf32>
    %260 = tpu.matmul %258, %259, %cst_139 {dimension_numbers = #tpu.dot_dimension_numbers<[1], [0], [0], [1], [0, 0, 1, 1], [], []>} : vector<16x32xbf16>, vector<32x96xbf16>, vector<16x96xf32> -> vector<16x96xf32>
    %261 = arith.truncf %212 : vector<16x32xf32> to vector<16x32xbf16>
    %c0_140 = arith.constant 0 : index
    %c0_141 = arith.constant 0 : index
    %262 = vector.load %arg20[%c0_140, %c0_141] : memref<32x96xbf16, #tpu.memory_space<vmem>>, vector<32x96xbf16>
    %cst_142 = arith.constant dense<0.000000e+00> : vector<16x96xf32>
    %263 = tpu.matmul %261, %262, %cst_142 {dimension_numbers = #tpu.dot_dimension_numbers<[1], [0], [0], [1], [0, 0, 1, 1], [], []>} : vector<16x32xbf16>, vector<32x96xbf16>, vector<16x96xf32> -> vector<16x96xf32>
    %264 = arith.addf %260, %263 : vector<16x96xf32>
    %c0_143 = arith.constant 0 : index
    %c0_144 = arith.constant 0 : index
    %265 = vector.load %arg22[%c0_143, %c0_144] : memref<1x96xf32, #tpu.memory_space<vmem>>, vector<1x96xf32>
    %266 = vector.broadcast %265 : vector<1x96xf32> to vector<16x96xf32>
    %267 = arith.addf %264, %266 : vector<16x96xf32>
    %268 = arith.truncf %162 : vector<16x32xf32> to vector<16x32xbf16>
    %c0_145 = arith.constant 0 : index
    %c0_146 = arith.constant 0 : index
    %269 = vector.load %arg21[%c0_145, %c0_146] : memref<32x96xbf16, #tpu.memory_space<vmem>>, vector<32x96xbf16>
    %cst_147 = arith.constant dense<0.000000e+00> : vector<16x96xf32>
    %270 = tpu.matmul %268, %269, %cst_147 {dimension_numbers = #tpu.dot_dimension_numbers<[1], [0], [0], [1], [0, 0, 1, 1], [], []>} : vector<16x32xbf16>, vector<32x96xbf16>, vector<16x96xf32> -> vector<16x96xf32>
    %c0_148 = arith.constant 0 : index
    %c0_149 = arith.constant 0 : index
    %271 = vector.load %arg23[%c0_148, %c0_149] : memref<1x96xf32, #tpu.memory_space<vmem>>, vector<1x96xf32>
    %272 = vector.broadcast %271 : vector<1x96xf32> to vector<16x96xf32>
    %273 = arith.addf %270, %272 : vector<16x96xf32>
    %274 = vector.extract_strided_slice %267 {offsets = [0, 0], sizes = [16, 32], strides = [1, 1]} : vector<16x96xf32> to vector<16x32xf32>
    %275 = vector.extract_strided_slice %273 {offsets = [0, 0], sizes = [16, 32], strides = [1, 1]} : vector<16x96xf32> to vector<16x32xf32>
    %276 = arith.addf %274, %275 : vector<16x32xf32>
    %277 = arith.negf %276 : vector<16x32xf32>
    %278 = math.exp %277 : vector<16x32xf32>
    %cst_150 = arith.constant 1.000000e+00 : f32
    %279 = vector.broadcast %cst_150 : f32 to vector<16x32xf32>
    %280 = arith.addf %279, %278 : vector<16x32xf32>
    %281 = arith.divf %279, %280 : vector<16x32xf32>
    %282 = vector.extract_strided_slice %267 {offsets = [0, 32], sizes = [16, 32], strides = [1, 1]} : vector<16x96xf32> to vector<16x32xf32>
    %283 = vector.extract_strided_slice %273 {offsets = [0, 32], sizes = [16, 32], strides = [1, 1]} : vector<16x96xf32> to vector<16x32xf32>
    %284 = arith.addf %282, %283 : vector<16x32xf32>
    %285 = arith.negf %284 : vector<16x32xf32>
    %286 = math.exp %285 : vector<16x32xf32>
    %cst_151 = arith.constant 1.000000e+00 : f32
    %287 = vector.broadcast %cst_151 : f32 to vector<16x32xf32>
    %288 = arith.addf %287, %286 : vector<16x32xf32>
    %289 = arith.divf %287, %288 : vector<16x32xf32>
    %290 = vector.extract_strided_slice %267 {offsets = [0, 64], sizes = [16, 32], strides = [1, 1]} : vector<16x96xf32> to vector<16x32xf32>
    %291 = vector.extract_strided_slice %273 {offsets = [0, 64], sizes = [16, 32], strides = [1, 1]} : vector<16x96xf32> to vector<16x32xf32>
    %292 = arith.mulf %281, %291 : vector<16x32xf32>
    %293 = arith.addf %290, %292 : vector<16x32xf32>
    %294 = math.tanh %293 : vector<16x32xf32>
    %cst_152 = arith.constant 1.000000e+00 : f32
    %295 = vector.broadcast %cst_152 : f32 to vector<16x32xf32>
    %296 = arith.subf %295, %289 : vector<16x32xf32>
    %297 = arith.mulf %296, %294 : vector<16x32xf32>
    %298 = arith.mulf %289, %162 : vector<16x32xf32>
    %299 = arith.addf %297, %298 : vector<16x32xf32>
    %c2_153 = arith.constant 2 : index
    %c0_154 = arith.constant 0 : index
    %c0_155 = arith.constant 0 : index
    %300 = vector.load %arg24[%c2_153, %c0_154, %c0_155] : memref<5x16x32xf32, #tpu.memory_space<vmem>>, vector<1x16x32xf32>
    %301 = vector.shape_cast %300 : vector<1x16x32xf32> to vector<16x32xf32>
    %302 = vector.shape_cast %299 : vector<16x32xf32> to vector<1x16x32xf32>
    tpu.vector_store %arg24[%c2_153, %c0_154, %c0_155], %302 {strides = array<i32>} : memref<5x16x32xf32, #tpu.memory_space<vmem>>, vector<1x16x32xf32>,
    %303 = arith.truncf %299 : vector<16x32xf32> to vector<16x32xbf16>
    %c0_156 = arith.constant 0 : index
    %c0_157 = arith.constant 0 : index
    %304 = vector.load %arg3[%c0_156, %c0_157] : memref<32x32xbf16, #tpu.memory_space<vmem>>, vector<32x32xbf16>
    %cst_158 = arith.constant dense<0.000000e+00> : vector<16x32xf32>
    %305 = tpu.matmul %303, %304, %cst_158 {dimension_numbers = #tpu.dot_dimension_numbers<[1], [0], [0], [1], [0, 0, 1, 1], [], []>} : vector<16x32xbf16>, vector<32x32xbf16>, vector<16x32xf32> -> vector<16x32xf32>
    %c0_159 = arith.constant 0 : index
    %c0_160 = arith.constant 0 : index
    %306 = vector.load %arg4[%c0_159, %c0_160] : memref<1x32xf32, #tpu.memory_space<vmem>>, vector<1x32xf32>
    %307 = vector.broadcast %306 : vector<1x32xf32> to vector<16x32xf32>
    %308 = arith.addf %305, %307 : vector<16x32xf32>
    %cst_161 = arith.constant 0.000000e+00 : f32
    %309 = vector.broadcast %cst_161 : f32 to vector<16x32xf32>
    %310 = arith.maximumf %308, %309 : vector<16x32xf32>
    %311 = arith.truncf %310 : vector<16x32xf32> to vector<16x32xbf16>
    %c0_162 = arith.constant 0 : index
    %c0_163 = arith.constant 0 : index
    %312 = vector.load %arg5[%c0_162, %c0_163] : memref<32x32xbf16, #tpu.memory_space<vmem>>, vector<32x32xbf16>
    %cst_164 = arith.constant dense<0.000000e+00> : vector<16x32xf32>
    %313 = tpu.matmul %311, %312, %cst_164 {dimension_numbers = #tpu.dot_dimension_numbers<[1], [0], [0], [1], [0, 0, 1, 1], [], []>} : vector<16x32xbf16>, vector<32x32xbf16>, vector<16x32xf32> -> vector<16x32xf32>
    %c0_165 = arith.constant 0 : index
    %c0_166 = arith.constant 0 : index
    %314 = vector.load %arg6[%c0_165, %c0_166] : memref<1x32xf32, #tpu.memory_space<vmem>>, vector<1x32xf32>
    %315 = vector.broadcast %314 : vector<1x32xf32> to vector<16x32xf32>
    %316 = arith.addf %313, %315 : vector<16x32xf32>
    %317 = arith.truncf %252 : vector<8x32xf32> to vector<8x32xbf16>
    %c0_167 = arith.constant 0 : index
    %c0_168 = arith.constant 0 : index
    %318 = vector.load %arg7[%c0_167, %c0_168] : memref<32x32xbf16, #tpu.memory_space<vmem>>, vector<32x32xbf16>
    %cst_169 = arith.constant dense<0.000000e+00> : vector<8x32xf32>
    %319 = tpu.matmul %317, %318, %cst_169 {dimension_numbers = #tpu.dot_dimension_numbers<[1], [0], [0], [1], [0, 0, 1, 1], [], []>} : vector<8x32xbf16>, vector<32x32xbf16>, vector<8x32xf32> -> vector<8x32xf32>
    %c0_170 = arith.constant 0 : index
    %c0_171 = arith.constant 0 : index
    %320 = vector.load %arg8[%c0_170, %c0_171] : memref<1x32xf32, #tpu.memory_space<vmem>>, vector<1x32xf32>
    %321 = vector.broadcast %320 : vector<1x32xf32> to vector<8x32xf32>
    %322 = arith.addf %319, %321 : vector<8x32xf32>
    %cst_172 = arith.constant 0.000000e+00 : f32
    %323 = vector.broadcast %cst_172 : f32 to vector<8x32xf32>
    %324 = arith.maximumf %322, %323 : vector<8x32xf32>
    %325 = arith.truncf %324 : vector<8x32xf32> to vector<8x32xbf16>
    %c0_173 = arith.constant 0 : index
    %c0_174 = arith.constant 0 : index
    %326 = vector.load %arg9[%c0_173, %c0_174] : memref<32x32xbf16, #tpu.memory_space<vmem>>, vector<32x32xbf16>
    %cst_175 = arith.constant dense<0.000000e+00> : vector<8x32xf32>
    %327 = tpu.matmul %325, %326, %cst_175 {dimension_numbers = #tpu.dot_dimension_numbers<[1], [0], [0], [1], [0, 0, 1, 1], [], []>} : vector<8x32xbf16>, vector<32x32xbf16>, vector<8x32xf32> -> vector<8x32xf32>
    %c0_176 = arith.constant 0 : index
    %c0_177 = arith.constant 0 : index
    %328 = vector.load %arg10[%c0_176, %c0_177] : memref<1x32xf32, #tpu.memory_space<vmem>>, vector<1x32xf32>
    %329 = vector.broadcast %328 : vector<1x32xf32> to vector<8x32xf32>
    %330 = arith.addf %327, %329 : vector<8x32xf32>
    %c15_i32_178 = arith.constant 15 : i32
    %331 = tpu.dynamic_rotate %299 by %c15_i32_178 dim 0 : vector<16x32xf32>, i32 -> vector<16x32xf32>
    %c1_i32_179 = arith.constant 1 : i32
    %332 = tpu.dynamic_rotate %299 by %c1_i32_179 dim 0 : vector<16x32xf32>, i32 -> vector<16x32xf32>
    %c0_i32_180 = arith.constant 0 : i32
    %333 = vector.broadcast %c0_i32_180 : i32 to vector<16x32xi32>
    %334 = arith.cmpi eq, %28, %333 : vector<16x32xi32>
    %335 = arith.select %334, %331, %332 : vector<16x32xi1>, vector<16x32xf32>
    %336 = arith.truncf %335 : vector<16x32xf32> to vector<16x32xbf16>
    %c0_181 = arith.constant 0 : index
    %c0_182 = arith.constant 0 : index
    %337 = vector.load %arg11[%c0_181, %c0_182] : memref<32x32xbf16, #tpu.memory_space<vmem>>, vector<32x32xbf16>
    %cst_183 = arith.constant dense<0.000000e+00> : vector<16x32xf32>
    %338 = tpu.matmul %336, %337, %cst_183 {dimension_numbers = #tpu.dot_dimension_numbers<[1], [0], [0], [1], [0, 0, 1, 1], [], []>} : vector<16x32xbf16>, vector<32x32xbf16>, vector<16x32xf32> -> vector<16x32xf32>
    %c0_184 = arith.constant 0 : index
    %c0_185 = arith.constant 0 : index
    %339 = vector.load %arg12[%c0_184, %c0_185] : memref<1x32xf32, #tpu.memory_space<vmem>>, vector<1x32xf32>
    %340 = vector.broadcast %339 : vector<1x32xf32> to vector<16x32xf32>
    %341 = arith.addf %338, %340 : vector<16x32xf32>
    %cst_186 = arith.constant 0.000000e+00 : f32
    %342 = vector.broadcast %cst_186 : f32 to vector<16x32xf32>
    %343 = arith.maximumf %341, %342 : vector<16x32xf32>
    %344 = arith.truncf %343 : vector<16x32xf32> to vector<16x32xbf16>
    %c0_187 = arith.constant 0 : index
    %c0_188 = arith.constant 0 : index
    %345 = vector.load %arg13[%c0_187, %c0_188] : memref<32x32xbf16, #tpu.memory_space<vmem>>, vector<32x32xbf16>
    %cst_189 = arith.constant dense<0.000000e+00> : vector<16x32xf32>
    %346 = tpu.matmul %344, %345, %cst_189 {dimension_numbers = #tpu.dot_dimension_numbers<[1], [0], [0], [1], [0, 0, 1, 1], [], []>} : vector<16x32xbf16>, vector<32x32xbf16>, vector<16x32xf32> -> vector<16x32xf32>
    %c0_190 = arith.constant 0 : index
    %c0_191 = arith.constant 0 : index
    %347 = vector.load %arg14[%c0_190, %c0_191] : memref<1x32xf32, #tpu.memory_space<vmem>>, vector<1x32xf32>
    %348 = vector.broadcast %347 : vector<1x32xf32> to vector<16x32xf32>
    %349 = arith.addf %346, %348 : vector<16x32xf32>
    %350 = arith.truncf %316 : vector<16x32xf32> to vector<16x32xbf16>
    %cst_192 = arith.constant dense<0.000000e+00> : vector<8x32xf32>
    %351 = tpu.matmul %1, %350, %cst_192 {dimension_numbers = #tpu.dot_dimension_numbers<[1], [0], [0], [1], [0, 0, 1, 1], [], []>} : vector<8x16xbf16>, vector<16x32xbf16>, vector<8x32xf32> -> vector<8x32xf32>
    %352 = arith.truncf %351 : vector<8x32xf32> to vector<8x32xbf16>
    %c0_193 = arith.constant 0 : index
    %c0_194 = arith.constant 0 : index
    %353 = vector.load %arg15[%c0_193, %c0_194] : memref<32x96xbf16, #tpu.memory_space<vmem>>, vector<32x96xbf16>
    %cst_195 = arith.constant dense<0.000000e+00> : vector<8x96xf32>
    %354 = tpu.matmul %352, %353, %cst_195 {dimension_numbers = #tpu.dot_dimension_numbers<[1], [0], [0], [1], [0, 0, 1, 1], [], []>} : vector<8x32xbf16>, vector<32x96xbf16>, vector<8x96xf32> -> vector<8x96xf32>
    %c0_196 = arith.constant 0 : index
    %c0_197 = arith.constant 0 : index
    %355 = vector.load %arg17[%c0_196, %c0_197] : memref<1x96xf32, #tpu.memory_space<vmem>>, vector<1x96xf32>
    %356 = vector.broadcast %355 : vector<1x96xf32> to vector<8x96xf32>
    %357 = arith.addf %354, %356 : vector<8x96xf32>
    %358 = arith.truncf %252 : vector<8x32xf32> to vector<8x32xbf16>
    %c0_198 = arith.constant 0 : index
    %c0_199 = arith.constant 0 : index
    %359 = vector.load %arg16[%c0_198, %c0_199] : memref<32x96xbf16, #tpu.memory_space<vmem>>, vector<32x96xbf16>
    %cst_200 = arith.constant dense<0.000000e+00> : vector<8x96xf32>
    %360 = tpu.matmul %358, %359, %cst_200 {dimension_numbers = #tpu.dot_dimension_numbers<[1], [0], [0], [1], [0, 0, 1, 1], [], []>} : vector<8x32xbf16>, vector<32x96xbf16>, vector<8x96xf32> -> vector<8x96xf32>
    %c0_201 = arith.constant 0 : index
    %c0_202 = arith.constant 0 : index
    %361 = vector.load %arg18[%c0_201, %c0_202] : memref<1x96xf32, #tpu.memory_space<vmem>>, vector<1x96xf32>
    %362 = vector.broadcast %361 : vector<1x96xf32> to vector<8x96xf32>
    %363 = arith.addf %360, %362 : vector<8x96xf32>
    %364 = vector.extract_strided_slice %357 {offsets = [0, 0], sizes = [8, 32], strides = [1, 1]} : vector<8x96xf32> to vector<8x32xf32>
    %365 = vector.extract_strided_slice %363 {offsets = [0, 0], sizes = [8, 32], strides = [1, 1]} : vector<8x96xf32> to vector<8x32xf32>
    %366 = arith.addf %364, %365 : vector<8x32xf32>
    %367 = arith.negf %366 : vector<8x32xf32>
    %368 = math.exp %367 : vector<8x32xf32>
    %cst_203 = arith.constant 1.000000e+00 : f32
    %369 = vector.broadcast %cst_203 : f32 to vector<8x32xf32>
    %370 = arith.addf %369, %368 : vector<8x32xf32>
    %371 = arith.divf %369, %370 : vector<8x32xf32>
    %372 = vector.extract_strided_slice %357 {offsets = [0, 32], sizes = [8, 32], strides = [1, 1]} : vector<8x96xf32> to vector<8x32xf32>
    %373 = vector.extract_strided_slice %363 {offsets = [0, 32], sizes = [8, 32], strides = [1, 1]} : vector<8x96xf32> to vector<8x32xf32>
    %374 = arith.addf %372, %373 : vector<8x32xf32>
    %375 = arith.negf %374 : vector<8x32xf32>
    %376 = math.exp %375 : vector<8x32xf32>
    %cst_204 = arith.constant 1.000000e+00 : f32
    %377 = vector.broadcast %cst_204 : f32 to vector<8x32xf32>
    %378 = arith.addf %377, %376 : vector<8x32xf32>
    %379 = arith.divf %377, %378 : vector<8x32xf32>
    %380 = vector.extract_strided_slice %357 {offsets = [0, 64], sizes = [8, 32], strides = [1, 1]} : vector<8x96xf32> to vector<8x32xf32>
    %381 = vector.extract_strided_slice %363 {offsets = [0, 64], sizes = [8, 32], strides = [1, 1]} : vector<8x96xf32> to vector<8x32xf32>
    %382 = arith.mulf %371, %381 : vector<8x32xf32>
    %383 = arith.addf %380, %382 : vector<8x32xf32>
    %384 = math.tanh %383 : vector<8x32xf32>
    %cst_205 = arith.constant 1.000000e+00 : f32
    %385 = vector.broadcast %cst_205 : f32 to vector<8x32xf32>
    %386 = arith.subf %385, %379 : vector<8x32xf32>
    %387 = arith.mulf %386, %384 : vector<8x32xf32>
    %388 = arith.mulf %379, %252 : vector<8x32xf32>
    %389 = arith.addf %387, %388 : vector<8x32xf32>
    %c3 = arith.constant 3 : index
    %c0_206 = arith.constant 0 : index
    %c0_207 = arith.constant 0 : index
    %390 = vector.load %arg25[%c3, %c0_206, %c0_207] : memref<5x8x32xf32, #tpu.memory_space<vmem>>, vector<1x8x32xf32>
    %391 = vector.shape_cast %390 : vector<1x8x32xf32> to vector<8x32xf32>
    %392 = vector.shape_cast %389 : vector<8x32xf32> to vector<1x8x32xf32>
    tpu.vector_store %arg25[%c3, %c0_206, %c0_207], %392 {strides = array<i32>} : memref<5x8x32xf32, #tpu.memory_space<vmem>>, vector<1x8x32xf32>,
    %393 = arith.truncf %330 : vector<8x32xf32> to vector<8x32xbf16>
    %cst_208 = arith.constant dense<0.000000e+00> : vector<16x32xf32>
    %394 = tpu.matmul %3, %393, %cst_208 {dimension_numbers = #tpu.dot_dimension_numbers<[1], [0], [0], [1], [0, 0, 1, 1], [], []>} : vector<16x8xbf16>, vector<8x32xbf16>, vector<16x32xf32> -> vector<16x32xf32>
    %395 = arith.truncf %394 : vector<16x32xf32> to vector<16x32xbf16>
    %c0_209 = arith.constant 0 : index
    %c0_210 = arith.constant 0 : index
    %396 = vector.load %arg19[%c0_209, %c0_210] : memref<32x96xbf16, #tpu.memory_space<vmem>>, vector<32x96xbf16>
    %cst_211 = arith.constant dense<0.000000e+00> : vector<16x96xf32>
    %397 = tpu.matmul %395, %396, %cst_211 {dimension_numbers = #tpu.dot_dimension_numbers<[1], [0], [0], [1], [0, 0, 1, 1], [], []>} : vector<16x32xbf16>, vector<32x96xbf16>, vector<16x96xf32> -> vector<16x96xf32>
    %398 = arith.truncf %349 : vector<16x32xf32> to vector<16x32xbf16>
    %c0_212 = arith.constant 0 : index
    %c0_213 = arith.constant 0 : index
    %399 = vector.load %arg20[%c0_212, %c0_213] : memref<32x96xbf16, #tpu.memory_space<vmem>>, vector<32x96xbf16>
    %cst_214 = arith.constant dense<0.000000e+00> : vector<16x96xf32>
    %400 = tpu.matmul %398, %399, %cst_214 {dimension_numbers = #tpu.dot_dimension_numbers<[1], [0], [0], [1], [0, 0, 1, 1], [], []>} : vector<16x32xbf16>, vector<32x96xbf16>, vector<16x96xf32> -> vector<16x96xf32>
    %401 = arith.addf %397, %400 : vector<16x96xf32>
    %c0_215 = arith.constant 0 : index
    %c0_216 = arith.constant 0 : index
    %402 = vector.load %arg22[%c0_215, %c0_216] : memref<1x96xf32, #tpu.memory_space<vmem>>, vector<1x96xf32>
    %403 = vector.broadcast %402 : vector<1x96xf32> to vector<16x96xf32>
    %404 = arith.addf %401, %403 : vector<16x96xf32>
    %405 = arith.truncf %299 : vector<16x32xf32> to vector<16x32xbf16>
    %c0_217 = arith.constant 0 : index
    %c0_218 = arith.constant 0 : index
    %406 = vector.load %arg21[%c0_217, %c0_218] : memref<32x96xbf16, #tpu.memory_space<vmem>>, vector<32x96xbf16>
    %cst_219 = arith.constant dense<0.000000e+00> : vector<16x96xf32>
    %407 = tpu.matmul %405, %406, %cst_219 {dimension_numbers = #tpu.dot_dimension_numbers<[1], [0], [0], [1], [0, 0, 1, 1], [], []>} : vector<16x32xbf16>, vector<32x96xbf16>, vector<16x96xf32> -> vector<16x96xf32>
    %c0_220 = arith.constant 0 : index
    %c0_221 = arith.constant 0 : index
    %408 = vector.load %arg23[%c0_220, %c0_221] : memref<1x96xf32, #tpu.memory_space<vmem>>, vector<1x96xf32>
    %409 = vector.broadcast %408 : vector<1x96xf32> to vector<16x96xf32>
    %410 = arith.addf %407, %409 : vector<16x96xf32>
    %411 = vector.extract_strided_slice %404 {offsets = [0, 0], sizes = [16, 32], strides = [1, 1]} : vector<16x96xf32> to vector<16x32xf32>
    %412 = vector.extract_strided_slice %410 {offsets = [0, 0], sizes = [16, 32], strides = [1, 1]} : vector<16x96xf32> to vector<16x32xf32>
    %413 = arith.addf %411, %412 : vector<16x32xf32>
    %414 = arith.negf %413 : vector<16x32xf32>
    %415 = math.exp %414 : vector<16x32xf32>
    %cst_222 = arith.constant 1.000000e+00 : f32
    %416 = vector.broadcast %cst_222 : f32 to vector<16x32xf32>
    %417 = arith.addf %416, %415 : vector<16x32xf32>
    %418 = arith.divf %416, %417 : vector<16x32xf32>
    %419 = vector.extract_strided_slice %404 {offsets = [0, 32], sizes = [16, 32], strides = [1, 1]} : vector<16x96xf32> to vector<16x32xf32>
    %420 = vector.extract_strided_slice %410 {offsets = [0, 32], sizes = [16, 32], strides = [1, 1]} : vector<16x96xf32> to vector<16x32xf32>
    %421 = arith.addf %419, %420 : vector<16x32xf32>
    %422 = arith.negf %421 : vector<16x32xf32>
    %423 = math.exp %422 : vector<16x32xf32>
    %cst_223 = arith.constant 1.000000e+00 : f32
    %424 = vector.broadcast %cst_223 : f32 to vector<16x32xf32>
    %425 = arith.addf %424, %423 : vector<16x32xf32>
    %426 = arith.divf %424, %425 : vector<16x32xf32>
    %427 = vector.extract_strided_slice %404 {offsets = [0, 64], sizes = [16, 32], strides = [1, 1]} : vector<16x96xf32> to vector<16x32xf32>
    %428 = vector.extract_strided_slice %410 {offsets = [0, 64], sizes = [16, 32], strides = [1, 1]} : vector<16x96xf32> to vector<16x32xf32>
    %429 = arith.mulf %418, %428 : vector<16x32xf32>
    %430 = arith.addf %427, %429 : vector<16x32xf32>
    %431 = math.tanh %430 : vector<16x32xf32>
    %cst_224 = arith.constant 1.000000e+00 : f32
    %432 = vector.broadcast %cst_224 : f32 to vector<16x32xf32>
    %433 = arith.subf %432, %426 : vector<16x32xf32>
    %434 = arith.mulf %433, %431 : vector<16x32xf32>
    %435 = arith.mulf %426, %299 : vector<16x32xf32>
    %436 = arith.addf %434, %435 : vector<16x32xf32>
    %c3_225 = arith.constant 3 : index
    %c0_226 = arith.constant 0 : index
    %c0_227 = arith.constant 0 : index
    %437 = vector.load %arg24[%c3_225, %c0_226, %c0_227] : memref<5x16x32xf32, #tpu.memory_space<vmem>>, vector<1x16x32xf32>
    %438 = vector.shape_cast %437 : vector<1x16x32xf32> to vector<16x32xf32>
    %439 = vector.shape_cast %436 : vector<16x32xf32> to vector<1x16x32xf32>
    tpu.vector_store %arg24[%c3_225, %c0_226, %c0_227], %439 {strides = array<i32>} : memref<5x16x32xf32, #tpu.memory_space<vmem>>, vector<1x16x32xf32>,
    %440 = arith.truncf %436 : vector<16x32xf32> to vector<16x32xbf16>
    %c0_228 = arith.constant 0 : index
    %c0_229 = arith.constant 0 : index
    %441 = vector.load %arg3[%c0_228, %c0_229] : memref<32x32xbf16, #tpu.memory_space<vmem>>, vector<32x32xbf16>
    %cst_230 = arith.constant dense<0.000000e+00> : vector<16x32xf32>
    %442 = tpu.matmul %440, %441, %cst_230 {dimension_numbers = #tpu.dot_dimension_numbers<[1], [0], [0], [1], [0, 0, 1, 1], [], []>} : vector<16x32xbf16>, vector<32x32xbf16>, vector<16x32xf32> -> vector<16x32xf32>
    %c0_231 = arith.constant 0 : index
    %c0_232 = arith.constant 0 : index
    %443 = vector.load %arg4[%c0_231, %c0_232] : memref<1x32xf32, #tpu.memory_space<vmem>>, vector<1x32xf32>
    %444 = vector.broadcast %443 : vector<1x32xf32> to vector<16x32xf32>
    %445 = arith.addf %442, %444 : vector<16x32xf32>
    %cst_233 = arith.constant 0.000000e+00 : f32
    %446 = vector.broadcast %cst_233 : f32 to vector<16x32xf32>
    %447 = arith.maximumf %445, %446 : vector<16x32xf32>
    %448 = arith.truncf %447 : vector<16x32xf32> to vector<16x32xbf16>
    %c0_234 = arith.constant 0 : index
    %c0_235 = arith.constant 0 : index
    %449 = vector.load %arg5[%c0_234, %c0_235] : memref<32x32xbf16, #tpu.memory_space<vmem>>, vector<32x32xbf16>
    %cst_236 = arith.constant dense<0.000000e+00> : vector<16x32xf32>
    %450 = tpu.matmul %448, %449, %cst_236 {dimension_numbers = #tpu.dot_dimension_numbers<[1], [0], [0], [1], [0, 0, 1, 1], [], []>} : vector<16x32xbf16>, vector<32x32xbf16>, vector<16x32xf32> -> vector<16x32xf32>
    %c0_237 = arith.constant 0 : index
    %c0_238 = arith.constant 0 : index
    %451 = vector.load %arg6[%c0_237, %c0_238] : memref<1x32xf32, #tpu.memory_space<vmem>>, vector<1x32xf32>
    %452 = vector.broadcast %451 : vector<1x32xf32> to vector<16x32xf32>
    %453 = arith.addf %450, %452 : vector<16x32xf32>
    %454 = arith.truncf %389 : vector<8x32xf32> to vector<8x32xbf16>
    %c0_239 = arith.constant 0 : index
    %c0_240 = arith.constant 0 : index
    %455 = vector.load %arg7[%c0_239, %c0_240] : memref<32x32xbf16, #tpu.memory_space<vmem>>, vector<32x32xbf16>
    %cst_241 = arith.constant dense<0.000000e+00> : vector<8x32xf32>
    %456 = tpu.matmul %454, %455, %cst_241 {dimension_numbers = #tpu.dot_dimension_numbers<[1], [0], [0], [1], [0, 0, 1, 1], [], []>} : vector<8x32xbf16>, vector<32x32xbf16>, vector<8x32xf32> -> vector<8x32xf32>
    %c0_242 = arith.constant 0 : index
    %c0_243 = arith.constant 0 : index
    %457 = vector.load %arg8[%c0_242, %c0_243] : memref<1x32xf32, #tpu.memory_space<vmem>>, vector<1x32xf32>
    %458 = vector.broadcast %457 : vector<1x32xf32> to vector<8x32xf32>
    %459 = arith.addf %456, %458 : vector<8x32xf32>
    %cst_244 = arith.constant 0.000000e+00 : f32
    %460 = vector.broadcast %cst_244 : f32 to vector<8x32xf32>
    %461 = arith.maximumf %459, %460 : vector<8x32xf32>
    %462 = arith.truncf %461 : vector<8x32xf32> to vector<8x32xbf16>
    %c0_245 = arith.constant 0 : index
    %c0_246 = arith.constant 0 : index
    %463 = vector.load %arg9[%c0_245, %c0_246] : memref<32x32xbf16, #tpu.memory_space<vmem>>, vector<32x32xbf16>
    %cst_247 = arith.constant dense<0.000000e+00> : vector<8x32xf32>
    %464 = tpu.matmul %462, %463, %cst_247 {dimension_numbers = #tpu.dot_dimension_numbers<[1], [0], [0], [1], [0, 0, 1, 1], [], []>} : vector<8x32xbf16>, vector<32x32xbf16>, vector<8x32xf32> -> vector<8x32xf32>
    %c0_248 = arith.constant 0 : index
    %c0_249 = arith.constant 0 : index
    %465 = vector.load %arg10[%c0_248, %c0_249] : memref<1x32xf32, #tpu.memory_space<vmem>>, vector<1x32xf32>
    %466 = vector.broadcast %465 : vector<1x32xf32> to vector<8x32xf32>
    %467 = arith.addf %464, %466 : vector<8x32xf32>
    %c15_i32_250 = arith.constant 15 : i32
    %468 = tpu.dynamic_rotate %436 by %c15_i32_250 dim 0 : vector<16x32xf32>, i32 -> vector<16x32xf32>
    %c1_i32_251 = arith.constant 1 : i32
    %469 = tpu.dynamic_rotate %436 by %c1_i32_251 dim 0 : vector<16x32xf32>, i32 -> vector<16x32xf32>
    %c0_i32_252 = arith.constant 0 : i32
    %470 = vector.broadcast %c0_i32_252 : i32 to vector<16x32xi32>
    %471 = arith.cmpi eq, %28, %470 : vector<16x32xi32>
    %472 = arith.select %471, %468, %469 : vector<16x32xi1>, vector<16x32xf32>
    %473 = arith.truncf %472 : vector<16x32xf32> to vector<16x32xbf16>
    %c0_253 = arith.constant 0 : index
    %c0_254 = arith.constant 0 : index
    %474 = vector.load %arg11[%c0_253, %c0_254] : memref<32x32xbf16, #tpu.memory_space<vmem>>, vector<32x32xbf16>
    %cst_255 = arith.constant dense<0.000000e+00> : vector<16x32xf32>
    %475 = tpu.matmul %473, %474, %cst_255 {dimension_numbers = #tpu.dot_dimension_numbers<[1], [0], [0], [1], [0, 0, 1, 1], [], []>} : vector<16x32xbf16>, vector<32x32xbf16>, vector<16x32xf32> -> vector<16x32xf32>
    %c0_256 = arith.constant 0 : index
    %c0_257 = arith.constant 0 : index
    %476 = vector.load %arg12[%c0_256, %c0_257] : memref<1x32xf32, #tpu.memory_space<vmem>>, vector<1x32xf32>
    %477 = vector.broadcast %476 : vector<1x32xf32> to vector<16x32xf32>
    %478 = arith.addf %475, %477 : vector<16x32xf32>
    %cst_258 = arith.constant 0.000000e+00 : f32
    %479 = vector.broadcast %cst_258 : f32 to vector<16x32xf32>
    %480 = arith.maximumf %478, %479 : vector<16x32xf32>
    %481 = arith.truncf %480 : vector<16x32xf32> to vector<16x32xbf16>
    %c0_259 = arith.constant 0 : index
    %c0_260 = arith.constant 0 : index
    %482 = vector.load %arg13[%c0_259, %c0_260] : memref<32x32xbf16, #tpu.memory_space<vmem>>, vector<32x32xbf16>
    %cst_261 = arith.constant dense<0.000000e+00> : vector<16x32xf32>
    %483 = tpu.matmul %481, %482, %cst_261 {dimension_numbers = #tpu.dot_dimension_numbers<[1], [0], [0], [1], [0, 0, 1, 1], [], []>} : vector<16x32xbf16>, vector<32x32xbf16>, vector<16x32xf32> -> vector<16x32xf32>
    %c0_262 = arith.constant 0 : index
    %c0_263 = arith.constant 0 : index
    %484 = vector.load %arg14[%c0_262, %c0_263] : memref<1x32xf32, #tpu.memory_space<vmem>>, vector<1x32xf32>
    %485 = vector.broadcast %484 : vector<1x32xf32> to vector<16x32xf32>
    %486 = arith.addf %483, %485 : vector<16x32xf32>
    %487 = arith.truncf %453 : vector<16x32xf32> to vector<16x32xbf16>
    %cst_264 = arith.constant dense<0.000000e+00> : vector<8x32xf32>
    %488 = tpu.matmul %1, %487, %cst_264 {dimension_numbers = #tpu.dot_dimension_numbers<[1], [0], [0], [1], [0, 0, 1, 1], [], []>} : vector<8x16xbf16>, vector<16x32xbf16>, vector<8x32xf32> -> vector<8x32xf32>
    %489 = arith.truncf %488 : vector<8x32xf32> to vector<8x32xbf16>
    %c0_265 = arith.constant 0 : index
    %c0_266 = arith.constant 0 : index
    %490 = vector.load %arg15[%c0_265, %c0_266] : memref<32x96xbf16, #tpu.memory_space<vmem>>, vector<32x96xbf16>
    %cst_267 = arith.constant dense<0.000000e+00> : vector<8x96xf32>
    %491 = tpu.matmul %489, %490, %cst_267 {dimension_numbers = #tpu.dot_dimension_numbers<[1], [0], [0], [1], [0, 0, 1, 1], [], []>} : vector<8x32xbf16>, vector<32x96xbf16>, vector<8x96xf32> -> vector<8x96xf32>
    %c0_268 = arith.constant 0 : index
    %c0_269 = arith.constant 0 : index
    %492 = vector.load %arg17[%c0_268, %c0_269] : memref<1x96xf32, #tpu.memory_space<vmem>>, vector<1x96xf32>
    %493 = vector.broadcast %492 : vector<1x96xf32> to vector<8x96xf32>
    %494 = arith.addf %491, %493 : vector<8x96xf32>
    %495 = arith.truncf %389 : vector<8x32xf32> to vector<8x32xbf16>
    %c0_270 = arith.constant 0 : index
    %c0_271 = arith.constant 0 : index
    %496 = vector.load %arg16[%c0_270, %c0_271] : memref<32x96xbf16, #tpu.memory_space<vmem>>, vector<32x96xbf16>
    %cst_272 = arith.constant dense<0.000000e+00> : vector<8x96xf32>
    %497 = tpu.matmul %495, %496, %cst_272 {dimension_numbers = #tpu.dot_dimension_numbers<[1], [0], [0], [1], [0, 0, 1, 1], [], []>} : vector<8x32xbf16>, vector<32x96xbf16>, vector<8x96xf32> -> vector<8x96xf32>
    %c0_273 = arith.constant 0 : index
    %c0_274 = arith.constant 0 : index
    %498 = vector.load %arg18[%c0_273, %c0_274] : memref<1x96xf32, #tpu.memory_space<vmem>>, vector<1x96xf32>
    %499 = vector.broadcast %498 : vector<1x96xf32> to vector<8x96xf32>
    %500 = arith.addf %497, %499 : vector<8x96xf32>
    %501 = vector.extract_strided_slice %494 {offsets = [0, 0], sizes = [8, 32], strides = [1, 1]} : vector<8x96xf32> to vector<8x32xf32>
    %502 = vector.extract_strided_slice %500 {offsets = [0, 0], sizes = [8, 32], strides = [1, 1]} : vector<8x96xf32> to vector<8x32xf32>
    %503 = arith.addf %501, %502 : vector<8x32xf32>
    %504 = arith.negf %503 : vector<8x32xf32>
    %505 = math.exp %504 : vector<8x32xf32>
    %cst_275 = arith.constant 1.000000e+00 : f32
    %506 = vector.broadcast %cst_275 : f32 to vector<8x32xf32>
    %507 = arith.addf %506, %505 : vector<8x32xf32>
    %508 = arith.divf %506, %507 : vector<8x32xf32>
    %509 = vector.extract_strided_slice %494 {offsets = [0, 32], sizes = [8, 32], strides = [1, 1]} : vector<8x96xf32> to vector<8x32xf32>
    %510 = vector.extract_strided_slice %500 {offsets = [0, 32], sizes = [8, 32], strides = [1, 1]} : vector<8x96xf32> to vector<8x32xf32>
    %511 = arith.addf %509, %510 : vector<8x32xf32>
    %512 = arith.negf %511 : vector<8x32xf32>
    %513 = math.exp %512 : vector<8x32xf32>
    %cst_276 = arith.constant 1.000000e+00 : f32
    %514 = vector.broadcast %cst_276 : f32 to vector<8x32xf32>
    %515 = arith.addf %514, %513 : vector<8x32xf32>
    %516 = arith.divf %514, %515 : vector<8x32xf32>
    %517 = vector.extract_strided_slice %494 {offsets = [0, 64], sizes = [8, 32], strides = [1, 1]} : vector<8x96xf32> to vector<8x32xf32>
    %518 = vector.extract_strided_slice %500 {offsets = [0, 64], sizes = [8, 32], strides = [1, 1]} : vector<8x96xf32> to vector<8x32xf32>
    %519 = arith.mulf %508, %518 : vector<8x32xf32>
    %520 = arith.addf %517, %519 : vector<8x32xf32>
    %521 = math.tanh %520 : vector<8x32xf32>
    %cst_277 = arith.constant 1.000000e+00 : f32
    %522 = vector.broadcast %cst_277 : f32 to vector<8x32xf32>
    %523 = arith.subf %522, %516 : vector<8x32xf32>
    %524 = arith.mulf %523, %521 : vector<8x32xf32>
    %525 = arith.mulf %516, %389 : vector<8x32xf32>
    %526 = arith.addf %524, %525 : vector<8x32xf32>
    %c4 = arith.constant 4 : index
    %c0_278 = arith.constant 0 : index
    %c0_279 = arith.constant 0 : index
    %527 = vector.load %arg25[%c4, %c0_278, %c0_279] : memref<5x8x32xf32, #tpu.memory_space<vmem>>, vector<1x8x32xf32>
    %528 = vector.shape_cast %527 : vector<1x8x32xf32> to vector<8x32xf32>
    %529 = vector.shape_cast %526 : vector<8x32xf32> to vector<1x8x32xf32>
    tpu.vector_store %arg25[%c4, %c0_278, %c0_279], %529 {strides = array<i32>} : memref<5x8x32xf32, #tpu.memory_space<vmem>>, vector<1x8x32xf32>,
    %530 = arith.truncf %467 : vector<8x32xf32> to vector<8x32xbf16>
    %cst_280 = arith.constant dense<0.000000e+00> : vector<16x32xf32>
    %531 = tpu.matmul %3, %530, %cst_280 {dimension_numbers = #tpu.dot_dimension_numbers<[1], [0], [0], [1], [0, 0, 1, 1], [], []>} : vector<16x8xbf16>, vector<8x32xbf16>, vector<16x32xf32> -> vector<16x32xf32>
    %532 = arith.truncf %531 : vector<16x32xf32> to vector<16x32xbf16>
    %c0_281 = arith.constant 0 : index
    %c0_282 = arith.constant 0 : index
    %533 = vector.load %arg19[%c0_281, %c0_282] : memref<32x96xbf16, #tpu.memory_space<vmem>>, vector<32x96xbf16>
    %cst_283 = arith.constant dense<0.000000e+00> : vector<16x96xf32>
    %534 = tpu.matmul %532, %533, %cst_283 {dimension_numbers = #tpu.dot_dimension_numbers<[1], [0], [0], [1], [0, 0, 1, 1], [], []>} : vector<16x32xbf16>, vector<32x96xbf16>, vector<16x96xf32> -> vector<16x96xf32>
    %535 = arith.truncf %486 : vector<16x32xf32> to vector<16x32xbf16>
    %c0_284 = arith.constant 0 : index
    %c0_285 = arith.constant 0 : index
    %536 = vector.load %arg20[%c0_284, %c0_285] : memref<32x96xbf16, #tpu.memory_space<vmem>>, vector<32x96xbf16>
    %cst_286 = arith.constant dense<0.000000e+00> : vector<16x96xf32>
    %537 = tpu.matmul %535, %536, %cst_286 {dimension_numbers = #tpu.dot_dimension_numbers<[1], [0], [0], [1], [0, 0, 1, 1], [], []>} : vector<16x32xbf16>, vector<32x96xbf16>, vector<16x96xf32> -> vector<16x96xf32>
    %538 = arith.addf %534, %537 : vector<16x96xf32>
    %c0_287 = arith.constant 0 : index
    %c0_288 = arith.constant 0 : index
    %539 = vector.load %arg22[%c0_287, %c0_288] : memref<1x96xf32, #tpu.memory_space<vmem>>, vector<1x96xf32>
    %540 = vector.broadcast %539 : vector<1x96xf32> to vector<16x96xf32>
    %541 = arith.addf %538, %540 : vector<16x96xf32>
    %542 = arith.truncf %436 : vector<16x32xf32> to vector<16x32xbf16>
    %c0_289 = arith.constant 0 : index
    %c0_290 = arith.constant 0 : index
    %543 = vector.load %arg21[%c0_289, %c0_290] : memref<32x96xbf16, #tpu.memory_space<vmem>>, vector<32x96xbf16>
    %cst_291 = arith.constant dense<0.000000e+00> : vector<16x96xf32>
    %544 = tpu.matmul %542, %543, %cst_291 {dimension_numbers = #tpu.dot_dimension_numbers<[1], [0], [0], [1], [0, 0, 1, 1], [], []>} : vector<16x32xbf16>, vector<32x96xbf16>, vector<16x96xf32> -> vector<16x96xf32>
    %c0_292 = arith.constant 0 : index
    %c0_293 = arith.constant 0 : index
    %545 = vector.load %arg23[%c0_292, %c0_293] : memref<1x96xf32, #tpu.memory_space<vmem>>, vector<1x96xf32>
    %546 = vector.broadcast %545 : vector<1x96xf32> to vector<16x96xf32>
    %547 = arith.addf %544, %546 : vector<16x96xf32>
    %548 = vector.extract_strided_slice %541 {offsets = [0, 0], sizes = [16, 32], strides = [1, 1]} : vector<16x96xf32> to vector<16x32xf32>
    %549 = vector.extract_strided_slice %547 {offsets = [0, 0], sizes = [16, 32], strides = [1, 1]} : vector<16x96xf32> to vector<16x32xf32>
    %550 = arith.addf %548, %549 : vector<16x32xf32>
    %551 = arith.negf %550 : vector<16x32xf32>
    %552 = math.exp %551 : vector<16x32xf32>
    %cst_294 = arith.constant 1.000000e+00 : f32
    %553 = vector.broadcast %cst_294 : f32 to vector<16x32xf32>
    %554 = arith.addf %553, %552 : vector<16x32xf32>
    %555 = arith.divf %553, %554 : vector<16x32xf32>
    %556 = vector.extract_strided_slice %541 {offsets = [0, 32], sizes = [16, 32], strides = [1, 1]} : vector<16x96xf32> to vector<16x32xf32>
    %557 = vector.extract_strided_slice %547 {offsets = [0, 32], sizes = [16, 32], strides = [1, 1]} : vector<16x96xf32> to vector<16x32xf32>
    %558 = arith.addf %556, %557 : vector<16x32xf32>
    %559 = arith.negf %558 : vector<16x32xf32>
    %560 = math.exp %559 : vector<16x32xf32>
    %cst_295 = arith.constant 1.000000e+00 : f32
    %561 = vector.broadcast %cst_295 : f32 to vector<16x32xf32>
    %562 = arith.addf %561, %560 : vector<16x32xf32>
    %563 = arith.divf %561, %562 : vector<16x32xf32>
    %564 = vector.extract_strided_slice %541 {offsets = [0, 64], sizes = [16, 32], strides = [1, 1]} : vector<16x96xf32> to vector<16x32xf32>
    %565 = vector.extract_strided_slice %547 {offsets = [0, 64], sizes = [16, 32], strides = [1, 1]} : vector<16x96xf32> to vector<16x32xf32>
    %566 = arith.mulf %555, %565 : vector<16x32xf32>
    %567 = arith.addf %564, %566 : vector<16x32xf32>
    %568 = math.tanh %567 : vector<16x32xf32>
    %cst_296 = arith.constant 1.000000e+00 : f32
    %569 = vector.broadcast %cst_296 : f32 to vector<16x32xf32>
    %570 = arith.subf %569, %563 : vector<16x32xf32>
    %571 = arith.mulf %570, %568 : vector<16x32xf32>
    %572 = arith.mulf %563, %436 : vector<16x32xf32>
    %573 = arith.addf %571, %572 : vector<16x32xf32>
    %c4_297 = arith.constant 4 : index
    %c0_298 = arith.constant 0 : index
    %c0_299 = arith.constant 0 : index
    %574 = vector.load %arg24[%c4_297, %c0_298, %c0_299] : memref<5x16x32xf32, #tpu.memory_space<vmem>>, vector<1x16x32xf32>
    %575 = vector.shape_cast %574 : vector<1x16x32xf32> to vector<16x32xf32>
    %576 = vector.shape_cast %573 : vector<16x32xf32> to vector<1x16x32xf32>
    tpu.vector_store %arg24[%c4_297, %c0_298, %c0_299], %576 {strides = array<i32>} : memref<5x16x32xf32, #tpu.memory_space<vmem>>, vector<1x16x32xf32>,
    return
  }
}

</mosaic_0001>

<llo_original>
// kernel: tpu_custom_call.1
$region0: #{tpu_custom_call.1}
  #allocation0 [shape = 'u32[]', space=smem, size = 0x4, offset = 0x4, fixed_abs, tag = 'smem constant byte address 0x4 - core index']
  #allocation1 [shape = 'u32[144,128]{1,0:T(1,128)}', space=vmem, size = 0x12000, scoped, tag = 'internal scratch']
  %s0 = inlined_call_operand.hbm [shape: f32[8,16], index: 0, kind: input, shape index: {}]
  %s1 = inlined_call_operand.hbm [shape: f32[16,32], index: 1, kind: input, shape index: {}]
  %s2 = inlined_call_operand.hbm [shape: f32[8,32], index: 2, kind: input, shape index: {}]
  %s3 = inlined_call_operand.hbm [shape: bf16[32,32], index: 3, kind: input, shape index: {}]
  %s4 = inlined_call_operand.hbm [shape: f32[1,32], index: 4, kind: input, shape index: {}]
  %s5 = inlined_call_operand.hbm [shape: bf16[32,32], index: 5, kind: input, shape index: {}]
  %s6 = inlined_call_operand.hbm [shape: f32[1,32], index: 6, kind: input, shape index: {}]
  %s7 = inlined_call_operand.hbm [shape: bf16[32,32], index: 7, kind: input, shape index: {}]
  %s8 = inlined_call_operand.hbm [shape: f32[1,32], index: 8, kind: input, shape index: {}]
  %s9 = inlined_call_operand.vmem [shape: bf16[32,32], index: 9, kind: input, shape index: {}]
  %s10 = inlined_call_operand.hbm [shape: f32[1,32], index: 10, kind: input, shape index: {}]
  %s11 = inlined_call_operand.hbm [shape: bf16[32,32], index: 11, kind: input, shape index: {}]
  %s12 = inlined_call_operand.hbm [shape: f32[1,32], index: 12, kind: input, shape index: {}]
  %s13 = inlined_call_operand.hbm [shape: bf16[32,32], index: 13, kind: input, shape index: {}]
  %s14 = inlined_call_operand.hbm [shape: f32[1,32], index: 14, kind: input, shape index: {}]
  %s15 = inlined_call_operand.hbm [shape: bf16[32,96], index: 15, kind: input, shape index: {}]
  %s16 = inlined_call_operand.hbm [shape: bf16[32,96], index: 16, kind: input, shape index: {}]
  %s17 = inlined_call_operand.hbm [shape: f32[1,96], index: 17, kind: input, shape index: {}]
  %s18 = inlined_call_operand.hbm [shape: f32[1,96], index: 18, kind: input, shape index: {}]
  %s19 = inlined_call_operand.vmem [shape: bf16[32,96], index: 19, kind: input, shape index: {}]
  %s20 = inlined_call_operand.hbm [shape: bf16[32,96], index: 20, kind: input, shape index: {}]
  %s21 = inlined_call_operand.hbm [shape: bf16[32,96], index: 21, kind: input, shape index: {}]
  %s22 = inlined_call_operand.vmem [shape: f32[1,96], index: 22, kind: input, shape index: {}]
  %s23 = inlined_call_operand.vmem [shape: f32[1,96], index: 23, kind: input, shape index: {}]
  %s24 = inlined_call_operand.hbm [shape: f32[5,16,32], index: 24, kind: output, shape index: {0}]
  %s25 = inlined_call_operand.hbm [shape: f32[5,8,32], index: 25, kind: output, shape index: {1}]
  %26 = xla_tuple %s24, %s25
  %s27 = sld [smem:[#allocation0]]
  $region194: #{tpu_custom_call.1} parent=0
    _
  %s29 = ssub.s32 1, %s27
  %s30 = scalar_select 0, %s29, %s27
  $region1: #{tpu_custom_call.1} parent=0
    #allocation2 [shape = 'u8[4096]{0}', space=vmem, size = 0x1000, scoped, tag = 'input window, operand 0, single buffered']
    #allocation3 [shape = 's32[1]{0}', space=sflag, size = 0x4, scoped, tag = 'scoped memory for tpu_custom_call.1']
    #allocation4 [shape = 's32[1]{0}', space=sflag, size = 0x4, scoped, tag = 'scoped memory for tpu_custom_call.1']
    #allocation5 [shape = 'u8[8192]{0}', space=vmem, size = 0x2000, scoped, tag = 'input window, operand 1, single buffered']
    #allocation6 [shape = 's32[1]{0}', space=sflag, size = 0x4, scoped, tag = 'scoped memory for tpu_custom_call.1']
    #allocation7 [shape = 'u8[4096]{0}', space=vmem, size = 0x1000, scoped, tag = 'input window, operand 2, single buffered']
    #allocation8 [shape = 'u8[8192]{0}', space=vmem, size = 0x2000, scoped, tag = 'input window, operand 3, single buffered']
    #allocation9 [shape = 's32[1]{0}', space=sflag, size = 0x4, scoped, tag = 'scoped memory for tpu_custom_call.1']
    #allocation10 [shape = 'u8[512]{0}', space=vmem, size = 0x400, scoped, tag = 'input window, operand 4, single buffered']
    #allocation11 [shape = 'u8[8192]{0}', space=vmem, size = 0x2000, scoped, tag = 'input window, operand 5, single buffered']
    #allocation12 [shape = 's32[1]{0}', space=sflag, size = 0x4, scoped, tag = 'scoped memory for tpu_custom_call.1']
    #allocation13 [shape = 'u8[512]{0}', space=vmem, size = 0x400, scoped, tag = 'input window, operand 6, single buffered']
    #allocation14 [shape = 'u8[8192]{0}', space=vmem, size = 0x2000, scoped, tag = 'input window, operand 7, single buffered']
    #allocation15 [shape = 's32[1]{0}', space=sflag, size = 0x4, scoped, tag = 'scoped memory for tpu_custom_call.1']
    #allocation16 [shape = 'u8[512]{0}', space=vmem, size = 0x400, scoped, tag = 'input window, operand 8, single buffered']
    #allocation17 [shape = 'u8[512]{0}', space=vmem, size = 0x400, scoped, tag = 'input window, operand 10, single buffered']
    #allocation18 [shape = 's32[1]{0}', space=sflag, size = 0x4, scoped, tag = 'scoped memory for tpu_custom_call.1']
    #allocation19 [shape = 'u8[8192]{0}', space=vmem, size = 0x2000, scoped, tag = 'input window, operand 11, single buffered']
    #allocation20 [shape = 'u8[512]{0}', space=vmem, size = 0x400, scoped, tag = 'input window, operand 12, single buffered']
    #allocation21 [shape = 's32[1]{0}', space=sflag, size = 0x4, scoped, tag = 'scoped memory for tpu_custom_call.1']
    #allocation22 [shape = 'u8[8192]{0}', space=vmem, size = 0x2000, scoped, tag = 'input window, operand 13, single buffered']
    #allocation23 [shape = 'u8[512]{0}', space=vmem, size = 0x400, scoped, tag = 'input window, operand 14, single buffered']
    #allocation24 [shape = 's32[1]{0}', space=sflag, size = 0x4, scoped, tag = 'scoped memory for tpu_custom_call.1']
    #allocation25 [shape = 'u8[8192]{0}', space=vmem, size = 0x2000, scoped, tag = 'input window, operand 15, single buffered']
    #allocation26 [shape = 'u8[8192]{0}', space=vmem, size = 0x2000, scoped, tag = 'input window, operand 16, single buffered']
    #allocation27 [shape = 's32[1]{0}', space=sflag, size = 0x4, scoped, tag = 'scoped memory for tpu_custom_call.1']
    #allocation28 [shape = 'u8[512]{0}', space=vmem, size = 0x400, scoped, tag = 'input window, operand 17, single buffered']
    #allocation29 [shape = 'u8[512]{0}', space=vmem, size = 0x400, scoped, tag = 'input window, operand 18, single buffered']
    #allocation30 [shape = 's32[1]{0}', space=sflag, size = 0x4, scoped, tag = 'scoped memory for tpu_custom_call.1']
    #allocation31 [shape = 'u8[8192]{0}', space=vmem, size = 0x2000, scoped, tag = 'input window, operand 20, single buffered']
    #allocation32 [shape = 'u8[8192]{0}', space=vmem, size = 0x2000, scoped, tag = 'input window, operand 21, single buffered']
    #allocation33 [shape = 's32[1]{0}', space=sflag, size = 0x4, scoped, tag = 'scoped memory for tpu_custom_call.1']
    #allocation34 [shape = 'u8[40960]{0}', space=vmem, size = 0xa000, scoped, tag = 'output window, operand 0, single buffered']
    #allocation35 [shape = 'u8[20480]{0}', space=vmem, size = 0x5000, scoped, tag = 'output window, operand 1, single buffered']
    #allocation36 [shape = 's32[1]{0}', space=sflag, size = 0x4, scoped, tag = 'scoped memory for tpu_custom_call.1']
    %31 = vsyncpa [#allocation3], 0
    %32 = vsyncpa [#allocation6], 0
    %33 = vsyncpa [#allocation9], 0
    %34 = vsyncpa [#allocation12], 0
    %35 = vsyncpa [#allocation15], 0
    %36 = vsyncpa [#allocation18], 0
    %37 = vsyncpa [#allocation21], 0
    %38 = vsyncpa [#allocation24], 0
    %39 = vsyncpa [#allocation27], 0
    %40 = vsyncpa [#allocation30], 0
    %41 = vsyncpa [#allocation33], 0
    %42 = vsyncpa [#allocation4], 0
    %43 = vsyncpa [#allocation36], 0
    // Predicated region
    $region2: #{tpu_custom_call.1} parent=1 // pred_check
      _
    $region3: #{tpu_custom_call.1} parent=1 // pred_check_branch
      %45 = sbr.rel (0) target = $region5
    $region4: #{tpu_custom_call.1} parent=1 // pred_region
      %s47 = ssub.s32 128, 128
      %48 = vsyncadd [#allocation3], %s47
      %s50 = sshll.u32 [#allocation2], 4
      %s51 = int_to_ptr.vmem [resolvable:$true] %s50
      %53 = dma.hbm_to_vmem [thread:$0]  %s0, 128, %s51, [#allocation3]
    $region5: #{tpu_custom_call.1} parent=1 // pred_fallthru
      _
    // Predicated region
    $region6: #{tpu_custom_call.1} parent=1 // pred_check
      _
    $region7: #{tpu_custom_call.1} parent=1 // pred_check_branch
      %55 = sbr.rel (0) target = $region9
    $region8: #{tpu_custom_call.1} parent=1 // pred_region
      %s57 = ssub.s32 256, 256
      %58 = vsyncadd [#allocation6], %s57
      %s59 = sshll.u32 [#allocation5], 4
      %s60 = int_to_ptr.vmem [resolvable:$true] %s59
      %65 = dma.hbm_to_vmem [thread:$0]  %s1, 256, %s60, [#allocation6], 128, 128, 8
    $region9: #{tpu_custom_call.1} parent=1 // pred_fallthru
      _
    // Predicated region
    $region10: #{tpu_custom_call.1} parent=1 // pred_check
      _
    $region11: #{tpu_custom_call.1} parent=1 // pred_check_branch
      %67 = sbr.rel (0) target = $region13
    $region12: #{tpu_custom_call.1} parent=1 // pred_region
      %s69 = ssub.s32 128, 128
      %70 = vsyncadd [#allocation6], %s69
      %s72 = sshll.u32 [#allocation7], 4
      %s73 = int_to_ptr.vmem [resolvable:$true] %s72
      %75 = dma.hbm_to_vmem [thread:$0]  %s2, 128, %s73, [#allocation6]
    $region13: #{tpu_custom_call.1} parent=1 // pred_fallthru
      _
    // Predicated region
    $region14: #{tpu_custom_call.1} parent=1 // pred_check
      _
    $region15: #{tpu_custom_call.1} parent=1 // pred_check_branch
      %77 = sbr.rel (0) target = $region17
    $region16: #{tpu_custom_call.1} parent=1 // pred_region
      %s79 = ssub.s32 256, 256
      %80 = vsyncadd [#allocation9], %s79
      %s81 = sshll.u32 [#allocation8], 4
      %s82 = int_to_ptr.vmem [resolvable:$true] %s81
      %87 = dma.hbm_to_vmem [thread:$0]  %s3, 256, %s82, [#allocation9], 64, 64, 4
    $region17: #{tpu_custom_call.1} parent=1 // pred_fallthru
      _
    // Predicated region
    $region18: #{tpu_custom_call.1} parent=1 // pred_check
      _
    $region19: #{tpu_custom_call.1} parent=1 // pred_check_branch
      %89 = sbr.rel (0) target = $region21
    $region20: #{tpu_custom_call.1} parent=1 // pred_region
      %s91 = ssub.s32 16, 16
      %92 = vsyncadd [#allocation9], %s91
      %s94 = sshll.u32 [#allocation10], 4
      %s95 = int_to_ptr.vmem [resolvable:$true] %s94
      %97 = dma.hbm_to_vmem [thread:$0]  %s4, 16, %s95, [#allocation9]
    $region21: #{tpu_custom_call.1} parent=1 // pred_fallthru
      _
    // Predicated region
    $region22: #{tpu_custom_call.1} parent=1 // pred_check
      _
    $region23: #{tpu_custom_call.1} parent=1 // pred_check_branch
      %99 = sbr.rel (0) target = $region25
    $region24: #{tpu_custom_call.1} parent=1 // pred_region
      %s101 = ssub.s32 256, 256
      %102 = vsyncadd [#allocation12], %s101
      %s103 = sshll.u32 [#allocation11], 4
      %s104 = int_to_ptr.vmem [resolvable:$true] %s103
      %109 = dma.hbm_to_vmem [thread:$0]  %s5, 256, %s104, [#allocation12], 64, 64, 4
    $region25: #{tpu_custom_call.1} parent=1 // pred_fallthru
      _
    // Predicated region
    $region26: #{tpu_custom_call.1} parent=1 // pred_check
      _
    $region27: #{tpu_custom_call.1} parent=1 // pred_check_branch
      %111 = sbr.rel (0) target = $region29
    $region28: #{tpu_custom_call.1} parent=1 // pred_region
      %s113 = ssub.s32 16, 16
      %114 = vsyncadd [#allocation12], %s113
      %s116 = sshll.u32 [#allocation13], 4
      %s117 = int_to_ptr.vmem [resolvable:$true] %s116
      %119 = dma.hbm_to_vmem [thread:$0]  %s6, 16, %s117, [#allocation12]
    $region29: #{tpu_custom_call.1} parent=1 // pred_fallthru
      _
    // Predicated region
    $region30: #{tpu_custom_call.1} parent=1 // pred_check
      _
    $region31: #{tpu_custom_call.1} parent=1 // pred_check_branch
      %121 = sbr.rel (0) target = $region33
    $region32: #{tpu_custom_call.1} parent=1 // pred_region
      %s123 = ssub.s32 256, 256
      %124 = vsyncadd [#allocation15], %s123
      %s125 = sshll.u32 [#allocation14], 4
      %s126 = int_to_ptr.vmem [resolvable:$true] %s125
      %131 = dma.hbm_to_vmem [thread:$0]  %s7, 256, %s126, [#allocation15], 64, 64, 4
    $region33: #{tpu_custom_call.1} parent=1 // pred_fallthru
      _
    // Predicated region
    $region34: #{tpu_custom_call.1} parent=1 // pred_check
      _
    $region35: #{tpu_custom_call.1} parent=1 // pred_check_branch
      %133 = sbr.rel (0) target = $region37
    $region36: #{tpu_custom_call.1} parent=1 // pred_region
      %s135 = ssub.s32 16, 16
      %136 = vsyncadd [#allocation15], %s135
      %s138 = sshll.u32 [#allocation16], 4
      %s139 = int_to_ptr.vmem [resolvable:$true] %s138
      %141 = dma.hbm_to_vmem [thread:$0]  %s8, 16, %s139, [#allocation15]
    $region37: #{tpu_custom_call.1} parent=1 // pred_fallthru
      _
    // Predicated region
    $region38: #{tpu_custom_call.1} parent=1 // pred_check
      _
    $region39: #{tpu_custom_call.1} parent=1 // pred_check_branch
      %143 = sbr.rel (0) target = $region41
    $region40: #{tpu_custom_call.1} parent=1 // pred_region
      _
    $region41: #{tpu_custom_call.1} parent=1 // pred_fallthru
      _
    // Predicated region
    $region42: #{tpu_custom_call.1} parent=1 // pred_check
      _
    $region43: #{tpu_custom_call.1} parent=1 // pred_check_branch
      %145 = sbr.rel (0) target = $region45
    $region44: #{tpu_custom_call.1} parent=1 // pred_region
      %s147 = ssub.s32 16, 16
      %148 = vsyncadd [#allocation18], %s147
      %s150 = sshll.u32 [#allocation17], 4
      %s151 = int_to_ptr.vmem [resolvable:$true] %s150
      %153 = dma.hbm_to_vmem [thread:$0]  %s10, 16, %s151, [#allocation18]
    $region45: #{tpu_custom_call.1} parent=1 // pred_fallthru
      _
    // Predicated region
    $region46: #{tpu_custom_call.1} parent=1 // pred_check
      _
    $region47: #{tpu_custom_call.1} parent=1 // pred_check_branch
      %155 = sbr.rel (0) target = $region49
    $region48: #{tpu_custom_call.1} parent=1 // pred_region
      %s157 = ssub.s32 256, 256
      %158 = vsyncadd [#allocation18], %s157
      %s159 = sshll.u32 [#allocation19], 4
      %s160 = int_to_ptr.vmem [resolvable:$true] %s159
      %165 = dma.hbm_to_vmem [thread:$0]  %s11, 256, %s160, [#allocation18], 64, 64, 4
    $region49: #{tpu_custom_call.1} parent=1 // pred_fallthru
      _
    // Predicated region
    $region50: #{tpu_custom_call.1} parent=1 // pred_check
      _
    $region51: #{tpu_custom_call.1} parent=1 // pred_check_branch
      %167 = sbr.rel (0) target = $region53
    $region52: #{tpu_custom_call.1} parent=1 // pred_region
      %s169 = ssub.s32 16, 16
      %170 = vsyncadd [#allocation21], %s169
      %s172 = sshll.u32 [#allocation20], 4
      %s173 = int_to_ptr.vmem [resolvable:$true] %s172
      %175 = dma.hbm_to_vmem [thread:$0]  %s12, 16, %s173, [#allocation21]
    $region53: #{tpu_custom_call.1} parent=1 // pred_fallthru
      _
    // Predicated region
    $region54: #{tpu_custom_call.1} parent=1 // pred_check
      _
    $region55: #{tpu_custom_call.1} parent=1 // pred_check_branch
      %177 = sbr.rel (0) target = $region57
    $region56: #{tpu_custom_call.1} parent=1 // pred_region
      %s179 = ssub.s32 256, 256
      %180 = vsyncadd [#allocation21], %s179
      %s181 = sshll.u32 [#allocation22], 4
      %s182 = int_to_ptr.vmem [resolvable:$true] %s181
      %187 = dma.hbm_to_vmem [thread:$0]  %s13, 256, %s182, [#allocation21], 64, 64, 4
    $region57: #{tpu_custom_call.1} parent=1 // pred_fallthru
      _
    // Predicated region
    $region58: #{tpu_custom_call.1} parent=1 // pred_check
      _
    $region59: #{tpu_custom_call.1} parent=1 // pred_check_branch
      %189 = sbr.rel (0) target = $region61
    $region60: #{tpu_custom_call.1} parent=1 // pred_region
      %s191 = ssub.s32 16, 16
      %192 = vsyncadd [#allocation24], %s191
      %s194 = sshll.u32 [#allocation23], 4
      %s195 = int_to_ptr.vmem [resolvable:$true] %s194
      %197 = dma.hbm_to_vmem [thread:$0]  %s14, 16, %s195, [#allocation24]
    $region61: #{tpu_custom_call.1} parent=1 // pred_fallthru
      _
    // Predicated region
    $region62: #{tpu_custom_call.1} parent=1 // pred_check
      _
    $region63: #{tpu_custom_call.1} parent=1 // pred_check_branch
      %199 = sbr.rel (0) target = $region65
    $region64: #{tpu_custom_call.1} parent=1 // pred_region
      %s201 = ssub.s32 256, 256
      %202 = vsyncadd [#allocation24], %s201
      %s203 = sshll.u32 [#allocation25], 4
      %s204 = int_to_ptr.vmem [resolvable:$true] %s203
      %209 = dma.hbm_to_vmem [thread:$0]  %s15, 256, %s204, [#allocation24], 64, 64, 4
    $region65: #{tpu_custom_call.1} parent=1 // pred_fallthru
      _
    // Predicated region
    $region66: #{tpu_custom_call.1} parent=1 // pred_check
      _
    $region67: #{tpu_custom_call.1} parent=1 // pred_check_branch
      %211 = sbr.rel (0) target = $region69
    $region68: #{tpu_custom_call.1} parent=1 // pred_region
      %s213 = ssub.s32 256, 256
      %214 = vsyncadd [#allocation27], %s213
      %s215 = sshll.u32 [#allocation26], 4
      %s216 = int_to_ptr.vmem [resolvable:$true] %s215
      %221 = dma.hbm_to_vmem [thread:$0]  %s16, 256, %s216, [#allocation27], 64, 64, 4
    $region69: #{tpu_custom_call.1} parent=1 // pred_fallthru
      _
    // Predicated region
    $region70: #{tpu_custom_call.1} parent=1 // pred_check
      _
    $region71: #{tpu_custom_call.1} parent=1 // pred_check_branch
      %223 = sbr.rel (0) target = $region73
    $region72: #{tpu_custom_call.1} parent=1 // pred_region
      %s225 = ssub.s32 16, 16
      %226 = vsyncadd [#allocation27], %s225
      %s228 = sshll.u32 [#allocation28], 4
      %s229 = int_to_ptr.vmem [resolvable:$true] %s228
      %231 = dma.hbm_to_vmem [thread:$0]  %s17, 16, %s229, [#allocation27]
    $region73: #{tpu_custom_call.1} parent=1 // pred_fallthru
      _
    // Predicated region
    $region74: #{tpu_custom_call.1} parent=1 // pred_check
      _
    $region75: #{tpu_custom_call.1} parent=1 // pred_check_branch
      %233 = sbr.rel (0) target = $region77
    $region76: #{tpu_custom_call.1} parent=1 // pred_region
      %s235 = ssub.s32 16, 16
      %236 = vsyncadd [#allocation30], %s235
      %s238 = sshll.u32 [#allocation29], 4
      %s239 = int_to_ptr.vmem [resolvable:$true] %s238
      %241 = dma.hbm_to_vmem [thread:$0]  %s18, 16, %s239, [#allocation30]
    $region77: #{tpu_custom_call.1} parent=1 // pred_fallthru
      _
    // Predicated region
    $region78: #{tpu_custom_call.1} parent=1 // pred_check
      _
    $region79: #{tpu_custom_call.1} parent=1 // pred_check_branch
      %243 = sbr.rel (0) target = $region81
    $region80: #{tpu_custom_call.1} parent=1 // pred_region
      _
    $region81: #{tpu_custom_call.1} parent=1 // pred_fallthru
      _
    // Predicated region
    $region82: #{tpu_custom_call.1} parent=1 // pred_check
      _
    $region83: #{tpu_custom_call.1} parent=1 // pred_check_branch
      %245 = sbr.rel (0) target = $region85
    $region84: #{tpu_custom_call.1} parent=1 // pred_region
      %s247 = ssub.s32 256, 256
      %248 = vsyncadd [#allocation30], %s247
      %s249 = sshll.u32 [#allocation31], 4
      %s250 = int_to_ptr.vmem [resolvable:$true] %s249
      %255 = dma.hbm_to_vmem [thread:$0]  %s20, 256, %s250, [#allocation30], 64, 64, 4
    $region85: #{tpu_custom_call.1} parent=1 // pred_fallthru
      _
    // Predicated region
    $region86: #{tpu_custom_call.1} parent=1 // pred_check
      _
    $region87: #{tpu_custom_call.1} parent=1 // pred_check_branch
      %257 = sbr.rel (0) target = $region89
    $region88: #{tpu_custom_call.1} parent=1 // pred_region
      %s259 = ssub.s32 256, 256
      %260 = vsyncadd [#allocation33], %s259
      %s261 = sshll.u32 [#allocation32], 4
      %s262 = int_to_ptr.vmem [resolvable:$true] %s261
      %267 = dma.hbm_to_vmem [thread:$0]  %s21, 256, %s262, [#allocation33], 64, 64, 4
    $region89: #{tpu_custom_call.1} parent=1 // pred_fallthru
      _
    // Predicated region
    $region90: #{tpu_custom_call.1} parent=1 // pred_check
      _
    $region91: #{tpu_custom_call.1} parent=1 // pred_check_branch
      %269 = sbr.rel (0) target = $region93
    $region92: #{tpu_custom_call.1} parent=1 // pred_region
      _
    $region93: #{tpu_custom_call.1} parent=1 // pred_fallthru
      _
    // Predicated region
    $region94: #{tpu_custom_call.1} parent=1 // pred_check
      _
    $region95: #{tpu_custom_call.1} parent=1 // pred_check_branch
      %271 = sbr.rel (0) target = $region97
    $region96: #{tpu_custom_call.1} parent=1 // pred_region
      _
    $region97: #{tpu_custom_call.1} parent=1 // pred_fallthru
      _
    // Predicated region
    $region98: #{tpu_custom_call.1} parent=1 // pred_check
      _
    $region99: #{tpu_custom_call.1} parent=1 // pred_check_branch
      %273 = sbr.rel (0) target = $region101
    $region100: #{tpu_custom_call.1} parent=1 // pred_region
      %274 = dma.done [#allocation3], 128
    $region101: #{tpu_custom_call.1} parent=1 // pred_fallthru
      _
    // Predicated region
    $region102: #{tpu_custom_call.1} parent=1 // pred_check
      _
    $region103: #{tpu_custom_call.1} parent=1 // pred_check_branch
      %276 = sbr.rel (0) target = $region105
    $region104: #{tpu_custom_call.1} parent=1 // pred_region
      %277 = dma.done [#allocation6], 256
    $region105: #{tpu_custom_call.1} parent=1 // pred_fallthru
      _
    // Predicated region
    $region106: #{tpu_custom_call.1} parent=1 // pred_check
      _
    $region107: #{tpu_custom_call.1} parent=1 // pred_check_branch
      %279 = sbr.rel (0) target = $region109
    $region108: #{tpu_custom_call.1} parent=1 // pred_region
      %280 = dma.done [#allocation6], 128
    $region109: #{tpu_custom_call.1} parent=1 // pred_fallthru
      _
    // Predicated region
    $region110: #{tpu_custom_call.1} parent=1 // pred_check
      _
    $region111: #{tpu_custom_call.1} parent=1 // pred_check_branch
      %282 = sbr.rel (0) target = $region113
    $region112: #{tpu_custom_call.1} parent=1 // pred_region
      %283 = dma.done [#allocation9], 256
    $region113: #{tpu_custom_call.1} parent=1 // pred_fallthru
      _
    // Predicated region
    $region114: #{tpu_custom_call.1} parent=1 // pred_check
      _
    $region115: #{tpu_custom_call.1} parent=1 // pred_check_branch
      %285 = sbr.rel (0) target = $region117
    $region116: #{tpu_custom_call.1} parent=1 // pred_region
      %286 = dma.done [#allocation9], 16
    $region117: #{tpu_custom_call.1} parent=1 // pred_fallthru
      _
    // Predicated region
    $region118: #{tpu_custom_call.1} parent=1 // pred_check
      _
    $region119: #{tpu_custom_call.1} parent=1 // pred_check_branch
      %288 = sbr.rel (0) target = $region121
    $region120: #{tpu_custom_call.1} parent=1 // pred_region
      %289 = dma.done [#allocation12], 256
    $region121: #{tpu_custom_call.1} parent=1 // pred_fallthru
      _
    // Predicated region
    $region122: #{tpu_custom_call.1} parent=1 // pred_check
      _
    $region123: #{tpu_custom_call.1} parent=1 // pred_check_branch
      %291 = sbr.rel (0) target = $region125
    $region124: #{tpu_custom_call.1} parent=1 // pred_region
      %292 = dma.done [#allocation12], 16
    $region125: #{tpu_custom_call.1} parent=1 // pred_fallthru
      _
    // Predicated region
    $region126: #{tpu_custom_call.1} parent=1 // pred_check
      _
    $region127: #{tpu_custom_call.1} parent=1 // pred_check_branch
      %294 = sbr.rel (0) target = $region129
    $region128: #{tpu_custom_call.1} parent=1 // pred_region
      %295 = dma.done [#allocation15], 256
    $region129: #{tpu_custom_call.1} parent=1 // pred_fallthru
      _
    // Predicated region
    $region130: #{tpu_custom_call.1} parent=1 // pred_check
      _
    $region131: #{tpu_custom_call.1} parent=1 // pred_check_branch
      %297 = sbr.rel (0) target = $region133
    $region132: #{tpu_custom_call.1} parent=1 // pred_region
      %298 = dma.done [#allocation15], 16
    $region133: #{tpu_custom_call.1} parent=1 // pred_fallthru
      _
    // Predicated region
    $region134: #{tpu_custom_call.1} parent=1 // pred_check
      _
    $region135: #{tpu_custom_call.1} parent=1 // pred_check_branch
      %300 = sbr.rel (0) target = $region137
    $region136: #{tpu_custom_call.1} parent=1 // pred_region
      %301 = dma.done [#allocation18], 16
    $region137: #{tpu_custom_call.1} parent=1 // pred_fallthru
      _
    // Predicated region
    $region138: #{tpu_custom_call.1} parent=1 // pred_check
      _
    $region139: #{tpu_custom_call.1} parent=1 // pred_check_branch
      %303 = sbr.rel (0) target = $region141
    $region140: #{tpu_custom_call.1} parent=1 // pred_region
      %304 = dma.done [#allocation18], 256
    $region141: #{tpu_custom_call.1} parent=1 // pred_fallthru
      _
    // Predicated region
    $region142: #{tpu_custom_call.1} parent=1 // pred_check
      _
    $region143: #{tpu_custom_call.1} parent=1 // pred_check_branch
      %306 = sbr.rel (0) target = $region145
    $region144: #{tpu_custom_call.1} parent=1 // pred_region
      %307 = dma.done [#allocation21], 16
    $region145: #{tpu_custom_call.1} parent=1 // pred_fallthru
      _
    // Predicated region
    $region146: #{tpu_custom_call.1} parent=1 // pred_check
      _
    $region147: #{tpu_custom_call.1} parent=1 // pred_check_branch
      %309 = sbr.rel (0) target = $region149
    $region148: #{tpu_custom_call.1} parent=1 // pred_region
      %310 = dma.done [#allocation21], 256
    $region149: #{tpu_custom_call.1} parent=1 // pred_fallthru
      _
    // Predicated region
    $region150: #{tpu_custom_call.1} parent=1 // pred_check
      _
    $region151: #{tpu_custom_call.1} parent=1 // pred_check_branch
      %312 = sbr.rel (0) target = $region153
    $region152: #{tpu_custom_call.1} parent=1 // pred_region
      %313 = dma.done [#allocation24], 16
    $region153: #{tpu_custom_call.1} parent=1 // pred_fallthru
      _
    // Predicated region
    $region154: #{tpu_custom_call.1} parent=1 // pred_check
      _
    $region155: #{tpu_custom_call.1} parent=1 // pred_check_branch
      %315 = sbr.rel (0) target = $region157
    $region156: #{tpu_custom_call.1} parent=1 // pred_region
      %316 = dma.done [#allocation24], 256
    $region157: #{tpu_custom_call.1} parent=1 // pred_fallthru
      _
    // Predicated region
    $region158: #{tpu_custom_call.1} parent=1 // pred_check
      _
    $region159: #{tpu_custom_call.1} parent=1 // pred_check_branch
      %318 = sbr.rel (0) target = $region161
    $region160: #{tpu_custom_call.1} parent=1 // pred_region
      %319 = dma.done [#allocation27], 256
    $region161: #{tpu_custom_call.1} parent=1 // pred_fallthru
      _
    // Predicated region
    $region162: #{tpu_custom_call.1} parent=1 // pred_check
      _
    $region163: #{tpu_custom_call.1} parent=1 // pred_check_branch
      %321 = sbr.rel (0) target = $region165
    $region164: #{tpu_custom_call.1} parent=1 // pred_region
      %322 = dma.done [#allocation27], 16
    $region165: #{tpu_custom_call.1} parent=1 // pred_fallthru
      _
    // Predicated region
    $region166: #{tpu_custom_call.1} parent=1 // pred_check
      _
    $region167: #{tpu_custom_call.1} parent=1 // pred_check_branch
      %324 = sbr.rel (0) target = $region169
    $region168: #{tpu_custom_call.1} parent=1 // pred_region
      %325 = dma.done [#allocation30], 16
    $region169: #{tpu_custom_call.1} parent=1 // pred_fallthru
      _
    // Predicated region
    $region170: #{tpu_custom_call.1} parent=1 // pred_check
      _
    $region171: #{tpu_custom_call.1} parent=1 // pred_check_branch
      %327 = sbr.rel (0) target = $region173
    $region172: #{tpu_custom_call.1} parent=1 // pred_region
      %328 = dma.done [#allocation30], 256
    $region173: #{tpu_custom_call.1} parent=1 // pred_fallthru
      _
    // Predicated region
    $region174: #{tpu_custom_call.1} parent=1 // pred_check
      _
    $region175: #{tpu_custom_call.1} parent=1 // pred_check_branch
      %330 = sbr.rel (0) target = $region177
    $region176: #{tpu_custom_call.1} parent=1 // pred_region
      %331 = dma.done [#allocation33], 256
    $region177: #{tpu_custom_call.1} parent=1 // pred_fallthru
      _
    %v333 = vld [vmem:[#allocation2] sm:$0xff]
    %v334 = vpack.c.bf16 %v333, %v333
    %335 = vxpose.xlu0.b32.start [1/16] %v333, 128
    %336 = vxpose.xlu0.b32.cont [2/16] 0.0, 128
    %337 = vxpose.xlu0.b32.cont [3/16] 0.0, 128
    %338 = vxpose.xlu0.b32.cont [4/16] 0.0, 128
    %339 = vxpose.xlu0.b32.cont [5/16] 0.0, 128
    %340 = vxpose.xlu0.b32.cont [6/16] 0.0, 128
    %341 = vxpose.xlu0.b32.cont [7/16] 0.0, 128
    %342 = vxpose.xlu0.b32.cont [8/16] 0.0, 128
    %343 = vxpose.xlu0.b32.cont [9/16] 0.0, 128
    %344 = vxpose.xlu0.b32.cont [10/16] 0.0, 128
    %345 = vxpose.xlu0.b32.cont [11/16] 0.0, 128
    %346 = vxpose.xlu0.b32.cont [12/16] 0.0, 128
    %347 = vxpose.xlu0.b32.cont [13/16] 0.0, 128
    %348 = vxpose.xlu0.b32.cont [14/16] 0.0, 128
    %349 = vxpose.xlu0.b32.cont [15/16] 0.0, 128
    %350 = vxpose.xlu0.b32.end [16/16] 0.0, 128
    %v351 = vpop.trf.xlu0
    %v352 = vpop.trf.xlu0
    %v353 = vpop.trf.xlu0
    %v354 = vpop.trf.xlu0
    %v355 = vpop.trf.xlu0
    %v356 = vpop.trf.xlu0
    %v357 = vpop.trf.xlu0
    %v358 = vpop.trf.xlu0
    %v359 = vpop.trf.xlu0
    %v360 = vpop.trf.xlu0
    %v361 = vpop.trf.xlu0
    %v362 = vpop.trf.xlu0
    %v363 = vpop.trf.xlu0
    %v364 = vpop.trf.xlu0
    %v365 = vpop.trf.xlu0
    %v366 = vpop.trf.xlu0
    %v367 = vpack.c.bf16 %v352, %v351
    %v368 = vld [vmem:[#allocation5] sm:$0xff]
    %v369 = vld [vmem:[#allocation5 + $0x8] sm:$0xff]
    %v370 = vld [vmem:[#allocation7] sm:$0xff]
    %vm371 = vcmask 261120
    %372 = vst.msk [vmem:[#allocation34] sm:$0xff] %vm371, %v368
    %373 = vst.msk [vmem:[#allocation34 + $0x8] sm:$0xff] %vm371, %v369
    %374 = vst.msk [vmem:[#allocation35] sm:$0xff] %vm371, %v370
    %v375 = vlaneseq
    %v376 = vshrl.u32 %v375, 7
    %v377 = vadd.s32 %v376, 8
    %vm378 = vcmp.lt.s32.totalorder %v376, 0
    %v379 = vsub.s32 0, %v376
    %v380 = vsel %vm378, %v379, %v376
    %v381 = vshrl.u32 %v380, 1
    %v382 = vand.u32 %v380, 1
    %v383 = vsub.s32 0, %v382
    %v384 = vsel %vm378, %v383, %v382
    %vm385 = vcmp.lt.s32.totalorder %v377, 0
    %v386 = vsub.s32 0, %v377
    %v387 = vsel %vm385, %v386, %v377
    %v388 = vshrl.u32 %v387, 1
    %v389 = vand.u32 %v387, 1
    %v390 = vsub.s32 0, %v389
    %v391 = vsel %vm385, %v390, %v389
    %vm392 = vcmp.ne.s32.totalorder %v384, 0
    %vm393 = vcmp.ne.s32.totalorder %v391, 0
    %vm394 = vcmp.lt.s32.totalorder %v384, 0
    %vm395 = vcmp.lt.s32.totalorder %v391, 0
    %vm396 = vmand %vm394, %vm392
    %vm397 = vmand %vm395, %vm393
    %v398 = vadd.s32 %v384, 2
    %v399 = vadd.s32 %v391, 2
    %v400 = vsel %vm396, %v398, %v384
    %v401 = vsel %vm397, %v399, %v391
    %v402 = vpack.c.bf16 %v369, %v368
    %v403 = vld [vmem:[#allocation8] sm:$0xf]
    %v404 = vld [vmem:[#allocation8 + $0x4] sm:$0xf]
    %v405 = vld [vmem:[#allocation8 + $0x8] sm:$0xf]
    %v406 = vld [vmem:[#allocation8 + $0xc] sm:$0xf]
    %v407 = vld [vmem:[#allocation10] sm:$0x1]
    %v409 = vlaneseq
    %v410 = vshrl.u32 %v409, 7
    %v411 = vsub.s32 0, %v410
    %v412 = vrot.slane %v407, %v411
    %v418 = vunpack.c.l.b16 %v403
    %v419 = vunpack.c.l.b16 %v404
    %v420 = vunpack.c.l.b16 %v405
    %v421 = vunpack.c.l.b16 %v406
    %v422 = vpack.c.b16 %v419, %v418
    %v423 = vpack.c.b16 %v421, %v420
    %v427 = vsel %vm371, %v402, 0
    %429 = vmatprep.subr.bf16.mxu0 0
    %430 = vmatpush1.bf16.msra.mxu0 0
    %431 = vmatprep.subr.bf16.mxu0 0
    %432 = vmatpush1.bf16.msra.mxu0 0
    %433 = vmatprep.subr.bf16.mxu0 0
    %434 = vmatpush1.bf16.msra.mxu0 0
    %435 = vmatprep.subr.bf16.mxu0 0
    %436 = vmatpush1.bf16.msra.mxu0 0
    %437 = vmatprep.subr.bf16.mxu0 0
    %438 = vmatpush1.bf16.msra.mxu0 0
    %439 = vmatprep.subr.bf16.mxu0 0
    %440 = vmatpush1.bf16.msra.mxu0 0
    %441 = vmatprep.subr.bf16.mxu0 0
    %442 = vmatpush1.bf16.msra.mxu0 %v423
    %443 = vmatprep.subr.bf16.mxu0 0
    %444 = vmatpush1.bf16.msra.mxu0 %v422
    %445 = vmatprep.subr.bf16.mxu0 0
    %446 = vmatpush2.bf16.msra.mxu0 0
    %447 = vmatprep.subr.bf16.mxu0 0
    %448 = vmatpush2.bf16.msra.mxu0 0
    %449 = vmatprep.subr.bf16.mxu0 0
    %450 = vmatpush2.bf16.msra.mxu0 0
    %451 = vmatprep.subr.bf16.mxu0 0
    %452 = vmatpush2.bf16.msra.mxu0 0
    %453 = vmatprep.subr.bf16.mxu0 0
    %454 = vmatpush2.bf16.msra.mxu0 0
    %455 = vmatprep.subr.bf16.mxu0 0
    %456 = vmatpush2.bf16.msra.mxu0 0
    %457 = vmatprep.subr.bf16.mxu0 0
    %458 = vmatpush2.bf16.msra.mxu0 0
    %459 = vmatprep.subr.bf16.mxu0 0
    %460 = vmatpush2.bf16.msra.mxu0 0
    %461 = vmatprep.mubr.bf16.mxu0 0
    %462 = vmatmul.mubr.bf16.gmra.mxu0 %v427
    %v463 = vpop.f32.mrf.mxu0
    %v464 = vadd.f32 %v412, %v463
    %v465 = vpop.f32.mrf.mxu0
    %v466 = vpop.f32.mrf.mxu0
    %v467 = vadd.f32 %v412, %v466
    %v468 = vpop.f32.mrf.mxu0
    %469 = vdwg.mxu0
    %v470 = vmax.f32 %v464, 0.0
    %v471 = vmax.f32 %v467, 0.0
    %v472 = vpack.c.bf16 %v471, %v470
    %v473 = vld [vmem:[#allocation11] sm:$0xf]
    %v474 = vld [vmem:[#allocation11 + $0x4] sm:$0xf]
    %v475 = vld [vmem:[#allocation11 + $0x8] sm:$0xf]
    %v476 = vld [vmem:[#allocation11 + $0xc] sm:$0xf]
    %v477 = vld [vmem:[#allocation13] sm:$0x1]
    %v479 = vlaneseq
    %v480 = vshrl.u32 %v479, 7
    %v481 = vsub.s32 0, %v480
    %v482 = vrot.slane %v477, %v481
    %v488 = vunpack.c.l.b16 %v473
    %v489 = vunpack.c.l.b16 %v474
    %v490 = vunpack.c.l.b16 %v475
    %v491 = vunpack.c.l.b16 %v476
    %v492 = vpack.c.b16 %v489, %v488
    %v493 = vpack.c.b16 %v491, %v490
    %v497 = vsel %vm371, %v472, 0
    %499 = vmatprep.subr.bf16.mxu0 0
    %500 = vmatpush1.bf16.msra.mxu0 0
    %501 = vmatprep.subr.bf16.mxu0 0
    %502 = vmatpush1.bf16.msra.mxu0 0
    %503 = vmatprep.subr.bf16.mxu0 0
    %504 = vmatpush1.bf16.msra.mxu0 0
    %505 = vmatprep.subr.bf16.mxu0 0
    %506 = vmatpush1.bf16.msra.mxu0 0
    %507 = vmatprep.subr.bf16.mxu0 0
    %508 = vmatpush1.bf16.msra.mxu0 0
    %509 = vmatprep.subr.bf16.mxu0 0
    %510 = vmatpush1.bf16.msra.mxu0 0
    %511 = vmatprep.subr.bf16.mxu0 0
    %512 = vmatpush1.bf16.msra.mxu0 %v493
    %513 = vmatprep.subr.bf16.mxu0 0
    %514 = vmatpush1.bf16.msra.mxu0 %v492
    %515 = vmatprep.subr.bf16.mxu0 0
    %516 = vmatpush2.bf16.msra.mxu0 0
    %517 = vmatprep.subr.bf16.mxu0 0
    %518 = vmatpush2.bf16.msra.mxu0 0
    %519 = vmatprep.subr.bf16.mxu0 0
    %520 = vmatpush2.bf16.msra.mxu0 0
    %521 = vmatprep.subr.bf16.mxu0 0
    %522 = vmatpush2.bf16.msra.mxu0 0
    %523 = vmatprep.subr.bf16.mxu0 0
    %524 = vmatpush2.bf16.msra.mxu0 0
    %525 = vmatprep.subr.bf16.mxu0 0
    %526 = vmatpush2.bf16.msra.mxu0 0
    %527 = vmatprep.subr.bf16.mxu0 0
    %528 = vmatpush2.bf16.msra.mxu0 0
    %529 = vmatprep.subr.bf16.mxu0 0
    %530 = vmatpush2.bf16.msra.mxu0 0
    %531 = vmatprep.mubr.bf16.mxu0 0
    %532 = vmatmul.mubr.bf16.gmra.mxu0 %v497
    %v533 = vpop.f32.mrf.mxu0
    %v534 = vadd.f32 %v482, %v533
    %v535 = vpop.f32.mrf.mxu0
    %v536 = vpop.f32.mrf.mxu0
    %v537 = vadd.f32 %v482, %v536
    %v538 = vpop.f32.mrf.mxu0
    %539 = vdwg.mxu0
    %v540 = vpack.c.bf16 %v370, %v370
    %v541 = vld [vmem:[#allocation14] sm:$0xf]
    %v542 = vld [vmem:[#allocation14 + $0x4] sm:$0xf]
    %v543 = vld [vmem:[#allocation14 + $0x8] sm:$0xf]
    %v544 = vld [vmem:[#allocation14 + $0xc] sm:$0xf]
    %v545 = vld [vmem:[#allocation16] sm:$0x1]
    %v547 = vlaneseq
    %v548 = vshrl.u32 %v547, 7
    %v549 = vsub.s32 0, %v548
    %v550 = vrot.slane %v545, %v549
    %v556 = vunpack.c.l.b16 %v541
    %v557 = vunpack.c.l.b16 %v542
    %v558 = vunpack.c.l.b16 %v543
    %v559 = vunpack.c.l.b16 %v544
    %v560 = vpack.c.b16 %v557, %v556
    %v561 = vpack.c.b16 %v559, %v558
    %v565 = vsel %vm371, %v540, 0
    %567 = vmatprep.subr.bf16.mxu0 0
    %568 = vmatpush1.bf16.msra.mxu0 0
    %569 = vmatprep.subr.bf16.mxu0 0
    %570 = vmatpush1.bf16.msra.mxu0 0
    %571 = vmatprep.subr.bf16.mxu0 0
    %572 = vmatpush1.bf16.msra.mxu0 0
    %573 = vmatprep.subr.bf16.mxu0 0
    %574 = vmatpush1.bf16.msra.mxu0 0
    %575 = vmatprep.subr.bf16.mxu0 0
    %576 = vmatpush1.bf16.msra.mxu0 0
    %577 = vmatprep.subr.bf16.mxu0 0
    %578 = vmatpush1.bf16.msra.mxu0 0
    %579 = vmatprep.subr.bf16.mxu0 0
    %580 = vmatpush1.bf16.msra.mxu0 %v561
    %581 = vmatprep.subr.bf16.mxu0 0
    %582 = vmatpush1.bf16.msra.mxu0 %v560
    %583 = vmatprep.subr.bf16.mxu0 0
    %584 = vmatpush2.bf16.msra.mxu0 0
    %585 = vmatprep.subr.bf16.mxu0 0
    %586 = vmatpush2.bf16.msra.mxu0 0
    %587 = vmatprep.subr.bf16.mxu0 0
    %588 = vmatpush2.bf16.msra.mxu0 0
    %589 = vmatprep.subr.bf16.mxu0 0
    %590 = vmatpush2.bf16.msra.mxu0 0
    %591 = vmatprep.subr.bf16.mxu0 0
    %592 = vmatpush2.bf16.msra.mxu0 0
    %593 = vmatprep.subr.bf16.mxu0 0
    %594 = vmatpush2.bf16.msra.mxu0 0
    %595 = vmatprep.subr.bf16.mxu0 0
    %596 = vmatpush2.bf16.msra.mxu0 0
    %597 = vmatprep.subr.bf16.mxu0 0
    %598 = vmatpush2.bf16.msra.mxu0 0
    %599 = vmatprep.mubr.bf16.mxu0 0
    %600 = vmatmul.mubr.bf16.gmra.mxu0 %v565
    %v601 = vpop.f32.mrf.mxu0
    %v602 = vadd.f32 %v550, %v601
    %v603 = vpop.f32.mrf.mxu0
    %v604 = vpop.f32.mrf.mxu0
    %v605 = vpop.f32.mrf.mxu0
    %606 = vdwg.mxu0
    %v607 = vmax.f32 %v602, 0.0
    %v608 = vpack.c.bf16 %v607, %v607
    %v609 = vld [vmem:[%s9] sm:$0xf]
    %v610 = vld [vmem:[%s9 + $0x4] sm:$0xf]
    %v611 = vld [vmem:[%s9 + $0x8] sm:$0xf]
    %v612 = vld [vmem:[%s9 + $0xc] sm:$0xf]
    %v613 = vld [vmem:[#allocation17] sm:$0x1]
    %v615 = vlaneseq
    %v616 = vshrl.u32 %v615, 7
    %v617 = vsub.s32 0, %v616
    %v618 = vrot.slane %v613, %v617
    %v624 = vunpack.c.l.b16 %v609
    %v625 = vunpack.c.l.b16 %v610
    %v626 = vunpack.c.l.b16 %v611
    %v627 = vunpack.c.l.b16 %v612
    %v628 = vpack.c.b16 %v625, %v624
    %v629 = vpack.c.b16 %v627, %v626
    %v633 = vsel %vm371, %v608, 0
    %635 = vmatprep.subr.bf16.mxu0 0
    %636 = vmatpush1.bf16.msra.mxu0 0
    %637 = vmatprep.subr.bf16.mxu0 0
    %638 = vmatpush1.bf16.msra.mxu0 0
    %639 = vmatprep.subr.bf16.mxu0 0
    %640 = vmatpush1.bf16.msra.mxu0 0
    %641 = vmatprep.subr.bf16.mxu0 0
    %642 = vmatpush1.bf16.msra.mxu0 0
    %643 = vmatprep.subr.bf16.mxu0 0
    %644 = vmatpush1.bf16.msra.mxu0 0
    %645 = vmatprep.subr.bf16.mxu0 0
    %646 = vmatpush1.bf16.msra.mxu0 0
    %647 = vmatprep.subr.bf16.mxu0 0
    %648 = vmatpush1.bf16.msra.mxu0 %v629
    %649 = vmatprep.subr.bf16.mxu0 0
    %650 = vmatpush1.bf16.msra.mxu0 %v628
    %651 = vmatprep.subr.bf16.mxu0 0
    %652 = vmatpush2.bf16.msra.mxu0 0
    %653 = vmatprep.subr.bf16.mxu0 0
    %654 = vmatpush2.bf16.msra.mxu0 0
    %655 = vmatprep.subr.bf16.mxu0 0
    %656 = vmatpush2.bf16.msra.mxu0 0
    %657 = vmatprep.subr.bf16.mxu0 0
    %658 = vmatpush2.bf16.msra.mxu0 0
    %659 = vmatprep.subr.bf16.mxu0 0
    %660 = vmatpush2.bf16.msra.mxu0 0
    %661 = vmatprep.subr.bf16.mxu0 0
    %662 = vmatpush2.bf16.msra.mxu0 0
    %663 = vmatprep.subr.bf16.mxu0 0
    %664 = vmatpush2.bf16.msra.mxu0 0
    %665 = vmatprep.subr.bf16.mxu0 0
    %666 = vmatpush2.bf16.msra.mxu0 0
    %667 = vmatprep.mubr.bf16.mxu0 0
    %668 = vmatmul.mubr.bf16.gmra.mxu0 %v633
    %v669 = vpop.f32.mrf.mxu0
    %v670 = vadd.f32 %v618, %v669
    %v671 = vpop.f32.mrf.mxu0
    %v672 = vpop.f32.mrf.mxu0
    %v673 = vpop.f32.mrf.mxu0
    %674 = vdwg.mxu0
    %v675 = vrot.slane %v368, 1
    %v676 = vrot.slane %v369, 1
    %vm677 = vcmp.lt.s32.totalorder %v376, 7
    %v678 = vsel %vm677, %v675, %v676
    %v679 = vsel %vm677, %v676, %v675
    %v680 = vrot.slane %v368, 7
    %v681 = vrot.slane %v369, 7
    %vm682 = vcmp.lt.s32.totalorder %v376, 1
    %v683 = vsel %vm682, %v680, %v681
    %v684 = vsel %vm682, %v681, %v680
    %vm685 = vcmp.eq.s32.totalorder %v400, 0
    %vm686 = vcmp.eq.s32.totalorder %v401, 0
    %v687 = vsel %vm685, %v678, %v684
    %v688 = vsel %vm686, %v679, %v683
    %v689 = vpack.c.bf16 %v688, %v687
    %v690 = vld [vmem:[#allocation19] sm:$0xf]
    %v691 = vld [vmem:[#allocation19 + $0x4] sm:$0xf]
    %v692 = vld [vmem:[#allocation19 + $0x8] sm:$0xf]
    %v693 = vld [vmem:[#allocation19 + $0xc] sm:$0xf]
    %v694 = vld [vmem:[#allocation20] sm:$0x1]
    %v696 = vlaneseq
    %v697 = vshrl.u32 %v696, 7
    %v698 = vsub.s32 0, %v697
    %v699 = vrot.slane %v694, %v698
    %v705 = vunpack.c.l.b16 %v690
    %v706 = vunpack.c.l.b16 %v691
    %v707 = vunpack.c.l.b16 %v692
    %v708 = vunpack.c.l.b16 %v693
    %v709 = vpack.c.b16 %v706, %v705
    %v710 = vpack.c.b16 %v708, %v707
    %v714 = vsel %vm371, %v689, 0
    %716 = vmatprep.subr.bf16.mxu0 0
    %717 = vmatpush1.bf16.msra.mxu0 0
    %718 = vmatprep.subr.bf16.mxu0 0
    %719 = vmatpush1.bf16.msra.mxu0 0
    %720 = vmatprep.subr.bf16.mxu0 0
    %721 = vmatpush1.bf16.msra.mxu0 0
    %722 = vmatprep.subr.bf16.mxu0 0
    %723 = vmatpush1.bf16.msra.mxu0 0
    %724 = vmatprep.subr.bf16.mxu0 0
    %725 = vmatpush1.bf16.msra.mxu0 0
    %726 = vmatprep.subr.bf16.mxu0 0
    %727 = vmatpush1.bf16.msra.mxu0 0
    %728 = vmatprep.subr.bf16.mxu0 0
    %729 = vmatpush1.bf16.msra.mxu0 %v710
    %730 = vmatprep.subr.bf16.mxu0 0
    %731 = vmatpush1.bf16.msra.mxu0 %v709
    %732 = vmatprep.subr.bf16.mxu0 0
    %733 = vmatpush2.bf16.msra.mxu0 0
    %734 = vmatprep.subr.bf16.mxu0 0
    %735 = vmatpush2.bf16.msra.mxu0 0
    %736 = vmatprep.subr.bf16.mxu0 0
    %737 = vmatpush2.bf16.msra.mxu0 0
    %738 = vmatprep.subr.bf16.mxu0 0
    %739 = vmatpush2.bf16.msra.mxu0 0
    %740 = vmatprep.subr.bf16.mxu0 0
    %741 = vmatpush2.bf16.msra.mxu0 0
    %742 = vmatprep.subr.bf16.mxu0 0
    %743 = vmatpush2.bf16.msra.mxu0 0
    %744 = vmatprep.subr.bf16.mxu0 0
    %745 = vmatpush2.bf16.msra.mxu0 0
    %746 = vmatprep.subr.bf16.mxu0 0
    %747 = vmatpush2.bf16.msra.mxu0 0
    %748 = vmatprep.mubr.bf16.mxu0 0
    %749 = vmatmul.mubr.bf16.gmra.mxu0 %v714
    %v750 = vpop.f32.mrf.mxu0
    %v751 = vadd.f32 %v699, %v750
    %v752 = vpop.f32.mrf.mxu0
    %v753 = vpop.f32.mrf.mxu0
    %v754 = vadd.f32 %v699, %v753
    %v755 = vpop.f32.mrf.mxu0
    %756 = vdwg.mxu0
    %v757 = vmax.f32 %v751, 0.0
    %v758 = vmax.f32 %v754, 0.0
    %v759 = vpack.c.bf16 %v758, %v757
    %v760 = vld [vmem:[#allocation22] sm:$0xf]
    %v761 = vld [vmem:[#allocation22 + $0x4] sm:$0xf]
    %v762 = vld [vmem:[#allocation22 + $0x8] sm:$0xf]
    %v763 = vld [vmem:[#allocation22 + $0xc] sm:$0xf]
    %v764 = vld [vmem:[#allocation23] sm:$0x1]
    %v766 = vlaneseq
    %v767 = vshrl.u32 %v766, 7
    %v768 = vsub.s32 0, %v767
    %v769 = vrot.slane %v764, %v768
    %v775 = vunpack.c.l.b16 %v760
    %v776 = vunpack.c.l.b16 %v761
    %v777 = vunpack.c.l.b16 %v762
    %v778 = vunpack.c.l.b16 %v763
    %v779 = vpack.c.b16 %v776, %v775
    %v780 = vpack.c.b16 %v778, %v777
    %v784 = vsel %vm371, %v759, 0
    %786 = vmatprep.subr.bf16.mxu0 0
    %787 = vmatpush1.bf16.msra.mxu0 0
    %788 = vmatprep.subr.bf16.mxu0 0
    %789 = vmatpush1.bf16.msra.mxu0 0
    %790 = vmatprep.subr.bf16.mxu0 0
    %791 = vmatpush1.bf16.msra.mxu0 0
    %792 = vmatprep.subr.bf16.mxu0 0
    %793 = vmatpush1.bf16.msra.mxu0 0
    %794 = vmatprep.subr.bf16.mxu0 0
    %795 = vmatpush1.bf16.msra.mxu0 0
    %796 = vmatprep.subr.bf16.mxu0 0
    %797 = vmatpush1.bf16.msra.mxu0 0
    %798 = vmatprep.subr.bf16.mxu0 0
    %799 = vmatpush1.bf16.msra.mxu0 %v780
    %800 = vmatprep.subr.bf16.mxu0 0
    %801 = vmatpush1.bf16.msra.mxu0 %v779
    %802 = vmatprep.subr.bf16.mxu0 0
    %803 = vmatpush2.bf16.msra.mxu0 0
    %804 = vmatprep.subr.bf16.mxu0 0
    %805 = vmatpush2.bf16.msra.mxu0 0
    %806 = vmatprep.subr.bf16.mxu0 0
    %807 = vmatpush2.bf16.msra.mxu0 0
    %808 = vmatprep.subr.bf16.mxu0 0
    %809 = vmatpush2.bf16.msra.mxu0 0
    %810 = vmatprep.subr.bf16.mxu0 0
    %811 = vmatpush2.bf16.msra.mxu0 0
    %812 = vmatprep.subr.bf16.mxu0 0
    %813 = vmatpush2.bf16.msra.mxu0 0
    %814 = vmatprep.subr.bf16.mxu0 0
    %815 = vmatpush2.bf16.msra.mxu0 0
    %816 = vmatprep.subr.bf16.mxu0 0
    %817 = vmatpush2.bf16.msra.mxu0 0
    %818 = vmatprep.mubr.bf16.mxu0 0
    %819 = vmatmul.mubr.bf16.gmra.mxu0 %v784
    %v820 = vpop.f32.mrf.mxu0
    %v821 = vadd.f32 %v769, %v820
    %v822 = vpop.f32.mrf.mxu0
    %v823 = vpop.f32.mrf.mxu0
    %v824 = vadd.f32 %v769, %v823
    %v825 = vpop.f32.mrf.mxu0
    %826 = vdwg.mxu0
    %v827 = vpack.c.bf16 %v537, %v534
    %vm828 = vcmask 130048
    %v830 = vsel %vm828, %v334, 0
    %832 = vmatprep.subr.bf16.mxu0 0
    %833 = vmatpush1.bf16.msra.mxu0 0
    %834 = vmatprep.subr.bf16.mxu0 0
    %835 = vmatpush1.bf16.msra.mxu0 0
    %836 = vmatprep.subr.bf16.mxu0 0
    %837 = vmatpush1.bf16.msra.mxu0 0
    %838 = vmatprep.subr.bf16.mxu0 0
    %839 = vmatpush1.bf16.msra.mxu0 0
    %840 = vmatprep.subr.bf16.mxu0 0
    %841 = vmatpush1.bf16.msra.mxu0 0
    %842 = vmatprep.subr.bf16.mxu0 0
    %843 = vmatpush1.bf16.msra.mxu0 0
    %844 = vmatprep.subr.bf16.mxu0 0
    %845 = vmatpush1.bf16.msra.mxu0 0
    %846 = vmatprep.subr.bf16.mxu0 0
    %847 = vmatpush1.bf16.msra.mxu0 %v827
    %848 = vmatprep.subr.bf16.mxu0 0
    %849 = vmatpush2.bf16.msra.mxu0 0
    %850 = vmatprep.subr.bf16.mxu0 0
    %851 = vmatpush2.bf16.msra.mxu0 0
    %852 = vmatprep.subr.bf16.mxu0 0
    %853 = vmatpush2.bf16.msra.mxu0 0
    %854 = vmatprep.subr.bf16.mxu0 0
    %855 = vmatpush2.bf16.msra.mxu0 0
    %856 = vmatprep.subr.bf16.mxu0 0
    %857 = vmatpush2.bf16.msra.mxu0 0
    %858 = vmatprep.subr.bf16.mxu0 0
    %859 = vmatpush2.bf16.msra.mxu0 0
    %860 = vmatprep.subr.bf16.mxu0 0
    %861 = vmatpush2.bf16.msra.mxu0 0
    %862 = vmatprep.subr.bf16.mxu0 0
    %863 = vmatpush2.bf16.msra.mxu0 0
    %864 = vmatprep.mubr.bf16.mxu0 0
    %865 = vmatmul.mubr.bf16.gmra.mxu0 %v830
    %v866 = vpop.f32.mrf.mxu0
    %v867 = vadd.f32 0.0, %v866
    %v868 = vpop.f32.mrf.mxu0
    %v869 = vpop.f32.mrf.mxu0
    %v870 = vpop.f32.mrf.mxu0
    %871 = vdwg.mxu0
    %v872 = vpack.c.bf16 %v867, %v867
    %v873 = vld [vmem:[#allocation25] sm:$0xf]
    %v874 = vld [vmem:[#allocation25 + $0x4] sm:$0xf]
    %v875 = vld [vmem:[#allocation25 + $0x8] sm:$0xf]
    %v876 = vld [vmem:[#allocation25 + $0xc] sm:$0xf]
    %v877 = vld [vmem:[#allocation28] sm:$0x1]
    %v879 = vlaneseq
    %v880 = vshrl.u32 %v879, 7
    %v881 = vsub.s32 0, %v880
    %v882 = vrot.slane %v877, %v881
    %v888 = vunpack.c.l.b16 %v873
    %v889 = vunpack.c.l.b16 %v874
    %v890 = vunpack.c.l.b16 %v875
    %v891 = vunpack.c.l.b16 %v876
    %v892 = vpack.c.b16 %v889, %v888
    %v893 = vpack.c.b16 %v891, %v890
    %v897 = vsel %vm371, %v872, 0
    %899 = vmatprep.subr.bf16.mxu0 0
    %900 = vmatpush1.bf16.msra.mxu0 0
    %901 = vmatprep.subr.bf16.mxu0 0
    %902 = vmatpush1.bf16.msra.mxu0 0
    %903 = vmatprep.subr.bf16.mxu0 0
    %904 = vmatpush1.bf16.msra.mxu0 0
    %905 = vmatprep.subr.bf16.mxu0 0
    %906 = vmatpush1.bf16.msra.mxu0 0
    %907 = vmatprep.subr.bf16.mxu0 0
    %908 = vmatpush1.bf16.msra.mxu0 0
    %909 = vmatprep.subr.bf16.mxu0 0
    %910 = vmatpush1.bf16.msra.mxu0 0
    %911 = vmatprep.subr.bf16.mxu0 0
    %912 = vmatpush1.bf16.msra.mxu0 %v893
    %913 = vmatprep.subr.bf16.mxu0 0
    %914 = vmatpush1.bf16.msra.mxu0 %v892
    %915 = vmatprep.subr.bf16.mxu0 0
    %916 = vmatpush2.bf16.msra.mxu0 0
    %917 = vmatprep.subr.bf16.mxu0 0
    %918 = vmatpush2.bf16.msra.mxu0 0
    %919 = vmatprep.subr.bf16.mxu0 0
    %920 = vmatpush2.bf16.msra.mxu0 0
    %921 = vmatprep.subr.bf16.mxu0 0
    %922 = vmatpush2.bf16.msra.mxu0 0
    %923 = vmatprep.subr.bf16.mxu0 0
    %924 = vmatpush2.bf16.msra.mxu0 0
    %925 = vmatprep.subr.bf16.mxu0 0
    %926 = vmatpush2.bf16.msra.mxu0 0
    %927 = vmatprep.subr.bf16.mxu0 0
    %928 = vmatpush2.bf16.msra.mxu0 0
    %929 = vmatprep.subr.bf16.mxu0 0
    %930 = vmatpush2.bf16.msra.mxu0 0
    %931 = vmatprep.mubr.bf16.mxu0 0
    %932 = vmatmul.mubr.bf16.gmra.mxu0 %v897
    %v933 = vpop.f32.mrf.mxu0
    %v934 = vadd.f32 %v882, %v933
    %v935 = vpop.f32.mrf.mxu0
    %v936 = vpop.f32.mrf.mxu0
    %v937 = vpop.f32.mrf.mxu0
    %938 = vdwg.mxu0
    %v939 = vld [vmem:[#allocation26] sm:$0xf]
    %v940 = vld [vmem:[#allocation26 + $0x4] sm:$0xf]
    %v941 = vld [vmem:[#allocation26 + $0x8] sm:$0xf]
    %v942 = vld [vmem:[#allocation26 + $0xc] sm:$0xf]
    %v943 = vld [vmem:[#allocation29] sm:$0x1]
    %v945 = vlaneseq
    %v946 = vshrl.u32 %v945, 7
    %v947 = vsub.s32 0, %v946
    %v948 = vrot.slane %v943, %v947
    %v954 = vunpack.c.l.b16 %v939
    %v955 = vunpack.c.l.b16 %v940
    %v956 = vunpack.c.l.b16 %v941
    %v957 = vunpack.c.l.b16 %v942
    %v958 = vpack.c.b16 %v955, %v954
    %v959 = vpack.c.b16 %v957, %v956
    %962 = vmatprep.subr.bf16.mxu0 0
    %963 = vmatpush1.bf16.msra.mxu0 0
    %964 = vmatprep.subr.bf16.mxu0 0
    %965 = vmatpush1.bf16.msra.mxu0 0
    %966 = vmatprep.subr.bf16.mxu0 0
    %967 = vmatpush1.bf16.msra.mxu0 0
    %968 = vmatprep.subr.bf16.mxu0 0
    %969 = vmatpush1.bf16.msra.mxu0 0
    %970 = vmatprep.subr.bf16.mxu0 0
    %971 = vmatpush1.bf16.msra.mxu0 0
    %972 = vmatprep.subr.bf16.mxu0 0
    %973 = vmatpush1.bf16.msra.mxu0 0
    %974 = vmatprep.subr.bf16.mxu0 0
    %975 = vmatpush1.bf16.msra.mxu0 %v959
    %976 = vmatprep.subr.bf16.mxu0 0
    %977 = vmatpush1.bf16.msra.mxu0 %v958
    %978 = vmatprep.subr.bf16.mxu0 0
    %979 = vmatpush2.bf16.msra.mxu0 0
    %980 = vmatprep.subr.bf16.mxu0 0
    %981 = vmatpush2.bf16.msra.mxu0 0
    %982 = vmatprep.subr.bf16.mxu0 0
    %983 = vmatpush2.bf16.msra.mxu0 0
    %984 = vmatprep.subr.bf16.mxu0 0
    %985 = vmatpush2.bf16.msra.mxu0 0
    %986 = vmatprep.subr.bf16.mxu0 0
    %987 = vmatpush2.bf16.msra.mxu0 0
    %988 = vmatprep.subr.bf16.mxu0 0
    %989 = vmatpush2.bf16.msra.mxu0 0
    %990 = vmatprep.subr.bf16.mxu0 0
    %991 = vmatpush2.bf16.msra.mxu0 0
    %992 = vmatprep.subr.bf16.mxu0 0
    %993 = vmatpush2.bf16.msra.mxu0 0
    %994 = vmatprep.mubr.bf16.mxu0 0
    %995 = vmatmul.mubr.bf16.gmra.mxu0 %v565
    %v996 = vpop.f32.mrf.mxu0
    %v997 = vadd.f32 %v948, %v996
    %v998 = vpop.f32.mrf.mxu0
    %v999 = vpop.f32.mrf.mxu0
    %v1000 = vpop.f32.mrf.mxu0
    %1001 = vdwg.mxu0
    %v1002 = vadd.f32 %v934, %v997
    %v1003 = vxor.u32 %v1002, 2147483648
    %v1004 = vmul.f32 %v1003, 1.442695
    %v1005 = vpow.pop %v1004
    %v1006 = vadd.f32 %v1005, 1.0
    %v1007 = vrcp.pop %v1006
    %v1008 = vmul.f32 1.0, %v1007
    %1010 = vrot.lane.b32.xlu0 %v997, 64
    %v1011 = vpop.permute.xlu0 %1010
    %v1013 = vmul.f32 %v1008, %v1011
    %1015 = vrot.lane.b32.xlu0 %v1013, 64
    %v1016 = vpop.permute.xlu0 %1015
    %v1018 = vadd.f32 %v934, %v1016
    %v1019 = vtanh.pop %v1018
    %v1020 = vsub.f32 1.0, %v1008
    %1022 = vrot.lane.b32.xlu0 %v1019, 96
    %v1023 = vpop.permute.xlu0 %1022
    %v1025 = vmul.f32 %v1020, %v1023
    %1027 = vrot.lane.b32.xlu0 %v370, 32
    %v1028 = vpop.permute.xlu0 %1027
    %v1030 = vmul.f32 %v1008, %v1028
    %v1031 = vadd.f32 %v1025, %v1030
    %1033 = vrot.lane.b32.xlu0 %v1031, 96
    %v1034 = vpop.permute.xlu0 %1033
    %s1036 = scalar_lea.vmem [#allocation35], 8
    %1037 = vst.msk [vmem:[%s1036] sm:$0xff] %vm371, %v1034
    %v1038 = vpack.c.bf16 %v670, %v670
    %vm1039 = vcmask 64512
    %v1041 = vsel %vm1039, %v367, 0
    %vm1043 = vcmask 1043456
    %v1045 = vsel %vm1043, %v1038, 0
    %1047 = vmatprep.subr.bf16.mxu0 0
    %1048 = vmatpush1.bf16.msra.mxu0 0
    %1049 = vmatprep.subr.bf16.mxu0 0
    %1050 = vmatpush1.bf16.msra.mxu0 0
    %1051 = vmatprep.subr.bf16.mxu0 0
    %1052 = vmatpush1.bf16.msra.mxu0 0
    %1053 = vmatprep.subr.bf16.mxu0 0
    %1054 = vmatpush1.bf16.msra.mxu0 0
    %1055 = vmatprep.subr.bf16.mxu0 0
    %1056 = vmatpush1.bf16.msra.mxu0 0
    %1057 = vmatprep.subr.bf16.mxu0 0
    %1058 = vmatpush1.bf16.msra.mxu0 0
    %1059 = vmatprep.subr.bf16.mxu0 0
    %1060 = vmatpush1.bf16.msra.mxu0 0
    %1061 = vmatprep.subr.bf16.mxu0 0
    %1062 = vmatpush1.bf16.msra.mxu0 %v1045
    %1063 = vmatprep.subr.bf16.mxu0 0
    %1064 = vmatpush2.bf16.msra.mxu0 0
    %1065 = vmatprep.subr.bf16.mxu0 0
    %1066 = vmatpush2.bf16.msra.mxu0 0
    %1067 = vmatprep.subr.bf16.mxu0 0
    %1068 = vmatpush2.bf16.msra.mxu0 0
    %1069 = vmatprep.subr.bf16.mxu0 0
    %1070 = vmatpush2.bf16.msra.mxu0 0
    %1071 = vmatprep.subr.bf16.mxu0 0
    %1072 = vmatpush2.bf16.msra.mxu0 0
    %1073 = vmatprep.subr.bf16.mxu0 0
    %1074 = vmatpush2.bf16.msra.mxu0 0
    %1075 = vmatprep.subr.bf16.mxu0 0
    %1076 = vmatpush2.bf16.msra.mxu0 0
    %1077 = vmatprep.subr.bf16.mxu0 0
    %1078 = vmatpush2.bf16.msra.mxu0 0
    %1079 = vmatprep.mubr.bf16.mxu0 0
    %1080 = vmatmul.mubr.bf16.gmra.mxu0 %v1041
    %v1081 = vpop.f32.mrf.mxu0
    %v1082 = vadd.f32 0.0, %v1081
    %v1083 = vpop.f32.mrf.mxu0
    %v1084 = vpop.f32.mrf.mxu0
    %v1085 = vadd.f32 0.0, %v1084
    %v1086 = vpop.f32.mrf.mxu0
    %1087 = vdwg.mxu0
    %v1088 = vpack.c.bf16 %v1085, %v1082
    %v1089 = vld [vmem:[%s19] sm:$0xf]
    %v1090 = vld [vmem:[%s19 + $0x4] sm:$0xf]
    %v1091 = vld [vmem:[%s19 + $0x8] sm:$0xf]
    %v1092 = vld [vmem:[%s19 + $0xc] sm:$0xf]
    %v1093 = vpack.c.bf16 %v824, %v821
    %v1094 = vld [vmem:[#allocation31] sm:$0xf]
    %v1095 = vld [vmem:[#allocation31 + $0x4] sm:$0xf]
    %v1096 = vld [vmem:[#allocation31 + $0x8] sm:$0xf]
    %v1097 = vld [vmem:[#allocation31 + $0xc] sm:$0xf]
    %v1102 = vunpack.c.l.b16 %v1094
    %v1103 = vunpack.c.l.b16 %v1095
    %v1104 = vunpack.c.l.b16 %v1096
    %v1105 = vunpack.c.l.b16 %v1097
    %v1106 = vpack.c.b16 %v1103, %v1102
    %v1107 = vpack.c.b16 %v1105, %v1104
    %v1111 = vsel %vm371, %v1093, 0
    %1113 = vmatprep.subr.bf16.mxu0 0
    %1114 = vmatpush1.bf16.msra.mxu0 0
    %1115 = vmatprep.subr.bf16.mxu0 0
    %1116 = vmatpush1.bf16.msra.mxu0 0
    %1117 = vmatprep.subr.bf16.mxu0 0
    %1118 = vmatpush1.bf16.msra.mxu0 0
    %1119 = vmatprep.subr.bf16.mxu0 0
    %1120 = vmatpush1.bf16.msra.mxu0 0
    %1121 = vmatprep.subr.bf16.mxu0 0
    %1122 = vmatpush1.bf16.msra.mxu0 0
    %1123 = vmatprep.subr.bf16.mxu0 0
    %1124 = vmatpush1.bf16.msra.mxu0 0
    %1125 = vmatprep.subr.bf16.mxu0 0
    %1126 = vmatpush1.bf16.msra.mxu0 %v1107
    %1127 = vmatprep.subr.bf16.mxu0 0
    %1128 = vmatpush1.bf16.msra.mxu0 %v1106
    %1129 = vmatprep.subr.bf16.mxu0 0
    %1130 = vmatpush2.bf16.msra.mxu0 0
    %1131 = vmatprep.subr.bf16.mxu0 0
    %1132 = vmatpush2.bf16.msra.mxu0 0
    %1133 = vmatprep.subr.bf16.mxu0 0
    %1134 = vmatpush2.bf16.msra.mxu0 0
    %1135 = vmatprep.subr.bf16.mxu0 0
    %1136 = vmatpush2.bf16.msra.mxu0 0
    %1137 = vmatprep.subr.bf16.mxu0 0
    %1138 = vmatpush2.bf16.msra.mxu0 0
    %1139 = vmatprep.subr.bf16.mxu0 0
    %1140 = vmatpush2.bf16.msra.mxu0 0
    %1141 = vmatprep.subr.bf16.mxu0 0
    %1142 = vmatpush2.bf16.msra.mxu0 0
    %1143 = vmatprep.subr.bf16.mxu0 0
    %1144 = vmatpush2.bf16.msra.mxu0 0
    %1145 = vmatprep.mubr.bf16.mxu0 0
    %1146 = vmatmul.mubr.bf16.gmra.mxu0 %v1111
    %v1147 = vpop.f32.mrf.mxu0
    %v1148 = vadd.f32 0.0, %v1147
    %v1149 = vpop.f32.mrf.mxu0
    %v1150 = vpop.f32.mrf.mxu0
    %v1151 = vadd.f32 0.0, %v1150
    %v1152 = vpop.f32.mrf.mxu0
    %1153 = vdwg.mxu0
    %v1158 = vunpack.c.l.b16 %v1089
    %v1159 = vunpack.c.l.b16 %v1090
    %v1160 = vunpack.c.l.b16 %v1091
    %v1161 = vunpack.c.l.b16 %v1092
    %v1162 = vpack.c.b16 %v1159, %v1158
    %v1163 = vpack.c.b16 %v1161, %v1160
    %v1167 = vsel %vm371, %v1088, 0
    %1169 = vmatprep.subr.bf16.mxu0 0
    %1170 = vmatpush1.bf16.msra.mxu0 0
    %1171 = vmatprep.subr.bf16.mxu0 0
    %1172 = vmatpush1.bf16.msra.mxu0 0
    %1173 = vmatprep.subr.bf16.mxu0 0
    %1174 = vmatpush1.bf16.msra.mxu0 0
    %1175 = vmatprep.subr.bf16.mxu0 0
    %1176 = vmatpush1.bf16.msra.mxu0 0
    %1177 = vmatprep.subr.bf16.mxu0 0
    %1178 = vmatpush1.bf16.msra.mxu0 0
    %1179 = vmatprep.subr.bf16.mxu0 0
    %1180 = vmatpush1.bf16.msra.mxu0 0
    %1181 = vmatprep.subr.bf16.mxu0 0
    %1182 = vmatpush1.bf16.msra.mxu0 %v1163
    %1183 = vmatprep.subr.bf16.mxu0 0
    %1184 = vmatpush1.bf16.msra.mxu0 %v1162
    %1185 = vmatprep.subr.bf16.mxu0 0
    %1186 = vmatpush2.bf16.msra.mxu0 0
    %1187 = vmatprep.subr.bf16.mxu0 0
    %1188 = vmatpush2.bf16.msra.mxu0 0
    %1189 = vmatprep.subr.bf16.mxu0 0
    %1190 = vmatpush2.bf16.msra.mxu0 0
    %1191 = vmatprep.subr.bf16.mxu0 0
    %1192 = vmatpush2.bf16.msra.mxu0 0
    %1193 = vmatprep.subr.bf16.mxu0 0
    %1194 = vmatpush2.bf16.msra.mxu0 0
    %1195 = vmatprep.subr.bf16.mxu0 0
    %1196 = vmatpush2.bf16.msra.mxu0 0
    %1197 = vmatprep.subr.bf16.mxu0 0
    %1198 = vmatpush2.bf16.msra.mxu0 0
    %1199 = vmatprep.subr.bf16.mxu0 0
    %1200 = vmatpush2.bf16.msra.mxu0 0
    %1201 = vmatprep.mubr.bf16.mxu0 0
    %1202 = vmatmul.mubr.bf16.gmra.mxu0 %v1167
    %v1203 = vpop.f32.mrf.mxu0
    %v1204 = vadd.f32 %v1148, %v1203
    %v1205 = vpop.f32.mrf.mxu0
    %v1206 = vpop.f32.mrf.mxu0
    %v1207 = vadd.f32 %v1151, %v1206
    %v1208 = vpop.f32.mrf.mxu0
    %1209 = vdwg.mxu0
    %v1210 = vld [vmem:[%s22] sm:$0x1]
    %v1212 = vlaneseq
    %v1213 = vshrl.u32 %v1212, 7
    %v1214 = vsub.s32 0, %v1213
    %v1215 = vrot.slane %v1210, %v1214
    %v1217 = vadd.f32 %v1204, %v1215
    %v1218 = vadd.f32 %v1207, %v1215
    %v1219 = vld [vmem:[#allocation32] sm:$0xf]
    %v1220 = vld [vmem:[#allocation32 + $0x4] sm:$0xf]
    %v1221 = vld [vmem:[#allocation32 + $0x8] sm:$0xf]
    %v1222 = vld [vmem:[#allocation32 + $0xc] sm:$0xf]
    %v1223 = vld [vmem:[%s23] sm:$0x1]
    %v1225 = vlaneseq
    %v1226 = vshrl.u32 %v1225, 7
    %v1227 = vsub.s32 0, %v1226
    %v1228 = vrot.slane %v1223, %v1227
    %v1234 = vunpack.c.l.b16 %v1219
    %v1235 = vunpack.c.l.b16 %v1220
    %v1236 = vunpack.c.l.b16 %v1221
    %v1237 = vunpack.c.l.b16 %v1222
    %v1238 = vpack.c.b16 %v1235, %v1234
    %v1239 = vpack.c.b16 %v1237, %v1236
    %1242 = vmatprep.subr.bf16.mxu0 0
    %1243 = vmatpush1.bf16.msra.mxu0 0
    %1244 = vmatprep.subr.bf16.mxu0 0
    %1245 = vmatpush1.bf16.msra.mxu0 0
    %1246 = vmatprep.subr.bf16.mxu0 0
    %1247 = vmatpush1.bf16.msra.mxu0 0
    %1248 = vmatprep.subr.bf16.mxu0 0
    %1249 = vmatpush1.bf16.msra.mxu0 0
    %1250 = vmatprep.subr.bf16.mxu0 0
    %1251 = vmatpush1.bf16.msra.mxu0 0
    %1252 = vmatprep.subr.bf16.mxu0 0
    %1253 = vmatpush1.bf16.msra.mxu0 0
    %1254 = vmatprep.subr.bf16.mxu0 0
    %1255 = vmatpush1.bf16.msra.mxu0 %v1239
    %1256 = vmatprep.subr.bf16.mxu0 0
    %1257 = vmatpush1.bf16.msra.mxu0 %v1238
    %1258 = vmatprep.subr.bf16.mxu0 0
    %1259 = vmatpush2.bf16.msra.mxu0 0
    %1260 = vmatprep.subr.bf16.mxu0 0
    %1261 = vmatpush2.bf16.msra.mxu0 0
    %1262 = vmatprep.subr.bf16.mxu0 0
    %1263 = vmatpush2.bf16.msra.mxu0 0
    %1264 = vmatprep.subr.bf16.mxu0 0
    %1265 = vmatpush2.bf16.msra.mxu0 0
    %1266 = vmatprep.subr.bf16.mxu0 0
    %1267 = vmatpush2.bf16.msra.mxu0 0
    %1268 = vmatprep.subr.bf16.mxu0 0
    %1269 = vmatpush2.bf16.msra.mxu0 0
    %1270 = vmatprep.subr.bf16.mxu0 0
    %1271 = vmatpush2.bf16.msra.mxu0 0
    %1272 = vmatprep.subr.bf16.mxu0 0
    %1273 = vmatpush2.bf16.msra.mxu0 0
    %1274 = vmatprep.mubr.bf16.mxu0 0
    %1275 = vmatmul.mubr.bf16.gmra.mxu0 %v427
    %v1276 = vpop.f32.mrf.mxu0
    %v1277 = vadd.f32 %v1228, %v1276
    %v1278 = vpop.f32.mrf.mxu0
    %v1279 = vpop.f32.mrf.mxu0
    %v1280 = vadd.f32 %v1228, %v1279
    %v1281 = vpop.f32.mrf.mxu0
    %1282 = vdwg.mxu0
    %v1283 = vadd.f32 %v1217, %v1277
    %v1284 = vadd.f32 %v1218, %v1280
    %v1285 = vxor.u32 %v1283, 2147483648
    %v1286 = vxor.u32 %v1284, 2147483648
    %v1287 = vmul.f32 %v1285, 1.442695
    %v1288 = vpow.pop %v1287
    %v1289 = vmul.f32 %v1286, 1.442695
    %v1290 = vpow.pop %v1289
    %v1291 = vadd.f32 %v1288, 1.0
    %v1292 = vadd.f32 %v1290, 1.0
    %v1293 = vrcp.pop %v1291
    %v1294 = vmul.f32 1.0, %v1293
    %v1295 = vrcp.pop %v1292
    %v1296 = vmul.f32 1.0, %v1295
    %1299 = vrot.lane.b32.xlu0 %v1277, 64
    %v1300 = vpop.permute.xlu0 %1299
    %1301 = vrot.lane.b32.xlu0 %v1280, 64
    %v1302 = vpop.permute.xlu0 %1301
    %v1305 = vmul.f32 %v1294, %v1300
    %v1306 = vmul.f32 %v1296, %v1302
    %1309 = vrot.lane.b32.xlu0 %v1305, 64
    %v1310 = vpop.permute.xlu0 %1309
    %1311 = vrot.lane.b32.xlu0 %v1306, 64
    %v1312 = vpop.permute.xlu0 %1311
    %v1315 = vadd.f32 %v1217, %v1310
    %v1316 = vadd.f32 %v1218, %v1312
    %v1317 = vtanh.pop %v1315
    %v1318 = vtanh.pop %v1316
    %v1319 = vsub.f32 1.0, %v1294
    %v1320 = vsub.f32 1.0, %v1296
    %1323 = vrot.lane.b32.xlu0 %v1317, 96
    %v1324 = vpop.permute.xlu0 %1323
    %1325 = vrot.lane.b32.xlu0 %v1318, 96
    %v1326 = vpop.permute.xlu0 %1325
    %v1329 = vmul.f32 %v1319, %v1324
    %v1330 = vmul.f32 %v1320, %v1326
    %1333 = vrot.lane.b32.xlu0 %v368, 32
    %v1334 = vpop.permute.xlu0 %1333
    %1335 = vrot.lane.b32.xlu0 %v369, 32
    %v1336 = vpop.permute.xlu0 %1335
    %v1339 = vmul.f32 %v1294, %v1334
    %v1340 = vmul.f32 %v1296, %v1336
    %v1341 = vadd.f32 %v1329, %v1339
    %v1342 = vadd.f32 %v1330, %v1340
    %1345 = vrot.lane.b32.xlu0 %v1341, 96
    %v1346 = vpop.permute.xlu0 %1345
    %1347 = vrot.lane.b32.xlu0 %v1342, 96
    %v1348 = vpop.permute.xlu0 %1347
    %s1351 = scalar_lea.vmem [#allocation34], 16
    %1352 = vst.msk [vmem:[%s1351] sm:$0xff] %vm371, %v1346
    %1353 = vst.msk [vmem:[%s1351 + $0x8] sm:$0xff] %vm371, %v1348
    %v1354 = vpack.c.bf16 %v1342, %v1341
    %v1355 = vld [vmem:[#allocation8] sm:$0xf]
    %v1356 = vld [vmem:[#allocation8 + $0x4] sm:$0xf]
    %v1357 = vld [vmem:[#allocation8 + $0x8] sm:$0xf]
    %v1358 = vld [vmem:[#allocation8 + $0xc] sm:$0xf]
    %v1359 = vld [vmem:[#allocation10] sm:$0x1]
    %v1361 = vlaneseq
    %v1362 = vshrl.u32 %v1361, 7
    %v1363 = vsub.s32 0, %v1362
    %v1364 = vrot.slane %v1359, %v1363
    %1367 = vrot.lane.b32.xlu0 %v1354, 96
    %v1368 = vpop.permute.xlu0 %1367
    %v1373 = vunpack.c.l.b16 %v1355
    %v1374 = vunpack.c.l.b16 %v1356
    %v1375 = vunpack.c.l.b16 %v1357
    %v1376 = vunpack.c.l.b16 %v1358
    %v1377 = vpack.c.b16 %v1374, %v1373
    %v1378 = vpack.c.b16 %v1376, %v1375
    %v1382 = vsel %vm371, %v1368, 0
    %1384 = vmatprep.subr.bf16.mxu0 0
    %1385 = vmatpush1.bf16.msra.mxu0 0
    %1386 = vmatprep.subr.bf16.mxu0 0
    %1387 = vmatpush1.bf16.msra.mxu0 0
    %1388 = vmatprep.subr.bf16.mxu0 0
    %1389 = vmatpush1.bf16.msra.mxu0 0
    %1390 = vmatprep.subr.bf16.mxu0 0
    %1391 = vmatpush1.bf16.msra.mxu0 0
    %1392 = vmatprep.subr.bf16.mxu0 0
    %1393 = vmatpush1.bf16.msra.mxu0 0
    %1394 = vmatprep.subr.bf16.mxu0 0
    %1395 = vmatpush1.bf16.msra.mxu0 0
    %1396 = vmatprep.subr.bf16.mxu0 0
    %1397 = vmatpush1.bf16.msra.mxu0 %v1378
    %1398 = vmatprep.subr.bf16.mxu0 0
    %1399 = vmatpush1.bf16.msra.mxu0 %v1377
    %1400 = vmatprep.subr.bf16.mxu0 0
    %1401 = vmatpush2.bf16.msra.mxu0 0
    %1402 = vmatprep.subr.bf16.mxu0 0
    %1403 = vmatpush2.bf16.msra.mxu0 0
    %1404 = vmatprep.subr.bf16.mxu0 0
    %1405 = vmatpush2.bf16.msra.mxu0 0
    %1406 = vmatprep.subr.bf16.mxu0 0
    %1407 = vmatpush2.bf16.msra.mxu0 0
    %1408 = vmatprep.subr.bf16.mxu0 0
    %1409 = vmatpush2.bf16.msra.mxu0 0
    %1410 = vmatprep.subr.bf16.mxu0 0
    %1411 = vmatpush2.bf16.msra.mxu0 0
    %1412 = vmatprep.subr.bf16.mxu0 0
    %1413 = vmatpush2.bf16.msra.mxu0 0
    %1414 = vmatprep.subr.bf16.mxu0 0
    %1415 = vmatpush2.bf16.msra.mxu0 0
    %1416 = vmatprep.mubr.bf16.mxu0 0
    %1417 = vmatmul.mubr.bf16.gmra.mxu0 %v1382
    %v1418 = vpop.f32.mrf.mxu0
    %v1419 = vadd.f32 %v1364, %v1418
    %v1420 = vpop.f32.mrf.mxu0
    %v1421 = vpop.f32.mrf.mxu0
    %v1422 = vadd.f32 %v1364, %v1421
    %v1423 = vpop.f32.mrf.mxu0
    %1424 = vdwg.mxu0
    %v1425 = vmax.f32 %v1419, 0.0
    %v1426 = vmax.f32 %v1422, 0.0
    %v1427 = vpack.c.bf16 %v1426, %v1425
    %v1428 = vld [vmem:[#allocation11] sm:$0xf]
    %v1429 = vld [vmem:[#allocation11 + $0x4] sm:$0xf]
    %v1430 = vld [vmem:[#allocation11 + $0x8] sm:$0xf]
    %v1431 = vld [vmem:[#allocation11 + $0xc] sm:$0xf]
    %v1432 = vld [vmem:[#allocation13] sm:$0x1]
    %v1434 = vlaneseq
    %v1435 = vshrl.u32 %v1434, 7
    %v1436 = vsub.s32 0, %v1435
    %v1437 = vrot.slane %v1432, %v1436
    %v1443 = vunpack.c.l.b16 %v1428
    %v1444 = vunpack.c.l.b16 %v1429
    %v1445 = vunpack.c.l.b16 %v1430
    %v1446 = vunpack.c.l.b16 %v1431
    %v1447 = vpack.c.b16 %v1444, %v1443
    %v1448 = vpack.c.b16 %v1446, %v1445
    %v1452 = vsel %vm371, %v1427, 0
    %1454 = vmatprep.subr.bf16.mxu0 0
    %1455 = vmatpush1.bf16.msra.mxu0 0
    %1456 = vmatprep.subr.bf16.mxu0 0
    %1457 = vmatpush1.bf16.msra.mxu0 0
    %1458 = vmatprep.subr.bf16.mxu0 0
    %1459 = vmatpush1.bf16.msra.mxu0 0
    %1460 = vmatprep.subr.bf16.mxu0 0
    %1461 = vmatpush1.bf16.msra.mxu0 0
    %1462 = vmatprep.subr.bf16.mxu0 0
    %1463 = vmatpush1.bf16.msra.mxu0 0
    %1464 = vmatprep.subr.bf16.mxu0 0
    %1465 = vmatpush1.bf16.msra.mxu0 0
    %1466 = vmatprep.subr.bf16.mxu0 0
    %1467 = vmatpush1.bf16.msra.mxu0 %v1448
    %1468 = vmatprep.subr.bf16.mxu0 0
    %1469 = vmatpush1.bf16.msra.mxu0 %v1447
    %1470 = vmatprep.subr.bf16.mxu0 0
    %1471 = vmatpush2.bf16.msra.mxu0 0
    %1472 = vmatprep.subr.bf16.mxu0 0
    %1473 = vmatpush2.bf16.msra.mxu0 0
    %1474 = vmatprep.subr.bf16.mxu0 0
    %1475 = vmatpush2.bf16.msra.mxu0 0
    %1476 = vmatprep.subr.bf16.mxu0 0
    %1477 = vmatpush2.bf16.msra.mxu0 0
    %1478 = vmatprep.subr.bf16.mxu0 0
    %1479 = vmatpush2.bf16.msra.mxu0 0
    %1480 = vmatprep.subr.bf16.mxu0 0
    %1481 = vmatpush2.bf16.msra.mxu0 0
    %1482 = vmatprep.subr.bf16.mxu0 0
    %1483 = vmatpush2.bf16.msra.mxu0 0
    %1484 = vmatprep.subr.bf16.mxu0 0
    %1485 = vmatpush2.bf16.msra.mxu0 0
    %1486 = vmatprep.mubr.bf16.mxu0 0
    %1487 = vmatmul.mubr.bf16.gmra.mxu0 %v1452
    %v1488 = vpop.f32.mrf.mxu0
    %v1489 = vadd.f32 %v1437, %v1488
    %v1490 = vpop.f32.mrf.mxu0
    %v1491 = vpop.f32.mrf.mxu0
    %v1492 = vadd.f32 %v1437, %v1491
    %v1493 = vpop.f32.mrf.mxu0
    %1494 = vdwg.mxu0
    %v1495 = vpack.c.bf16 %v1031, %v1031
    %v1496 = vld [vmem:[#allocation14] sm:$0xf]
    %v1497 = vld [vmem:[#allocation14 + $0x4] sm:$0xf]
    %v1498 = vld [vmem:[#allocation14 + $0x8] sm:$0xf]
    %v1499 = vld [vmem:[#allocation14 + $0xc] sm:$0xf]
    %v1500 = vld [vmem:[#allocation16] sm:$0x1]
    %v1502 = vlaneseq
    %v1503 = vshrl.u32 %v1502, 7
    %v1504 = vsub.s32 0, %v1503
    %v1505 = vrot.slane %v1500, %v1504
    %1508 = vrot.lane.b32.xlu0 %v1495, 96
    %v1509 = vpop.permute.xlu0 %1508
    %v1514 = vunpack.c.l.b16 %v1496
    %v1515 = vunpack.c.l.b16 %v1497
    %v1516 = vunpack.c.l.b16 %v1498
    %v1517 = vunpack.c.l.b16 %v1499
    %v1518 = vpack.c.b16 %v1515, %v1514
    %v1519 = vpack.c.b16 %v1517, %v1516
    %v1523 = vsel %vm371, %v1509, 0
    %1525 = vmatprep.subr.bf16.mxu0 0
    %1526 = vmatpush1.bf16.msra.mxu0 0
    %1527 = vmatprep.subr.bf16.mxu0 0
    %1528 = vmatpush1.bf16.msra.mxu0 0
    %1529 = vmatprep.subr.bf16.mxu0 0
    %1530 = vmatpush1.bf16.msra.mxu0 0
    %1531 = vmatprep.subr.bf16.mxu0 0
    %1532 = vmatpush1.bf16.msra.mxu0 0
    %1533 = vmatprep.subr.bf16.mxu0 0
    %1534 = vmatpush1.bf16.msra.mxu0 0
    %1535 = vmatprep.subr.bf16.mxu0 0
    %1536 = vmatpush1.bf16.msra.mxu0 0
    %1537 = vmatprep.subr.bf16.mxu0 0
    %1538 = vmatpush1.bf16.msra.mxu0 %v1519
    %1539 = vmatprep.subr.bf16.mxu0 0
    %1540 = vmatpush1.bf16.msra.mxu0 %v1518
    %1541 = vmatprep.subr.bf16.mxu0 0
    %1542 = vmatpush2.bf16.msra.mxu0 0
    %1543 = vmatprep.subr.bf16.mxu0 0
    %1544 = vmatpush2.bf16.msra.mxu0 0
    %1545 = vmatprep.subr.bf16.mxu0 0
    %1546 = vmatpush2.bf16.msra.mxu0 0
    %1547 = vmatprep.subr.bf16.mxu0 0
    %1548 = vmatpush2.bf16.msra.mxu0 0
    %1549 = vmatprep.subr.bf16.mxu0 0
    %1550 = vmatpush2.bf16.msra.mxu0 0
    %1551 = vmatprep.subr.bf16.mxu0 0
    %1552 = vmatpush2.bf16.msra.mxu0 0
    %1553 = vmatprep.subr.bf16.mxu0 0
    %1554 = vmatpush2.bf16.msra.mxu0 0
    %1555 = vmatprep.subr.bf16.mxu0 0
    %1556 = vmatpush2.bf16.msra.mxu0 0
    %1557 = vmatprep.mubr.bf16.mxu0 0
    %1558 = vmatmul.mubr.bf16.gmra.mxu0 %v1523
    %v1559 = vpop.f32.mrf.mxu0
    %v1560 = vadd.f32 %v1505, %v1559
    %v1561 = vpop.f32.mrf.mxu0
    %v1562 = vpop.f32.mrf.mxu0
    %v1563 = vpop.f32.mrf.mxu0
    %1564 = vdwg.mxu0
    %v1565 = vmax.f32 %v1560, 0.0
    %v1566 = vpack.c.bf16 %v1565, %v1565
    %v1567 = vld [vmem:[%s9] sm:$0xf]
    %v1568 = vld [vmem:[%s9 + $0x4] sm:$0xf]
    %v1569 = vld [vmem:[%s9 + $0x8] sm:$0xf]
    %v1570 = vld [vmem:[%s9 + $0xc] sm:$0xf]
    %v1571 = vld [vmem:[#allocation17] sm:$0x1]
    %v1573 = vlaneseq
    %v1574 = vshrl.u32 %v1573, 7
    %v1575 = vsub.s32 0, %v1574
    %v1576 = vrot.slane %v1571, %v1575
    %v1582 = vunpack.c.l.b16 %v1567
    %v1583 = vunpack.c.l.b16 %v1568
    %v1584 = vunpack.c.l.b16 %v1569
    %v1585 = vunpack.c.l.b16 %v1570
    %v1586 = vpack.c.b16 %v1583, %v1582
    %v1587 = vpack.c.b16 %v1585, %v1584
    %v1591 = vsel %vm371, %v1566, 0
    %1593 = vmatprep.subr.bf16.mxu0 0
    %1594 = vmatpush1.bf16.msra.mxu0 0
    %1595 = vmatprep.subr.bf16.mxu0 0
    %1596 = vmatpush1.bf16.msra.mxu0 0
    %1597 = vmatprep.subr.bf16.mxu0 0
    %1598 = vmatpush1.bf16.msra.mxu0 0
    %1599 = vmatprep.subr.bf16.mxu0 0
    %1600 = vmatpush1.bf16.msra.mxu0 0
    %1601 = vmatprep.subr.bf16.mxu0 0
    %1602 = vmatpush1.bf16.msra.mxu0 0
    %1603 = vmatprep.subr.bf16.mxu0 0
    %1604 = vmatpush1.bf16.msra.mxu0 0
    %1605 = vmatprep.subr.bf16.mxu0 0
    %1606 = vmatpush1.bf16.msra.mxu0 %v1587
    %1607 = vmatprep.subr.bf16.mxu0 0
    %1608 = vmatpush1.bf16.msra.mxu0 %v1586
    %1609 = vmatprep.subr.bf16.mxu0 0
    %1610 = vmatpush2.bf16.msra.mxu0 0
    %1611 = vmatprep.subr.bf16.mxu0 0
    %1612 = vmatpush2.bf16.msra.mxu0 0
    %1613 = vmatprep.subr.bf16.mxu0 0
    %1614 = vmatpush2.bf16.msra.mxu0 0
    %1615 = vmatprep.subr.bf16.mxu0 0
    %1616 = vmatpush2.bf16.msra.mxu0 0
    %1617 = vmatprep.subr.bf16.mxu0 0
    %1618 = vmatpush2.bf16.msra.mxu0 0
    %1619 = vmatprep.subr.bf16.mxu0 0
    %1620 = vmatpush2.bf16.msra.mxu0 0
    %1621 = vmatprep.subr.bf16.mxu0 0
    %1622 = vmatpush2.bf16.msra.mxu0 0
    %1623 = vmatprep.subr.bf16.mxu0 0
    %1624 = vmatpush2.bf16.msra.mxu0 0
    %1625 = vmatprep.mubr.bf16.mxu0 0
    %1626 = vmatmul.mubr.bf16.gmra.mxu0 %v1591
    %v1627 = vpop.f32.mrf.mxu0
    %v1628 = vadd.f32 %v1576, %v1627
    %v1629 = vpop.f32.mrf.mxu0
    %v1630 = vpop.f32.mrf.mxu0
    %v1631 = vpop.f32.mrf.mxu0
    %1632 = vdwg.mxu0
    %v1633 = vrot.slane %v1346, 1
    %v1634 = vrot.slane %v1348, 1
    %v1635 = vsel %vm677, %v1633, %v1634
    %v1636 = vsel %vm677, %v1634, %v1633
    %v1637 = vrot.slane %v1346, 7
    %v1638 = vrot.slane %v1348, 7
    %v1639 = vsel %vm682, %v1637, %v1638
    %v1640 = vsel %vm682, %v1638, %v1637
    %v1641 = vsel %vm685, %v1635, %v1640
    %v1642 = vsel %vm686, %v1636, %v1639
    %v1643 = vpack.c.bf16 %v1642, %v1641
    %v1644 = vld [vmem:[#allocation19] sm:$0xf]
    %v1645 = vld [vmem:[#allocation19 + $0x4] sm:$0xf]
    %v1646 = vld [vmem:[#allocation19 + $0x8] sm:$0xf]
    %v1647 = vld [vmem:[#allocation19 + $0xc] sm:$0xf]
    %v1648 = vld [vmem:[#allocation20] sm:$0x1]
    %v1650 = vlaneseq
    %v1651 = vshrl.u32 %v1650, 7
    %v1652 = vsub.s32 0, %v1651
    %v1653 = vrot.slane %v1648, %v1652
    %v1659 = vunpack.c.l.b16 %v1644
    %v1660 = vunpack.c.l.b16 %v1645
    %v1661 = vunpack.c.l.b16 %v1646
    %v1662 = vunpack.c.l.b16 %v1647
    %v1663 = vpack.c.b16 %v1660, %v1659
    %v1664 = vpack.c.b16 %v1662, %v1661
    %v1668 = vsel %vm371, %v1643, 0
    %1670 = vmatprep.subr.bf16.mxu0 0
    %1671 = vmatpush1.bf16.msra.mxu0 0
    %1672 = vmatprep.subr.bf16.mxu0 0
    %1673 = vmatpush1.bf16.msra.mxu0 0
    %1674 = vmatprep.subr.bf16.mxu0 0
    %1675 = vmatpush1.bf16.msra.mxu0 0
    %1676 = vmatprep.subr.bf16.mxu0 0
    %1677 = vmatpush1.bf16.msra.mxu0 0
    %1678 = vmatprep.subr.bf16.mxu0 0
    %1679 = vmatpush1.bf16.msra.mxu0 0
    %1680 = vmatprep.subr.bf16.mxu0 0
    %1681 = vmatpush1.bf16.msra.mxu0 0
    %1682 = vmatprep.subr.bf16.mxu0 0
    %1683 = vmatpush1.bf16.msra.mxu0 %v1664
    %1684 = vmatprep.subr.bf16.mxu0 0
    %1685 = vmatpush1.bf16.msra.mxu0 %v1663
    %1686 = vmatprep.subr.bf16.mxu0 0
    %1687 = vmatpush2.bf16.msra.mxu0 0
    %1688 = vmatprep.subr.bf16.mxu0 0
    %1689 = vmatpush2.bf16.msra.mxu0 0
    %1690 = vmatprep.subr.bf16.mxu0 0
    %1691 = vmatpush2.bf16.msra.mxu0 0
    %1692 = vmatprep.subr.bf16.mxu0 0
    %1693 = vmatpush2.bf16.msra.mxu0 0
    %1694 = vmatprep.subr.bf16.mxu0 0
    %1695 = vmatpush2.bf16.msra.mxu0 0
    %1696 = vmatprep.subr.bf16.mxu0 0
    %1697 = vmatpush2.bf16.msra.mxu0 0
    %1698 = vmatprep.subr.bf16.mxu0 0
    %1699 = vmatpush2.bf16.msra.mxu0 0
    %1700 = vmatprep.subr.bf16.mxu0 0
    %1701 = vmatpush2.bf16.msra.mxu0 0
    %1702 = vmatprep.mubr.bf16.mxu0 0
    %1703 = vmatmul.mubr.bf16.gmra.mxu0 %v1668
    %v1704 = vpop.f32.mrf.mxu0
    %v1705 = vadd.f32 %v1653, %v1704
    %v1706 = vpop.f32.mrf.mxu0
    %v1707 = vpop.f32.mrf.mxu0
    %v1708 = vadd.f32 %v1653, %v1707
    %v1709 = vpop.f32.mrf.mxu0
    %1710 = vdwg.mxu0
    %v1711 = vmax.f32 %v1705, 0.0
    %v1712 = vmax.f32 %v1708, 0.0
    %v1713 = vpack.c.bf16 %v1712, %v1711
    %v1714 = vld [vmem:[#allocation22] sm:$0xf]
    %v1715 = vld [vmem:[#allocation22 + $0x4] sm:$0xf]
    %v1716 = vld [vmem:[#allocation22 + $0x8] sm:$0xf]
    %v1717 = vld [vmem:[#allocation22 + $0xc] sm:$0xf]
    %v1718 = vld [vmem:[#allocation23] sm:$0x1]
    %v1720 = vlaneseq
    %v1721 = vshrl.u32 %v1720, 7
    %v1722 = vsub.s32 0, %v1721
    %v1723 = vrot.slane %v1718, %v1722
    %v1729 = vunpack.c.l.b16 %v1714
    %v1730 = vunpack.c.l.b16 %v1715
    %v1731 = vunpack.c.l.b16 %v1716
    %v1732 = vunpack.c.l.b16 %v1717
    %v1733 = vpack.c.b16 %v1730, %v1729
    %v1734 = vpack.c.b16 %v1732, %v1731
    %v1738 = vsel %vm371, %v1713, 0
    %1740 = vmatprep.subr.bf16.mxu0 0
    %1741 = vmatpush1.bf16.msra.mxu0 0
    %1742 = vmatprep.subr.bf16.mxu0 0
    %1743 = vmatpush1.bf16.msra.mxu0 0
    %1744 = vmatprep.subr.bf16.mxu0 0
    %1745 = vmatpush1.bf16.msra.mxu0 0
    %1746 = vmatprep.subr.bf16.mxu0 0
    %1747 = vmatpush1.bf16.msra.mxu0 0
    %1748 = vmatprep.subr.bf16.mxu0 0
    %1749 = vmatpush1.bf16.msra.mxu0 0
    %1750 = vmatprep.subr.bf16.mxu0 0
    %1751 = vmatpush1.bf16.msra.mxu0 0
    %1752 = vmatprep.subr.bf16.mxu0 0
    %1753 = vmatpush1.bf16.msra.mxu0 %v1734
    %1754 = vmatprep.subr.bf16.mxu0 0
    %1755 = vmatpush1.bf16.msra.mxu0 %v1733
    %1756 = vmatprep.subr.bf16.mxu0 0
    %1757 = vmatpush2.bf16.msra.mxu0 0
    %1758 = vmatprep.subr.bf16.mxu0 0
    %1759 = vmatpush2.bf16.msra.mxu0 0
    %1760 = vmatprep.subr.bf16.mxu0 0
    %1761 = vmatpush2.bf16.msra.mxu0 0
    %1762 = vmatprep.subr.bf16.mxu0 0
    %1763 = vmatpush2.bf16.msra.mxu0 0
    %1764 = vmatprep.subr.bf16.mxu0 0
    %1765 = vmatpush2.bf16.msra.mxu0 0
    %1766 = vmatprep.subr.bf16.mxu0 0
    %1767 = vmatpush2.bf16.msra.mxu0 0
    %1768 = vmatprep.subr.bf16.mxu0 0
    %1769 = vmatpush2.bf16.msra.mxu0 0
    %1770 = vmatprep.subr.bf16.mxu0 0
    %1771 = vmatpush2.bf16.msra.mxu0 0
    %1772 = vmatprep.mubr.bf16.mxu0 0
    %1773 = vmatmul.mubr.bf16.gmra.mxu0 %v1738
    %v1774 = vpop.f32.mrf.mxu0
    %v1775 = vadd.f32 %v1723, %v1774
    %v1776 = vpop.f32.mrf.mxu0
    %v1777 = vpop.f32.mrf.mxu0
    %v1778 = vadd.f32 %v1723, %v1777
    %v1779 = vpop.f32.mrf.mxu0
    %1780 = vdwg.mxu0
    %v1781 = vpack.c.bf16 %v1492, %v1489
    %1782 = vmatprep.subr.bf16.mxu0 0
    %1783 = vmatpush1.bf16.msra.mxu0 0
    %1784 = vmatprep.subr.bf16.mxu0 0
    %1785 = vmatpush1.bf16.msra.mxu0 0
    %1786 = vmatprep.subr.bf16.mxu0 0
    %1787 = vmatpush1.bf16.msra.mxu0 0
    %1788 = vmatprep.subr.bf16.mxu0 0
    %1789 = vmatpush1.bf16.msra.mxu0 0
    %1790 = vmatprep.subr.bf16.mxu0 0
    %1791 = vmatpush1.bf16.msra.mxu0 0
    %1792 = vmatprep.subr.bf16.mxu0 0
    %1793 = vmatpush1.bf16.msra.mxu0 0
    %1794 = vmatprep.subr.bf16.mxu0 0
    %1795 = vmatpush1.bf16.msra.mxu0 0
    %1796 = vmatprep.subr.bf16.mxu0 0
    %1797 = vmatpush1.bf16.msra.mxu0 %v1781
    %1798 = vmatprep.subr.bf16.mxu0 0
    %1799 = vmatpush2.bf16.msra.mxu0 0
    %1800 = vmatprep.subr.bf16.mxu0 0
    %1801 = vmatpush2.bf16.msra.mxu0 0
    %1802 = vmatprep.subr.bf16.mxu0 0
    %1803 = vmatpush2.bf16.msra.mxu0 0
    %1804 = vmatprep.subr.bf16.mxu0 0
    %1805 = vmatpush2.bf16.msra.mxu0 0
    %1806 = vmatprep.subr.bf16.mxu0 0
    %1807 = vmatpush2.bf16.msra.mxu0 0
    %1808 = vmatprep.subr.bf16.mxu0 0
    %1809 = vmatpush2.bf16.msra.mxu0 0
    %1810 = vmatprep.subr.bf16.mxu0 0
    %1811 = vmatpush2.bf16.msra.mxu0 0
    %1812 = vmatprep.subr.bf16.mxu0 0
    %1813 = vmatpush2.bf16.msra.mxu0 0
    %1814 = vmatprep.mubr.bf16.mxu0 0
    %1815 = vmatmul.mubr.bf16.gmra.mxu0 %v830
    %v1816 = vpop.f32.mrf.mxu0
    %v1817 = vadd.f32 0.0, %v1816
    %v1818 = vpop.f32.mrf.mxu0
    %v1819 = vpop.f32.mrf.mxu0
    %v1820 = vpop.f32.mrf.mxu0
    %1821 = vdwg.mxu0
    %v1822 = vpack.c.bf16 %v1817, %v1817
    %v1823 = vld [vmem:[#allocation25] sm:$0xf]
    %v1824 = vld [vmem:[#allocation25 + $0x4] sm:$0xf]
    %v1825 = vld [vmem:[#allocation25 + $0x8] sm:$0xf]
    %v1826 = vld [vmem:[#allocation25 + $0xc] sm:$0xf]
    %v1827 = vld [vmem:[#allocation28] sm:$0x1]
    %v1829 = vlaneseq
    %v1830 = vshrl.u32 %v1829, 7
    %v1831 = vsub.s32 0, %v1830
    %v1832 = vrot.slane %v1827, %v1831
    %v1838 = vunpack.c.l.b16 %v1823
    %v1839 = vunpack.c.l.b16 %v1824
    %v1840 = vunpack.c.l.b16 %v1825
    %v1841 = vunpack.c.l.b16 %v1826
    %v1842 = vpack.c.b16 %v1839, %v1838
    %v1843 = vpack.c.b16 %v1841, %v1840
    %v1847 = vsel %vm371, %v1822, 0
    %1849 = vmatprep.subr.bf16.mxu0 0
    %1850 = vmatpush1.bf16.msra.mxu0 0
    %1851 = vmatprep.subr.bf16.mxu0 0
    %1852 = vmatpush1.bf16.msra.mxu0 0
    %1853 = vmatprep.subr.bf16.mxu0 0
    %1854 = vmatpush1.bf16.msra.mxu0 0
    %1855 = vmatprep.subr.bf16.mxu0 0
    %1856 = vmatpush1.bf16.msra.mxu0 0
    %1857 = vmatprep.subr.bf16.mxu0 0
    %1858 = vmatpush1.bf16.msra.mxu0 0
    %1859 = vmatprep.subr.bf16.mxu0 0
    %1860 = vmatpush1.bf16.msra.mxu0 0
    %1861 = vmatprep.subr.bf16.mxu0 0
    %1862 = vmatpush1.bf16.msra.mxu0 %v1843
    %1863 = vmatprep.subr.bf16.mxu0 0
    %1864 = vmatpush1.bf16.msra.mxu0 %v1842
    %1865 = vmatprep.subr.bf16.mxu0 0
    %1866 = vmatpush2.bf16.msra.mxu0 0
    %1867 = vmatprep.subr.bf16.mxu0 0
    %1868 = vmatpush2.bf16.msra.mxu0 0
    %1869 = vmatprep.subr.bf16.mxu0 0
    %1870 = vmatpush2.bf16.msra.mxu0 0
    %1871 = vmatprep.subr.bf16.mxu0 0
    %1872 = vmatpush2.bf16.msra.mxu0 0
    %1873 = vmatprep.subr.bf16.mxu0 0
    %1874 = vmatpush2.bf16.msra.mxu0 0
    %1875 = vmatprep.subr.bf16.mxu0 0
    %1876 = vmatpush2.bf16.msra.mxu0 0
    %1877 = vmatprep.subr.bf16.mxu0 0
    %1878 = vmatpush2.bf16.msra.mxu0 0
    %1879 = vmatprep.subr.bf16.mxu0 0
    %1880 = vmatpush2.bf16.msra.mxu0 0
    %1881 = vmatprep.mubr.bf16.mxu0 0
    %1882 = vmatmul.mubr.bf16.gmra.mxu0 %v1847
    %v1883 = vpop.f32.mrf.mxu0
    %v1884 = vadd.f32 %v1832, %v1883
    %v1885 = vpop.f32.mrf.mxu0
    %v1886 = vpop.f32.mrf.mxu0
    %v1887 = vpop.f32.mrf.mxu0
    %1888 = vdwg.mxu0
    %v1889 = vld [vmem:[#allocation26] sm:$0xf]
    %v1890 = vld [vmem:[#allocation26 + $0x4] sm:$0xf]
    %v1891 = vld [vmem:[#allocation26 + $0x8] sm:$0xf]
    %v1892 = vld [vmem:[#allocation26 + $0xc] sm:$0xf]
    %v1893 = vld [vmem:[#allocation29] sm:$0x1]
    %v1895 = vlaneseq
    %v1896 = vshrl.u32 %v1895, 7
    %v1897 = vsub.s32 0, %v1896
    %v1898 = vrot.slane %v1893, %v1897
    %v1904 = vunpack.c.l.b16 %v1889
    %v1905 = vunpack.c.l.b16 %v1890
    %v1906 = vunpack.c.l.b16 %v1891
    %v1907 = vunpack.c.l.b16 %v1892
    %v1908 = vpack.c.b16 %v1905, %v1904
    %v1909 = vpack.c.b16 %v1907, %v1906
    %1912 = vmatprep.subr.bf16.mxu0 0
    %1913 = vmatpush1.bf16.msra.mxu0 0
    %1914 = vmatprep.subr.bf16.mxu0 0
    %1915 = vmatpush1.bf16.msra.mxu0 0
    %1916 = vmatprep.subr.bf16.mxu0 0
    %1917 = vmatpush1.bf16.msra.mxu0 0
    %1918 = vmatprep.subr.bf16.mxu0 0
    %1919 = vmatpush1.bf16.msra.mxu0 0
    %1920 = vmatprep.subr.bf16.mxu0 0
    %1921 = vmatpush1.bf16.msra.mxu0 0
    %1922 = vmatprep.subr.bf16.mxu0 0
    %1923 = vmatpush1.bf16.msra.mxu0 0
    %1924 = vmatprep.subr.bf16.mxu0 0
    %1925 = vmatpush1.bf16.msra.mxu0 %v1909
    %1926 = vmatprep.subr.bf16.mxu0 0
    %1927 = vmatpush1.bf16.msra.mxu0 %v1908
    %1928 = vmatprep.subr.bf16.mxu0 0
    %1929 = vmatpush2.bf16.msra.mxu0 0
    %1930 = vmatprep.subr.bf16.mxu0 0
    %1931 = vmatpush2.bf16.msra.mxu0 0
    %1932 = vmatprep.subr.bf16.mxu0 0
    %1933 = vmatpush2.bf16.msra.mxu0 0
    %1934 = vmatprep.subr.bf16.mxu0 0
    %1935 = vmatpush2.bf16.msra.mxu0 0
    %1936 = vmatprep.subr.bf16.mxu0 0
    %1937 = vmatpush2.bf16.msra.mxu0 0
    %1938 = vmatprep.subr.bf16.mxu0 0
    %1939 = vmatpush2.bf16.msra.mxu0 0
    %1940 = vmatprep.subr.bf16.mxu0 0
    %1941 = vmatpush2.bf16.msra.mxu0 0
    %1942 = vmatprep.subr.bf16.mxu0 0
    %1943 = vmatpush2.bf16.msra.mxu0 0
    %1944 = vmatprep.mubr.bf16.mxu0 0
    %1945 = vmatmul.mubr.bf16.gmra.mxu0 %v1523
    %v1946 = vpop.f32.mrf.mxu0
    %v1947 = vadd.f32 %v1898, %v1946
    %v1948 = vpop.f32.mrf.mxu0
    %v1949 = vpop.f32.mrf.mxu0
    %v1950 = vpop.f32.mrf.mxu0
    %1951 = vdwg.mxu0
    %v1952 = vadd.f32 %v1884, %v1947
    %v1953 = vxor.u32 %v1952, 2147483648
    %v1954 = vmul.f32 %v1953, 1.442695
    %v1955 = vpow.pop %v1954
    %v1956 = vadd.f32 %v1955, 1.0
    %v1957 = vrcp.pop %v1956
    %v1958 = vmul.f32 1.0, %v1957
    %1960 = vrot.lane.b32.xlu0 %v1947, 64
    %v1961 = vpop.permute.xlu0 %1960
    %v1963 = vmul.f32 %v1958, %v1961
    %1965 = vrot.lane.b32.xlu0 %v1963, 64
    %v1966 = vpop.permute.xlu0 %1965
    %v1968 = vadd.f32 %v1884, %v1966
    %v1969 = vtanh.pop %v1968
    %v1970 = vsub.f32 1.0, %v1958
    %1972 = vrot.lane.b32.xlu0 %v1969, 96
    %v1973 = vpop.permute.xlu0 %1972
    %v1975 = vmul.f32 %v1970, %v1973
    %v1976 = vmul.f32 %v1958, %v1031
    %v1977 = vadd.f32 %v1975, %v1976
    %1979 = vrot.lane.b32.xlu0 %v1977, 96
    %v1980 = vpop.permute.xlu0 %1979
    %s1982 = scalar_lea.vmem [#allocation35], 16
    %1983 = vst.msk [vmem:[%s1982] sm:$0xff] %vm371, %v1980
    %v1984 = vpack.c.bf16 %v1628, %v1628
    %v1986 = vsel %vm1043, %v1984, 0
    %1988 = vmatprep.subr.bf16.mxu0 0
    %1989 = vmatpush1.bf16.msra.mxu0 0
    %1990 = vmatprep.subr.bf16.mxu0 0
    %1991 = vmatpush1.bf16.msra.mxu0 0
    %1992 = vmatprep.subr.bf16.mxu0 0
    %1993 = vmatpush1.bf16.msra.mxu0 0
    %1994 = vmatprep.subr.bf16.mxu0 0
    %1995 = vmatpush1.bf16.msra.mxu0 0
    %1996 = vmatprep.subr.bf16.mxu0 0
    %1997 = vmatpush1.bf16.msra.mxu0 0
    %1998 = vmatprep.subr.bf16.mxu0 0
    %1999 = vmatpush1.bf16.msra.mxu0 0
    %2000 = vmatprep.subr.bf16.mxu0 0
    %2001 = vmatpush1.bf16.msra.mxu0 0
    %2002 = vmatprep.subr.bf16.mxu0 0
    %2003 = vmatpush1.bf16.msra.mxu0 %v1986
    %2004 = vmatprep.subr.bf16.mxu0 0
    %2005 = vmatpush2.bf16.msra.mxu0 0
    %2006 = vmatprep.subr.bf16.mxu0 0
    %2007 = vmatpush2.bf16.msra.mxu0 0
    %2008 = vmatprep.subr.bf16.mxu0 0
    %2009 = vmatpush2.bf16.msra.mxu0 0
    %2010 = vmatprep.subr.bf16.mxu0 0
    %2011 = vmatpush2.bf16.msra.mxu0 0
    %2012 = vmatprep.subr.bf16.mxu0 0
    %2013 = vmatpush2.bf16.msra.mxu0 0
    %2014 = vmatprep.subr.bf16.mxu0 0
    %2015 = vmatpush2.bf16.msra.mxu0 0
    %2016 = vmatprep.subr.bf16.mxu0 0
    %2017 = vmatpush2.bf16.msra.mxu0 0
    %2018 = vmatprep.subr.bf16.mxu0 0
    %2019 = vmatpush2.bf16.msra.mxu0 0
    %2020 = vmatprep.mubr.bf16.mxu0 0
    %2021 = vmatmul.mubr.bf16.gmra.mxu0 %v1041
    %v2022 = vpop.f32.mrf.mxu0
    %v2023 = vadd.f32 0.0, %v2022
    %v2024 = vpop.f32.mrf.mxu0
    %v2025 = vpop.f32.mrf.mxu0
    %v2026 = vadd.f32 0.0, %v2025
    %v2027 = vpop.f32.mrf.mxu0
    %2028 = vdwg.mxu0
    %v2029 = vpack.c.bf16 %v2026, %v2023
    %v2030 = vld [vmem:[%s19] sm:$0xf]
    %v2031 = vld [vmem:[%s19 + $0x4] sm:$0xf]
    %v2032 = vld [vmem:[%s19 + $0x8] sm:$0xf]
    %v2033 = vld [vmem:[%s19 + $0xc] sm:$0xf]
    %v2034 = vpack.c.bf16 %v1778, %v1775
    %v2035 = vld [vmem:[#allocation31] sm:$0xf]
    %v2036 = vld [vmem:[#allocation31 + $0x4] sm:$0xf]
    %v2037 = vld [vmem:[#allocation31 + $0x8] sm:$0xf]
    %v2038 = vld [vmem:[#allocation31 + $0xc] sm:$0xf]
    %v2043 = vunpack.c.l.b16 %v2035
    %v2044 = vunpack.c.l.b16 %v2036
    %v2045 = vunpack.c.l.b16 %v2037
    %v2046 = vunpack.c.l.b16 %v2038
    %v2047 = vpack.c.b16 %v2044, %v2043
    %v2048 = vpack.c.b16 %v2046, %v2045
    %v2052 = vsel %vm371, %v2034, 0
    %2054 = vmatprep.subr.bf16.mxu0 0
    %2055 = vmatpush1.bf16.msra.mxu0 0
    %2056 = vmatprep.subr.bf16.mxu0 0
    %2057 = vmatpush1.bf16.msra.mxu0 0
    %2058 = vmatprep.subr.bf16.mxu0 0
    %2059 = vmatpush1.bf16.msra.mxu0 0
    %2060 = vmatprep.subr.bf16.mxu0 0
    %2061 = vmatpush1.bf16.msra.mxu0 0
    %2062 = vmatprep.subr.bf16.mxu0 0
    %2063 = vmatpush1.bf16.msra.mxu0 0
    %2064 = vmatprep.subr.bf16.mxu0 0
    %2065 = vmatpush1.bf16.msra.mxu0 0
    %2066 = vmatprep.subr.bf16.mxu0 0
    %2067 = vmatpush1.bf16.msra.mxu0 %v2048
    %2068 = vmatprep.subr.bf16.mxu0 0
    %2069 = vmatpush1.bf16.msra.mxu0 %v2047
    %2070 = vmatprep.subr.bf16.mxu0 0
    %2071 = vmatpush2.bf16.msra.mxu0 0
    %2072 = vmatprep.subr.bf16.mxu0 0
    %2073 = vmatpush2.bf16.msra.mxu0 0
    %2074 = vmatprep.subr.bf16.mxu0 0
    %2075 = vmatpush2.bf16.msra.mxu0 0
    %2076 = vmatprep.subr.bf16.mxu0 0
    %2077 = vmatpush2.bf16.msra.mxu0 0
    %2078 = vmatprep.subr.bf16.mxu0 0
    %2079 = vmatpush2.bf16.msra.mxu0 0
    %2080 = vmatprep.subr.bf16.mxu0 0
    %2081 = vmatpush2.bf16.msra.mxu0 0
    %2082 = vmatprep.subr.bf16.mxu0 0
    %2083 = vmatpush2.bf16.msra.mxu0 0
    %2084 = vmatprep.subr.bf16.mxu0 0
    %2085 = vmatpush2.bf16.msra.mxu0 0
    %2086 = vmatprep.mubr.bf16.mxu0 0
    %2087 = vmatmul.mubr.bf16.gmra.mxu0 %v2052
    %v2088 = vpop.f32.mrf.mxu0
    %v2089 = vadd.f32 0.0, %v2088
    %v2090 = vpop.f32.mrf.mxu0
    %v2091 = vpop.f32.mrf.mxu0
    %v2092 = vadd.f32 0.0, %v2091
    %v2093 = vpop.f32.mrf.mxu0
    %2094 = vdwg.mxu0
    %v2099 = vunpack.c.l.b16 %v2030
    %v2100 = vunpack.c.l.b16 %v2031
    %v2101 = vunpack.c.l.b16 %v2032
    %v2102 = vunpack.c.l.b16 %v2033
    %v2103 = vpack.c.b16 %v2100, %v2099
    %v2104 = vpack.c.b16 %v2102, %v2101
    %v2108 = vsel %vm371, %v2029, 0
    %2110 = vmatprep.subr.bf16.mxu0 0
    %2111 = vmatpush1.bf16.msra.mxu0 0
    %2112 = vmatprep.subr.bf16.mxu0 0
    %2113 = vmatpush1.bf16.msra.mxu0 0
    %2114 = vmatprep.subr.bf16.mxu0 0
    %2115 = vmatpush1.bf16.msra.mxu0 0
    %2116 = vmatprep.subr.bf16.mxu0 0
    %2117 = vmatpush1.bf16.msra.mxu0 0
    %2118 = vmatprep.subr.bf16.mxu0 0
    %2119 = vmatpush1.bf16.msra.mxu0 0
    %2120 = vmatprep.subr.bf16.mxu0 0
    %2121 = vmatpush1.bf16.msra.mxu0 0
    %2122 = vmatprep.subr.bf16.mxu0 0
    %2123 = vmatpush1.bf16.msra.mxu0 %v2104
    %2124 = vmatprep.subr.bf16.mxu0 0
    %2125 = vmatpush1.bf16.msra.mxu0 %v2103
    %2126 = vmatprep.subr.bf16.mxu0 0
    %2127 = vmatpush2.bf16.msra.mxu0 0
    %2128 = vmatprep.subr.bf16.mxu0 0
    %2129 = vmatpush2.bf16.msra.mxu0 0
    %2130 = vmatprep.subr.bf16.mxu0 0
    %2131 = vmatpush2.bf16.msra.mxu0 0
    %2132 = vmatprep.subr.bf16.mxu0 0
    %2133 = vmatpush2.bf16.msra.mxu0 0
    %2134 = vmatprep.subr.bf16.mxu0 0
    %2135 = vmatpush2.bf16.msra.mxu0 0
    %2136 = vmatprep.subr.bf16.mxu0 0
    %2137 = vmatpush2.bf16.msra.mxu0 0
    %2138 = vmatprep.subr.bf16.mxu0 0
    %2139 = vmatpush2.bf16.msra.mxu0 0
    %2140 = vmatprep.subr.bf16.mxu0 0
    %2141 = vmatpush2.bf16.msra.mxu0 0
    %2142 = vmatprep.mubr.bf16.mxu0 0
    %2143 = vmatmul.mubr.bf16.gmra.mxu0 %v2108
    %v2144 = vpop.f32.mrf.mxu0
    %v2145 = vadd.f32 %v2089, %v2144
    %v2146 = vpop.f32.mrf.mxu0
    %v2147 = vpop.f32.mrf.mxu0
    %v2148 = vadd.f32 %v2092, %v2147
    %v2149 = vpop.f32.mrf.mxu0
    %2150 = vdwg.mxu0
    %v2151 = vld [vmem:[%s22] sm:$0x1]
    %v2153 = vlaneseq
    %v2154 = vshrl.u32 %v2153, 7
    %v2155 = vsub.s32 0, %v2154
    %v2156 = vrot.slane %v2151, %v2155
    %v2158 = vadd.f32 %v2145, %v2156
    %v2159 = vadd.f32 %v2148, %v2156
    %v2160 = vld [vmem:[#allocation32] sm:$0xf]
    %v2161 = vld [vmem:[#allocation32 + $0x4] sm:$0xf]
    %v2162 = vld [vmem:[#allocation32 + $0x8] sm:$0xf]
    %v2163 = vld [vmem:[#allocation32 + $0xc] sm:$0xf]
    %v2164 = vld [vmem:[%s23] sm:$0x1]
    %v2166 = vlaneseq
    %v2167 = vshrl.u32 %v2166, 7
    %v2168 = vsub.s32 0, %v2167
    %v2169 = vrot.slane %v2164, %v2168
    %v2175 = vunpack.c.l.b16 %v2160
    %v2176 = vunpack.c.l.b16 %v2161
    %v2177 = vunpack.c.l.b16 %v2162
    %v2178 = vunpack.c.l.b16 %v2163
    %v2179 = vpack.c.b16 %v2176, %v2175
    %v2180 = vpack.c.b16 %v2178, %v2177
    %2183 = vmatprep.subr.bf16.mxu0 0
    %2184 = vmatpush1.bf16.msra.mxu0 0
    %2185 = vmatprep.subr.bf16.mxu0 0
    %2186 = vmatpush1.bf16.msra.mxu0 0
    %2187 = vmatprep.subr.bf16.mxu0 0
    %2188 = vmatpush1.bf16.msra.mxu0 0
    %2189 = vmatprep.subr.bf16.mxu0 0
    %2190 = vmatpush1.bf16.msra.mxu0 0
    %2191 = vmatprep.subr.bf16.mxu0 0
    %2192 = vmatpush1.bf16.msra.mxu0 0
    %2193 = vmatprep.subr.bf16.mxu0 0
    %2194 = vmatpush1.bf16.msra.mxu0 0
    %2195 = vmatprep.subr.bf16.mxu0 0
    %2196 = vmatpush1.bf16.msra.mxu0 %v2180
    %2197 = vmatprep.subr.bf16.mxu0 0
    %2198 = vmatpush1.bf16.msra.mxu0 %v2179
    %2199 = vmatprep.subr.bf16.mxu0 0
    %2200 = vmatpush2.bf16.msra.mxu0 0
    %2201 = vmatprep.subr.bf16.mxu0 0
    %2202 = vmatpush2.bf16.msra.mxu0 0
    %2203 = vmatprep.subr.bf16.mxu0 0
    %2204 = vmatpush2.bf16.msra.mxu0 0
    %2205 = vmatprep.subr.bf16.mxu0 0
    %2206 = vmatpush2.bf16.msra.mxu0 0
    %2207 = vmatprep.subr.bf16.mxu0 0
    %2208 = vmatpush2.bf16.msra.mxu0 0
    %2209 = vmatprep.subr.bf16.mxu0 0
    %2210 = vmatpush2.bf16.msra.mxu0 0
    %2211 = vmatprep.subr.bf16.mxu0 0
    %2212 = vmatpush2.bf16.msra.mxu0 0
    %2213 = vmatprep.subr.bf16.mxu0 0
    %2214 = vmatpush2.bf16.msra.mxu0 0
    %2215 = vmatprep.mubr.bf16.mxu0 0
    %2216 = vmatmul.mubr.bf16.gmra.mxu0 %v1382
    %v2217 = vpop.f32.mrf.mxu0
    %v2218 = vadd.f32 %v2169, %v2217
    %v2219 = vpop.f32.mrf.mxu0
    %v2220 = vpop.f32.mrf.mxu0
    %v2221 = vadd.f32 %v2169, %v2220
    %v2222 = vpop.f32.mrf.mxu0
    %2223 = vdwg.mxu0
    %v2224 = vadd.f32 %v2158, %v2218
    %v2225 = vadd.f32 %v2159, %v2221
    %v2226 = vxor.u32 %v2224, 2147483648
    %v2227 = vxor.u32 %v2225, 2147483648
    %v2228 = vmul.f32 %v2226, 1.442695
    %v2229 = vpow.pop %v2228
    %v2230 = vmul.f32 %v2227, 1.442695
    %v2231 = vpow.pop %v2230
    %v2232 = vadd.f32 %v2229, 1.0
    %v2233 = vadd.f32 %v2231, 1.0
    %v2234 = vrcp.pop %v2232
    %v2235 = vmul.f32 1.0, %v2234
    %v2236 = vrcp.pop %v2233
    %v2237 = vmul.f32 1.0, %v2236
    %2240 = vrot.lane.b32.xlu0 %v2218, 64
    %v2241 = vpop.permute.xlu0 %2240
    %2242 = vrot.lane.b32.xlu0 %v2221, 64
    %v2243 = vpop.permute.xlu0 %2242
    %v2246 = vmul.f32 %v2235, %v2241
    %v2247 = vmul.f32 %v2237, %v2243
    %2250 = vrot.lane.b32.xlu0 %v2246, 64
    %v2251 = vpop.permute.xlu0 %2250
    %2252 = vrot.lane.b32.xlu0 %v2247, 64
    %v2253 = vpop.permute.xlu0 %2252
    %v2256 = vadd.f32 %v2158, %v2251
    %v2257 = vadd.f32 %v2159, %v2253
    %v2258 = vtanh.pop %v2256
    %v2259 = vtanh.pop %v2257
    %v2260 = vsub.f32 1.0, %v2235
    %v2261 = vsub.f32 1.0, %v2237
    %2264 = vrot.lane.b32.xlu0 %v2258, 96
    %v2265 = vpop.permute.xlu0 %2264
    %2266 = vrot.lane.b32.xlu0 %v2259, 96
    %v2267 = vpop.permute.xlu0 %2266
    %v2270 = vmul.f32 %v2260, %v2265
    %v2271 = vmul.f32 %v2261, %v2267
    %v2272 = vmul.f32 %v2235, %v1341
    %v2273 = vmul.f32 %v2237, %v1342
    %v2274 = vadd.f32 %v2270, %v2272
    %v2275 = vadd.f32 %v2271, %v2273
    %2278 = vrot.lane.b32.xlu0 %v2274, 96
    %v2279 = vpop.permute.xlu0 %2278
    %2280 = vrot.lane.b32.xlu0 %v2275, 96
    %v2281 = vpop.permute.xlu0 %2280
    %s2284 = scalar_lea.vmem [#allocation34], 32
    %2285 = vst.msk [vmem:[%s2284] sm:$0xff] %vm371, %v2279
    %2286 = vst.msk [vmem:[%s2284 + $0x8] sm:$0xff] %vm371, %v2281
    %v2287 = vpack.c.bf16 %v2275, %v2274
    %v2288 = vld [vmem:[#allocation8] sm:$0xf]
    %v2289 = vld [vmem:[#allocation8 + $0x4] sm:$0xf]
    %v2290 = vld [vmem:[#allocation8 + $0x8] sm:$0xf]
    %v2291 = vld [vmem:[#allocation8 + $0xc] sm:$0xf]
    %v2292 = vld [vmem:[#allocation10] sm:$0x1]
    %v2294 = vlaneseq
    %v2295 = vshrl.u32 %v2294, 7
    %v2296 = vsub.s32 0, %v2295
    %v2297 = vrot.slane %v2292, %v2296
    %2300 = vrot.lane.b32.xlu0 %v2287, 96
    %v2301 = vpop.permute.xlu0 %2300
    %v2306 = vunpack.c.l.b16 %v2288
    %v2307 = vunpack.c.l.b16 %v2289
    %v2308 = vunpack.c.l.b16 %v2290
    %v2309 = vunpack.c.l.b16 %v2291
    %v2310 = vpack.c.b16 %v2307, %v2306
    %v2311 = vpack.c.b16 %v2309, %v2308
    %v2315 = vsel %vm371, %v2301, 0
    %2317 = vmatprep.subr.bf16.mxu0 0
    %2318 = vmatpush1.bf16.msra.mxu0 0
    %2319 = vmatprep.subr.bf16.mxu0 0
    %2320 = vmatpush1.bf16.msra.mxu0 0
    %2321 = vmatprep.subr.bf16.mxu0 0
    %2322 = vmatpush1.bf16.msra.mxu0 0
    %2323 = vmatprep.subr.bf16.mxu0 0
    %2324 = vmatpush1.bf16.msra.mxu0 0
    %2325 = vmatprep.subr.bf16.mxu0 0
    %2326 = vmatpush1.bf16.msra.mxu0 0
    %2327 = vmatprep.subr.bf16.mxu0 0
    %2328 = vmatpush1.bf16.msra.mxu0 0
    %2329 = vmatprep.subr.bf16.mxu0 0
    %2330 = vmatpush1.bf16.msra.mxu0 %v2311
    %2331 = vmatprep.subr.bf16.mxu0 0
    %2332 = vmatpush1.bf16.msra.mxu0 %v2310
    %2333 = vmatprep.subr.bf16.mxu0 0
    %2334 = vmatpush2.bf16.msra.mxu0 0
    %2335 = vmatprep.subr.bf16.mxu0 0
    %2336 = vmatpush2.bf16.msra.mxu0 0
    %2337 = vmatprep.subr.bf16.mxu0 0
    %2338 = vmatpush2.bf16.msra.mxu0 0
    %2339 = vmatprep.subr.bf16.mxu0 0
    %2340 = vmatpush2.bf16.msra.mxu0 0
    %2341 = vmatprep.subr.bf16.mxu0 0
    %2342 = vmatpush2.bf16.msra.mxu0 0
    %2343 = vmatprep.subr.bf16.mxu0 0
    %2344 = vmatpush2.bf16.msra.mxu0 0
    %2345 = vmatprep.subr.bf16.mxu0 0
    %2346 = vmatpush2.bf16.msra.mxu0 0
    %2347 = vmatprep.subr.bf16.mxu0 0
    %2348 = vmatpush2.bf16.msra.mxu0 0
    %2349 = vmatprep.mubr.bf16.mxu0 0
    %2350 = vmatmul.mubr.bf16.gmra.mxu0 %v2315
    %v2351 = vpop.f32.mrf.mxu0
    %v2352 = vadd.f32 %v2297, %v2351
    %v2353 = vpop.f32.mrf.mxu0
    %v2354 = vpop.f32.mrf.mxu0
    %v2355 = vadd.f32 %v2297, %v2354
    %v2356 = vpop.f32.mrf.mxu0
    %2357 = vdwg.mxu0
    %v2358 = vmax.f32 %v2352, 0.0
    %v2359 = vmax.f32 %v2355, 0.0
    %v2360 = vpack.c.bf16 %v2359, %v2358
    %v2361 = vld [vmem:[#allocation11] sm:$0xf]
    %v2362 = vld [vmem:[#allocation11 + $0x4] sm:$0xf]
    %v2363 = vld [vmem:[#allocation11 + $0x8] sm:$0xf]
    %v2364 = vld [vmem:[#allocation11 + $0xc] sm:$0xf]
    %v2365 = vld [vmem:[#allocation13] sm:$0x1]
    %v2367 = vlaneseq
    %v2368 = vshrl.u32 %v2367, 7
    %v2369 = vsub.s32 0, %v2368
    %v2370 = vrot.slane %v2365, %v2369
    %v2376 = vunpack.c.l.b16 %v2361
    %v2377 = vunpack.c.l.b16 %v2362
    %v2378 = vunpack.c.l.b16 %v2363
    %v2379 = vunpack.c.l.b16 %v2364
    %v2380 = vpack.c.b16 %v2377, %v2376
    %v2381 = vpack.c.b16 %v2379, %v2378
    %v2385 = vsel %vm371, %v2360, 0
    %2387 = vmatprep.subr.bf16.mxu0 0
    %2388 = vmatpush1.bf16.msra.mxu0 0
    %2389 = vmatprep.subr.bf16.mxu0 0
    %2390 = vmatpush1.bf16.msra.mxu0 0
    %2391 = vmatprep.subr.bf16.mxu0 0
    %2392 = vmatpush1.bf16.msra.mxu0 0
    %2393 = vmatprep.subr.bf16.mxu0 0
    %2394 = vmatpush1.bf16.msra.mxu0 0
    %2395 = vmatprep.subr.bf16.mxu0 0
    %2396 = vmatpush1.bf16.msra.mxu0 0
    %2397 = vmatprep.subr.bf16.mxu0 0
    %2398 = vmatpush1.bf16.msra.mxu0 0
    %2399 = vmatprep.subr.bf16.mxu0 0
    %2400 = vmatpush1.bf16.msra.mxu0 %v2381
    %2401 = vmatprep.subr.bf16.mxu0 0
    %2402 = vmatpush1.bf16.msra.mxu0 %v2380
    %2403 = vmatprep.subr.bf16.mxu0 0
    %2404 = vmatpush2.bf16.msra.mxu0 0
    %2405 = vmatprep.subr.bf16.mxu0 0
    %2406 = vmatpush2.bf16.msra.mxu0 0
    %2407 = vmatprep.subr.bf16.mxu0 0
    %2408 = vmatpush2.bf16.msra.mxu0 0
    %2409 = vmatprep.subr.bf16.mxu0 0
    %2410 = vmatpush2.bf16.msra.mxu0 0
    %2411 = vmatprep.subr.bf16.mxu0 0
    %2412 = vmatpush2.bf16.msra.mxu0 0
    %2413 = vmatprep.subr.bf16.mxu0 0
    %2414 = vmatpush2.bf16.msra.mxu0 0
    %2415 = vmatprep.subr.bf16.mxu0 0
    %2416 = vmatpush2.bf16.msra.mxu0 0
    %2417 = vmatprep.subr.bf16.mxu0 0
    %2418 = vmatpush2.bf16.msra.mxu0 0
    %2419 = vmatprep.mubr.bf16.mxu0 0
    %2420 = vmatmul.mubr.bf16.gmra.mxu0 %v2385
    %v2421 = vpop.f32.mrf.mxu0
    %v2422 = vadd.f32 %v2370, %v2421
    %v2423 = vpop.f32.mrf.mxu0
    %v2424 = vpop.f32.mrf.mxu0
    %v2425 = vadd.f32 %v2370, %v2424
    %v2426 = vpop.f32.mrf.mxu0
    %2427 = vdwg.mxu0
    %v2428 = vpack.c.bf16 %v1977, %v1977
    %v2429 = vld [vmem:[#allocation14] sm:$0xf]
    %v2430 = vld [vmem:[#allocation14 + $0x4] sm:$0xf]
    %v2431 = vld [vmem:[#allocation14 + $0x8] sm:$0xf]
    %v2432 = vld [vmem:[#allocation14 + $0xc] sm:$0xf]
    %v2433 = vld [vmem:[#allocation16] sm:$0x1]
    %v2435 = vlaneseq
    %v2436 = vshrl.u32 %v2435, 7
    %v2437 = vsub.s32 0, %v2436
    %v2438 = vrot.slane %v2433, %v2437
    %2441 = vrot.lane.b32.xlu0 %v2428, 96
    %v2442 = vpop.permute.xlu0 %2441
    %v2447 = vunpack.c.l.b16 %v2429
    %v2448 = vunpack.c.l.b16 %v2430
    %v2449 = vunpack.c.l.b16 %v2431
    %v2450 = vunpack.c.l.b16 %v2432
    %v2451 = vpack.c.b16 %v2448, %v2447
    %v2452 = vpack.c.b16 %v2450, %v2449
    %v2456 = vsel %vm371, %v2442, 0
    %2458 = vmatprep.subr.bf16.mxu0 0
    %2459 = vmatpush1.bf16.msra.mxu0 0
    %2460 = vmatprep.subr.bf16.mxu0 0
    %2461 = vmatpush1.bf16.msra.mxu0 0
    %2462 = vmatprep.subr.bf16.mxu0 0
    %2463 = vmatpush1.bf16.msra.mxu0 0
    %2464 = vmatprep.subr.bf16.mxu0 0
    %2465 = vmatpush1.bf16.msra.mxu0 0
    %2466 = vmatprep.subr.bf16.mxu0 0
    %2467 = vmatpush1.bf16.msra.mxu0 0
    %2468 = vmatprep.subr.bf16.mxu0 0
    %2469 = vmatpush1.bf16.msra.mxu0 0
    %2470 = vmatprep.subr.bf16.mxu0 0
    %2471 = vmatpush1.bf16.msra.mxu0 %v2452
    %2472 = vmatprep.subr.bf16.mxu0 0
    %2473 = vmatpush1.bf16.msra.mxu0 %v2451
    %2474 = vmatprep.subr.bf16.mxu0 0
    %2475 = vmatpush2.bf16.msra.mxu0 0
    %2476 = vmatprep.subr.bf16.mxu0 0
    %2477 = vmatpush2.bf16.msra.mxu0 0
    %2478 = vmatprep.subr.bf16.mxu0 0
    %2479 = vmatpush2.bf16.msra.mxu0 0
    %2480 = vmatprep.subr.bf16.mxu0 0
    %2481 = vmatpush2.bf16.msra.mxu0 0
    %2482 = vmatprep.subr.bf16.mxu0 0
    %2483 = vmatpush2.bf16.msra.mxu0 0
    %2484 = vmatprep.subr.bf16.mxu0 0
    %2485 = vmatpush2.bf16.msra.mxu0 0
    %2486 = vmatprep.subr.bf16.mxu0 0
    %2487 = vmatpush2.bf16.msra.mxu0 0
    %2488 = vmatprep.subr.bf16.mxu0 0
    %2489 = vmatpush2.bf16.msra.mxu0 0
    %2490 = vmatprep.mubr.bf16.mxu0 0
    %2491 = vmatmul.mubr.bf16.gmra.mxu0 %v2456
    %v2492 = vpop.f32.mrf.mxu0
    %v2493 = vadd.f32 %v2438, %v2492
    %v2494 = vpop.f32.mrf.mxu0
    %v2495 = vpop.f32.mrf.mxu0
    %v2496 = vpop.f32.mrf.mxu0
    %2497 = vdwg.mxu0
    %v2498 = vmax.f32 %v2493, 0.0
    %v2499 = vpack.c.bf16 %v2498, %v2498
    %v2500 = vld [vmem:[%s9] sm:$0xf]
    %v2501 = vld [vmem:[%s9 + $0x4] sm:$0xf]
    %v2502 = vld [vmem:[%s9 + $0x8] sm:$0xf]
    %v2503 = vld [vmem:[%s9 + $0xc] sm:$0xf]
    %v2504 = vld [vmem:[#allocation17] sm:$0x1]
    %v2506 = vlaneseq
    %v2507 = vshrl.u32 %v2506, 7
    %v2508 = vsub.s32 0, %v2507
    %v2509 = vrot.slane %v2504, %v2508
    %v2515 = vunpack.c.l.b16 %v2500
    %v2516 = vunpack.c.l.b16 %v2501
    %v2517 = vunpack.c.l.b16 %v2502
    %v2518 = vunpack.c.l.b16 %v2503
    %v2519 = vpack.c.b16 %v2516, %v2515
    %v2520 = vpack.c.b16 %v2518, %v2517
    %v2524 = vsel %vm371, %v2499, 0
    %2526 = vmatprep.subr.bf16.mxu0 0
    %2527 = vmatpush1.bf16.msra.mxu0 0
    %2528 = vmatprep.subr.bf16.mxu0 0
    %2529 = vmatpush1.bf16.msra.mxu0 0
    %2530 = vmatprep.subr.bf16.mxu0 0
    %2531 = vmatpush1.bf16.msra.mxu0 0
    %2532 = vmatprep.subr.bf16.mxu0 0
    %2533 = vmatpush1.bf16.msra.mxu0 0
    %2534 = vmatprep.subr.bf16.mxu0 0
    %2535 = vmatpush1.bf16.msra.mxu0 0
    %2536 = vmatprep.subr.bf16.mxu0 0
    %2537 = vmatpush1.bf16.msra.mxu0 0
    %2538 = vmatprep.subr.bf16.mxu0 0
    %2539 = vmatpush1.bf16.msra.mxu0 %v2520
    %2540 = vmatprep.subr.bf16.mxu0 0
    %2541 = vmatpush1.bf16.msra.mxu0 %v2519
    %2542 = vmatprep.subr.bf16.mxu0 0
    %2543 = vmatpush2.bf16.msra.mxu0 0
    %2544 = vmatprep.subr.bf16.mxu0 0
    %2545 = vmatpush2.bf16.msra.mxu0 0
    %2546 = vmatprep.subr.bf16.mxu0 0
    %2547 = vmatpush2.bf16.msra.mxu0 0
    %2548 = vmatprep.subr.bf16.mxu0 0
    %2549 = vmatpush2.bf16.msra.mxu0 0
    %2550 = vmatprep.subr.bf16.mxu0 0
    %2551 = vmatpush2.bf16.msra.mxu0 0
    %2552 = vmatprep.subr.bf16.mxu0 0
    %2553 = vmatpush2.bf16.msra.mxu0 0
    %2554 = vmatprep.subr.bf16.mxu0 0
    %2555 = vmatpush2.bf16.msra.mxu0 0
    %2556 = vmatprep.subr.bf16.mxu0 0
    %2557 = vmatpush2.bf16.msra.mxu0 0
    %2558 = vmatprep.mubr.bf16.mxu0 0
    %2559 = vmatmul.mubr.bf16.gmra.mxu0 %v2524
    %v2560 = vpop.f32.mrf.mxu0
    %v2561 = vadd.f32 %v2509, %v2560
    %v2562 = vpop.f32.mrf.mxu0
    %v2563 = vpop.f32.mrf.mxu0
    %v2564 = vpop.f32.mrf.mxu0
    %2565 = vdwg.mxu0
    %v2566 = vrot.slane %v2279, 1
    %v2567 = vrot.slane %v2281, 1
    %v2568 = vsel %vm677, %v2566, %v2567
    %v2569 = vsel %vm677, %v2567, %v2566
    %v2570 = vrot.slane %v2279, 7
    %v2571 = vrot.slane %v2281, 7
    %v2572 = vsel %vm682, %v2570, %v2571
    %v2573 = vsel %vm682, %v2571, %v2570
    %v2574 = vsel %vm685, %v2568, %v2573
    %v2575 = vsel %vm686, %v2569, %v2572
    %v2576 = vpack.c.bf16 %v2575, %v2574
    %v2577 = vld [vmem:[#allocation19] sm:$0xf]
    %v2578 = vld [vmem:[#allocation19 + $0x4] sm:$0xf]
    %v2579 = vld [vmem:[#allocation19 + $0x8] sm:$0xf]
    %v2580 = vld [vmem:[#allocation19 + $0xc] sm:$0xf]
    %v2581 = vld [vmem:[#allocation20] sm:$0x1]
    %v2583 = vlaneseq
    %v2584 = vshrl.u32 %v2583, 7
    %v2585 = vsub.s32 0, %v2584
    %v2586 = vrot.slane %v2581, %v2585
    %v2592 = vunpack.c.l.b16 %v2577
    %v2593 = vunpack.c.l.b16 %v2578
    %v2594 = vunpack.c.l.b16 %v2579
    %v2595 = vunpack.c.l.b16 %v2580
    %v2596 = vpack.c.b16 %v2593, %v2592
    %v2597 = vpack.c.b16 %v2595, %v2594
    %v2601 = vsel %vm371, %v2576, 0
    %2603 = vmatprep.subr.bf16.mxu0 0
    %2604 = vmatpush1.bf16.msra.mxu0 0
    %2605 = vmatprep.subr.bf16.mxu0 0
    %2606 = vmatpush1.bf16.msra.mxu0 0
    %2607 = vmatprep.subr.bf16.mxu0 0
    %2608 = vmatpush1.bf16.msra.mxu0 0
    %2609 = vmatprep.subr.bf16.mxu0 0
    %2610 = vmatpush1.bf16.msra.mxu0 0
    %2611 = vmatprep.subr.bf16.mxu0 0
    %2612 = vmatpush1.bf16.msra.mxu0 0
    %2613 = vmatprep.subr.bf16.mxu0 0
    %2614 = vmatpush1.bf16.msra.mxu0 0
    %2615 = vmatprep.subr.bf16.mxu0 0
    %2616 = vmatpush1.bf16.msra.mxu0 %v2597
    %2617 = vmatprep.subr.bf16.mxu0 0
    %2618 = vmatpush1.bf16.msra.mxu0 %v2596
    %2619 = vmatprep.subr.bf16.mxu0 0
    %2620 = vmatpush2.bf16.msra.mxu0 0
    %2621 = vmatprep.subr.bf16.mxu0 0
    %2622 = vmatpush2.bf16.msra.mxu0 0
    %2623 = vmatprep.subr.bf16.mxu0 0
    %2624 = vmatpush2.bf16.msra.mxu0 0
    %2625 = vmatprep.subr.bf16.mxu0 0
    %2626 = vmatpush2.bf16.msra.mxu0 0
    %2627 = vmatprep.subr.bf16.mxu0 0
    %2628 = vmatpush2.bf16.msra.mxu0 0
    %2629 = vmatprep.subr.bf16.mxu0 0
    %2630 = vmatpush2.bf16.msra.mxu0 0
    %2631 = vmatprep.subr.bf16.mxu0 0
    %2632 = vmatpush2.bf16.msra.mxu0 0
    %2633 = vmatprep.subr.bf16.mxu0 0
    %2634 = vmatpush2.bf16.msra.mxu0 0
    %2635 = vmatprep.mubr.bf16.mxu0 0
    %2636 = vmatmul.mubr.bf16.gmra.mxu0 %v2601
    %v2637 = vpop.f32.mrf.mxu0
    %v2638 = vadd.f32 %v2586, %v2637
    %v2639 = vpop.f32.mrf.mxu0
    %v2640 = vpop.f32.mrf.mxu0
    %v2641 = vadd.f32 %v2586, %v2640
    %v2642 = vpop.f32.mrf.mxu0
    %2643 = vdwg.mxu0
    %v2644 = vmax.f32 %v2638, 0.0
    %v2645 = vmax.f32 %v2641, 0.0
    %v2646 = vpack.c.bf16 %v2645, %v2644
    %v2647 = vld [vmem:[#allocation22] sm:$0xf]
    %v2648 = vld [vmem:[#allocation22 + $0x4] sm:$0xf]
    %v2649 = vld [vmem:[#allocation22 + $0x8] sm:$0xf]
    %v2650 = vld [vmem:[#allocation22 + $0xc] sm:$0xf]
    %v2651 = vld [vmem:[#allocation23] sm:$0x1]
    %v2653 = vlaneseq
    %v2654 = vshrl.u32 %v2653, 7
    %v2655 = vsub.s32 0, %v2654
    %v2656 = vrot.slane %v2651, %v2655
    %v2662 = vunpack.c.l.b16 %v2647
    %v2663 = vunpack.c.l.b16 %v2648
    %v2664 = vunpack.c.l.b16 %v2649
    %v2665 = vunpack.c.l.b16 %v2650
    %v2666 = vpack.c.b16 %v2663, %v2662
    %v2667 = vpack.c.b16 %v2665, %v2664
    %v2671 = vsel %vm371, %v2646, 0
    %2673 = vmatprep.subr.bf16.mxu0 0
    %2674 = vmatpush1.bf16.msra.mxu0 0
    %2675 = vmatprep.subr.bf16.mxu0 0
    %2676 = vmatpush1.bf16.msra.mxu0 0
    %2677 = vmatprep.subr.bf16.mxu0 0
    %2678 = vmatpush1.bf16.msra.mxu0 0
    %2679 = vmatprep.subr.bf16.mxu0 0
    %2680 = vmatpush1.bf16.msra.mxu0 0
    %2681 = vmatprep.subr.bf16.mxu0 0
    %2682 = vmatpush1.bf16.msra.mxu0 0
    %2683 = vmatprep.subr.bf16.mxu0 0
    %2684 = vmatpush1.bf16.msra.mxu0 0
    %2685 = vmatprep.subr.bf16.mxu0 0
    %2686 = vmatpush1.bf16.msra.mxu0 %v2667
    %2687 = vmatprep.subr.bf16.mxu0 0
    %2688 = vmatpush1.bf16.msra.mxu0 %v2666
    %2689 = vmatprep.subr.bf16.mxu0 0
    %2690 = vmatpush2.bf16.msra.mxu0 0
    %2691 = vmatprep.subr.bf16.mxu0 0
    %2692 = vmatpush2.bf16.msra.mxu0 0
    %2693 = vmatprep.subr.bf16.mxu0 0
    %2694 = vmatpush2.bf16.msra.mxu0 0
    %2695 = vmatprep.subr.bf16.mxu0 0
    %2696 = vmatpush2.bf16.msra.mxu0 0
    %2697 = vmatprep.subr.bf16.mxu0 0
    %2698 = vmatpush2.bf16.msra.mxu0 0
    %2699 = vmatprep.subr.bf16.mxu0 0
    %2700 = vmatpush2.bf16.msra.mxu0 0
    %2701 = vmatprep.subr.bf16.mxu0 0
    %2702 = vmatpush2.bf16.msra.mxu0 0
    %2703 = vmatprep.subr.bf16.mxu0 0
    %2704 = vmatpush2.bf16.msra.mxu0 0
    %2705 = vmatprep.mubr.bf16.mxu0 0
    %2706 = vmatmul.mubr.bf16.gmra.mxu0 %v2671
    %v2707 = vpop.f32.mrf.mxu0
    %v2708 = vadd.f32 %v2656, %v2707
    %v2709 = vpop.f32.mrf.mxu0
    %v2710 = vpop.f32.mrf.mxu0
    %v2711 = vadd.f32 %v2656, %v2710
    %v2712 = vpop.f32.mrf.mxu0
    %2713 = vdwg.mxu0
    %v2714 = vpack.c.bf16 %v2425, %v2422
    %2715 = vmatprep.subr.bf16.mxu0 0
    %2716 = vmatpush1.bf16.msra.mxu0 0
    %2717 = vmatprep.subr.bf16.mxu0 0
    %2718 = vmatpush1.bf16.msra.mxu0 0
    %2719 = vmatprep.subr.bf16.mxu0 0
    %2720 = vmatpush1.bf16.msra.mxu0 0
    %2721 = vmatprep.subr.bf16.mxu0 0
    %2722 = vmatpush1.bf16.msra.mxu0 0
    %2723 = vmatprep.subr.bf16.mxu0 0
    %2724 = vmatpush1.bf16.msra.mxu0 0
    %2725 = vmatprep.subr.bf16.mxu0 0
    %2726 = vmatpush1.bf16.msra.mxu0 0
    %2727 = vmatprep.subr.bf16.mxu0 0
    %2728 = vmatpush1.bf16.msra.mxu0 0
    %2729 = vmatprep.subr.bf16.mxu0 0
    %2730 = vmatpush1.bf16.msra.mxu0 %v2714
    %2731 = vmatprep.subr.bf16.mxu0 0
    %2732 = vmatpush2.bf16.msra.mxu0 0
    %2733 = vmatprep.subr.bf16.mxu0 0
    %2734 = vmatpush2.bf16.msra.mxu0 0
    %2735 = vmatprep.subr.bf16.mxu0 0
    %2736 = vmatpush2.bf16.msra.mxu0 0
    %2737 = vmatprep.subr.bf16.mxu0 0
    %2738 = vmatpush2.bf16.msra.mxu0 0
    %2739 = vmatprep.subr.bf16.mxu0 0
    %2740 = vmatpush2.bf16.msra.mxu0 0
    %2741 = vmatprep.subr.bf16.mxu0 0
    %2742 = vmatpush2.bf16.msra.mxu0 0
    %2743 = vmatprep.subr.bf16.mxu0 0
    %2744 = vmatpush2.bf16.msra.mxu0 0
    %2745 = vmatprep.subr.bf16.mxu0 0
    %2746 = vmatpush2.bf16.msra.mxu0 0
    %2747 = vmatprep.mubr.bf16.mxu0 0
    %2748 = vmatmul.mubr.bf16.gmra.mxu0 %v830
    %v2749 = vpop.f32.mrf.mxu0
    %v2750 = vadd.f32 0.0, %v2749
    %v2751 = vpop.f32.mrf.mxu0
    %v2752 = vpop.f32.mrf.mxu0
    %v2753 = vpop.f32.mrf.mxu0
    %2754 = vdwg.mxu0
    %v2755 = vpack.c.bf16 %v2750, %v2750
    %v2756 = vld [vmem:[#allocation25] sm:$0xf]
    %v2757 = vld [vmem:[#allocation25 + $0x4] sm:$0xf]
    %v2758 = vld [vmem:[#allocation25 + $0x8] sm:$0xf]
    %v2759 = vld [vmem:[#allocation25 + $0xc] sm:$0xf]
    %v2760 = vld [vmem:[#allocation28] sm:$0x1]
    %v2762 = vlaneseq
    %v2763 = vshrl.u32 %v2762, 7
    %v2764 = vsub.s32 0, %v2763
    %v2765 = vrot.slane %v2760, %v2764
    %v2771 = vunpack.c.l.b16 %v2756
    %v2772 = vunpack.c.l.b16 %v2757
    %v2773 = vunpack.c.l.b16 %v2758
    %v2774 = vunpack.c.l.b16 %v2759
    %v2775 = vpack.c.b16 %v2772, %v2771
    %v2776 = vpack.c.b16 %v2774, %v2773
    %v2780 = vsel %vm371, %v2755, 0
    %2782 = vmatprep.subr.bf16.mxu0 0
    %2783 = vmatpush1.bf16.msra.mxu0 0
    %2784 = vmatprep.subr.bf16.mxu0 0
    %2785 = vmatpush1.bf16.msra.mxu0 0
    %2786 = vmatprep.subr.bf16.mxu0 0
    %2787 = vmatpush1.bf16.msra.mxu0 0
    %2788 = vmatprep.subr.bf16.mxu0 0
    %2789 = vmatpush1.bf16.msra.mxu0 0
    %2790 = vmatprep.subr.bf16.mxu0 0
    %2791 = vmatpush1.bf16.msra.mxu0 0
    %2792 = vmatprep.subr.bf16.mxu0 0
    %2793 = vmatpush1.bf16.msra.mxu0 0
    %2794 = vmatprep.subr.bf16.mxu0 0
    %2795 = vmatpush1.bf16.msra.mxu0 %v2776
    %2796 = vmatprep.subr.bf16.mxu0 0
    %2797 = vmatpush1.bf16.msra.mxu0 %v2775
    %2798 = vmatprep.subr.bf16.mxu0 0
    %2799 = vmatpush2.bf16.msra.mxu0 0
    %2800 = vmatprep.subr.bf16.mxu0 0
    %2801 = vmatpush2.bf16.msra.mxu0 0
    %2802 = vmatprep.subr.bf16.mxu0 0
    %2803 = vmatpush2.bf16.msra.mxu0 0
    %2804 = vmatprep.subr.bf16.mxu0 0
    %2805 = vmatpush2.bf16.msra.mxu0 0
    %2806 = vmatprep.subr.bf16.mxu0 0
    %2807 = vmatpush2.bf16.msra.mxu0 0
    %2808 = vmatprep.subr.bf16.mxu0 0
    %2809 = vmatpush2.bf16.msra.mxu0 0
    %2810 = vmatprep.subr.bf16.mxu0 0
    %2811 = vmatpush2.bf16.msra.mxu0 0
    %2812 = vmatprep.subr.bf16.mxu0 0
    %2813 = vmatpush2.bf16.msra.mxu0 0
    %2814 = vmatprep.mubr.bf16.mxu0 0
    %2815 = vmatmul.mubr.bf16.gmra.mxu0 %v2780
    %v2816 = vpop.f32.mrf.mxu0
    %v2817 = vadd.f32 %v2765, %v2816
    %v2818 = vpop.f32.mrf.mxu0
    %v2819 = vpop.f32.mrf.mxu0
    %v2820 = vpop.f32.mrf.mxu0
    %2821 = vdwg.mxu0
    %v2822 = vld [vmem:[#allocation26] sm:$0xf]
    %v2823 = vld [vmem:[#allocation26 + $0x4] sm:$0xf]
    %v2824 = vld [vmem:[#allocation26 + $0x8] sm:$0xf]
    %v2825 = vld [vmem:[#allocation26 + $0xc] sm:$0xf]
    %v2826 = vld [vmem:[#allocation29] sm:$0x1]
    %v2828 = vlaneseq
    %v2829 = vshrl.u32 %v2828, 7
    %v2830 = vsub.s32 0, %v2829
    %v2831 = vrot.slane %v2826, %v2830
    %v2837 = vunpack.c.l.b16 %v2822
    %v2838 = vunpack.c.l.b16 %v2823
    %v2839 = vunpack.c.l.b16 %v2824
    %v2840 = vunpack.c.l.b16 %v2825
    %v2841 = vpack.c.b16 %v2838, %v2837
    %v2842 = vpack.c.b16 %v2840, %v2839
    %2845 = vmatprep.subr.bf16.mxu0 0
    %2846 = vmatpush1.bf16.msra.mxu0 0
    %2847 = vmatprep.subr.bf16.mxu0 0
    %2848 = vmatpush1.bf16.msra.mxu0 0
    %2849 = vmatprep.subr.bf16.mxu0 0
    %2850 = vmatpush1.bf16.msra.mxu0 0
    %2851 = vmatprep.subr.bf16.mxu0 0
    %2852 = vmatpush1.bf16.msra.mxu0 0
    %2853 = vmatprep.subr.bf16.mxu0 0
    %2854 = vmatpush1.bf16.msra.mxu0 0
    %2855 = vmatprep.subr.bf16.mxu0 0
    %2856 = vmatpush1.bf16.msra.mxu0 0
    %2857 = vmatprep.subr.bf16.mxu0 0
    %2858 = vmatpush1.bf16.msra.mxu0 %v2842
    %2859 = vmatprep.subr.bf16.mxu0 0
    %2860 = vmatpush1.bf16.msra.mxu0 %v2841
    %2861 = vmatprep.subr.bf16.mxu0 0
    %2862 = vmatpush2.bf16.msra.mxu0 0
    %2863 = vmatprep.subr.bf16.mxu0 0
    %2864 = vmatpush2.bf16.msra.mxu0 0
    %2865 = vmatprep.subr.bf16.mxu0 0
    %2866 = vmatpush2.bf16.msra.mxu0 0
    %2867 = vmatprep.subr.bf16.mxu0 0
    %2868 = vmatpush2.bf16.msra.mxu0 0
    %2869 = vmatprep.subr.bf16.mxu0 0
    %2870 = vmatpush2.bf16.msra.mxu0 0
    %2871 = vmatprep.subr.bf16.mxu0 0
    %2872 = vmatpush2.bf16.msra.mxu0 0
    %2873 = vmatprep.subr.bf16.mxu0 0
    %2874 = vmatpush2.bf16.msra.mxu0 0
    %2875 = vmatprep.subr.bf16.mxu0 0
    %2876 = vmatpush2.bf16.msra.mxu0 0
    %2877 = vmatprep.mubr.bf16.mxu0 0
    %2878 = vmatmul.mubr.bf16.gmra.mxu0 %v2456
    %v2879 = vpop.f32.mrf.mxu0
    %v2880 = vadd.f32 %v2831, %v2879
    %v2881 = vpop.f32.mrf.mxu0
    %v2882 = vpop.f32.mrf.mxu0
    %v2883 = vpop.f32.mrf.mxu0
    %2884 = vdwg.mxu0
    %v2885 = vadd.f32 %v2817, %v2880
    %v2886 = vxor.u32 %v2885, 2147483648
    %v2887 = vmul.f32 %v2886, 1.442695
    %v2888 = vpow.pop %v2887
    %v2889 = vadd.f32 %v2888, 1.0
    %v2890 = vrcp.pop %v2889
    %v2891 = vmul.f32 1.0, %v2890
    %2893 = vrot.lane.b32.xlu0 %v2880, 64
    %v2894 = vpop.permute.xlu0 %2893
    %v2896 = vmul.f32 %v2891, %v2894
    %2898 = vrot.lane.b32.xlu0 %v2896, 64
    %v2899 = vpop.permute.xlu0 %2898
    %v2901 = vadd.f32 %v2817, %v2899
    %v2902 = vtanh.pop %v2901
    %v2903 = vsub.f32 1.0, %v2891
    %2905 = vrot.lane.b32.xlu0 %v2902, 96
    %v2906 = vpop.permute.xlu0 %2905
    %v2908 = vmul.f32 %v2903, %v2906
    %v2909 = vmul.f32 %v2891, %v1977
    %v2910 = vadd.f32 %v2908, %v2909
    %2912 = vrot.lane.b32.xlu0 %v2910, 96
    %v2913 = vpop.permute.xlu0 %2912
    %s2915 = scalar_lea.vmem [#allocation35], 24
    %2916 = vst.msk [vmem:[%s2915] sm:$0xff] %vm371, %v2913
    %v2917 = vpack.c.bf16 %v2561, %v2561
    %v2919 = vsel %vm1043, %v2917, 0
    %2921 = vmatprep.subr.bf16.mxu0 0
    %2922 = vmatpush1.bf16.msra.mxu0 0
    %2923 = vmatprep.subr.bf16.mxu0 0
    %2924 = vmatpush1.bf16.msra.mxu0 0
    %2925 = vmatprep.subr.bf16.mxu0 0
    %2926 = vmatpush1.bf16.msra.mxu0 0
    %2927 = vmatprep.subr.bf16.mxu0 0
    %2928 = vmatpush1.bf16.msra.mxu0 0
    %2929 = vmatprep.subr.bf16.mxu0 0
    %2930 = vmatpush1.bf16.msra.mxu0 0
    %2931 = vmatprep.subr.bf16.mxu0 0
    %2932 = vmatpush1.bf16.msra.mxu0 0
    %2933 = vmatprep.subr.bf16.mxu0 0
    %2934 = vmatpush1.bf16.msra.mxu0 0
    %2935 = vmatprep.subr.bf16.mxu0 0
    %2936 = vmatpush1.bf16.msra.mxu0 %v2919
    %2937 = vmatprep.subr.bf16.mxu0 0
    %2938 = vmatpush2.bf16.msra.mxu0 0
    %2939 = vmatprep.subr.bf16.mxu0 0
    %2940 = vmatpush2.bf16.msra.mxu0 0
    %2941 = vmatprep.subr.bf16.mxu0 0
    %2942 = vmatpush2.bf16.msra.mxu0 0
    %2943 = vmatprep.subr.bf16.mxu0 0
    %2944 = vmatpush2.bf16.msra.mxu0 0
    %2945 = vmatprep.subr.bf16.mxu0 0
    %2946 = vmatpush2.bf16.msra.mxu0 0
    %2947 = vmatprep.subr.bf16.mxu0 0
    %2948 = vmatpush2.bf16.msra.mxu0 0
    %2949 = vmatprep.subr.bf16.mxu0 0
    %2950 = vmatpush2.bf16.msra.mxu0 0
    %2951 = vmatprep.subr.bf16.mxu0 0
    %2952 = vmatpush2.bf16.msra.mxu0 0
    %2953 = vmatprep.mubr.bf16.mxu0 0
    %2954 = vmatmul.mubr.bf16.gmra.mxu0 %v1041
    %v2955 = vpop.f32.mrf.mxu0
    %v2956 = vadd.f32 0.0, %v2955
    %v2957 = vpop.f32.mrf.mxu0
    %v2958 = vpop.f32.mrf.mxu0
    %v2959 = vadd.f32 0.0, %v2958
    %v2960 = vpop.f32.mrf.mxu0
    %2961 = vdwg.mxu0
    %v2962 = vpack.c.bf16 %v2959, %v2956
    %v2963 = vld [vmem:[%s19] sm:$0xf]
    %v2964 = vld [vmem:[%s19 + $0x4] sm:$0xf]
    %v2965 = vld [vmem:[%s19 + $0x8] sm:$0xf]
    %v2966 = vld [vmem:[%s19 + $0xc] sm:$0xf]
    %v2967 = vpack.c.bf16 %v2711, %v2708
    %v2968 = vld [vmem:[#allocation31] sm:$0xf]
    %v2969 = vld [vmem:[#allocation31 + $0x4] sm:$0xf]
    %v2970 = vld [vmem:[#allocation31 + $0x8] sm:$0xf]
    %v2971 = vld [vmem:[#allocation31 + $0xc] sm:$0xf]
    %v2976 = vunpack.c.l.b16 %v2968
    %v2977 = vunpack.c.l.b16 %v2969
    %v2978 = vunpack.c.l.b16 %v2970
    %v2979 = vunpack.c.l.b16 %v2971
    %v2980 = vpack.c.b16 %v2977, %v2976
    %v2981 = vpack.c.b16 %v2979, %v2978
    %v2985 = vsel %vm371, %v2967, 0
    %2987 = vmatprep.subr.bf16.mxu0 0
    %2988 = vmatpush1.bf16.msra.mxu0 0
    %2989 = vmatprep.subr.bf16.mxu0 0
    %2990 = vmatpush1.bf16.msra.mxu0 0
    %2991 = vmatprep.subr.bf16.mxu0 0
    %2992 = vmatpush1.bf16.msra.mxu0 0
    %2993 = vmatprep.subr.bf16.mxu0 0
    %2994 = vmatpush1.bf16.msra.mxu0 0
    %2995 = vmatprep.subr.bf16.mxu0 0
    %2996 = vmatpush1.bf16.msra.mxu0 0
    %2997 = vmatprep.subr.bf16.mxu0 0
    %2998 = vmatpush1.bf16.msra.mxu0 0
    %2999 = vmatprep.subr.bf16.mxu0 0
    %3000 = vmatpush1.bf16.msra.mxu0 %v2981
    %3001 = vmatprep.subr.bf16.mxu0 0
    %3002 = vmatpush1.bf16.msra.mxu0 %v2980
    %3003 = vmatprep.subr.bf16.mxu0 0
    %3004 = vmatpush2.bf16.msra.mxu0 0
    %3005 = vmatprep.subr.bf16.mxu0 0
    %3006 = vmatpush2.bf16.msra.mxu0 0
    %3007 = vmatprep.subr.bf16.mxu0 0
    %3008 = vmatpush2.bf16.msra.mxu0 0
    %3009 = vmatprep.subr.bf16.mxu0 0
    %3010 = vmatpush2.bf16.msra.mxu0 0
    %3011 = vmatprep.subr.bf16.mxu0 0
    %3012 = vmatpush2.bf16.msra.mxu0 0
    %3013 = vmatprep.subr.bf16.mxu0 0
    %3014 = vmatpush2.bf16.msra.mxu0 0
    %3015 = vmatprep.subr.bf16.mxu0 0
    %3016 = vmatpush2.bf16.msra.mxu0 0
    %3017 = vmatprep.subr.bf16.mxu0 0
    %3018 = vmatpush2.bf16.msra.mxu0 0
    %3019 = vmatprep.mubr.bf16.mxu0 0
    %3020 = vmatmul.mubr.bf16.gmra.mxu0 %v2985
    %v3021 = vpop.f32.mrf.mxu0
    %v3022 = vadd.f32 0.0, %v3021
    %v3023 = vpop.f32.mrf.mxu0
    %v3024 = vpop.f32.mrf.mxu0
    %v3025 = vadd.f32 0.0, %v3024
    %v3026 = vpop.f32.mrf.mxu0
    %3027 = vdwg.mxu0
    %v3032 = vunpack.c.l.b16 %v2963
    %v3033 = vunpack.c.l.b16 %v2964
    %v3034 = vunpack.c.l.b16 %v2965
    %v3035 = vunpack.c.l.b16 %v2966
    %v3036 = vpack.c.b16 %v3033, %v3032
    %v3037 = vpack.c.b16 %v3035, %v3034
    %v3041 = vsel %vm371, %v2962, 0
    %3043 = vmatprep.subr.bf16.mxu0 0
    %3044 = vmatpush1.bf16.msra.mxu0 0
    %3045 = vmatprep.subr.bf16.mxu0 0
    %3046 = vmatpush1.bf16.msra.mxu0 0
    %3047 = vmatprep.subr.bf16.mxu0 0
    %3048 = vmatpush1.bf16.msra.mxu0 0
    %3049 = vmatprep.subr.bf16.mxu0 0
    %3050 = vmatpush1.bf16.msra.mxu0 0
    %3051 = vmatprep.subr.bf16.mxu0 0
    %3052 = vmatpush1.bf16.msra.mxu0 0
    %3053 = vmatprep.subr.bf16.mxu0 0
    %3054 = vmatpush1.bf16.msra.mxu0 0
    %3055 = vmatprep.subr.bf16.mxu0 0
    %3056 = vmatpush1.bf16.msra.mxu0 %v3037
    %3057 = vmatprep.subr.bf16.mxu0 0
    %3058 = vmatpush1.bf16.msra.mxu0 %v3036
    %3059 = vmatprep.subr.bf16.mxu0 0
    %3060 = vmatpush2.bf16.msra.mxu0 0
    %3061 = vmatprep.subr.bf16.mxu0 0
    %3062 = vmatpush2.bf16.msra.mxu0 0
    %3063 = vmatprep.subr.bf16.mxu0 0
    %3064 = vmatpush2.bf16.msra.mxu0 0
    %3065 = vmatprep.subr.bf16.mxu0 0
    %3066 = vmatpush2.bf16.msra.mxu0 0
    %3067 = vmatprep.subr.bf16.mxu0 0
    %3068 = vmatpush2.bf16.msra.mxu0 0
    %3069 = vmatprep.subr.bf16.mxu0 0
    %3070 = vmatpush2.bf16.msra.mxu0 0
    %3071 = vmatprep.subr.bf16.mxu0 0
    %3072 = vmatpush2.bf16.msra.mxu0 0
    %3073 = vmatprep.subr.bf16.mxu0 0
    %3074 = vmatpush2.bf16.msra.mxu0 0
    %3075 = vmatprep.mubr.bf16.mxu0 0
    %3076 = vmatmul.mubr.bf16.gmra.mxu0 %v3041
    %v3077 = vpop.f32.mrf.mxu0
    %v3078 = vadd.f32 %v3022, %v3077
    %v3079 = vpop.f32.mrf.mxu0
    %v3080 = vpop.f32.mrf.mxu0
    %v3081 = vadd.f32 %v3025, %v3080
    %v3082 = vpop.f32.mrf.mxu0
    %3083 = vdwg.mxu0
    %v3084 = vld [vmem:[%s22] sm:$0x1]
    %v3086 = vlaneseq
    %v3087 = vshrl.u32 %v3086, 7
    %v3088 = vsub.s32 0, %v3087
    %v3089 = vrot.slane %v3084, %v3088
    %v3091 = vadd.f32 %v3078, %v3089
    %v3092 = vadd.f32 %v3081, %v3089
    %v3093 = vld [vmem:[#allocation32] sm:$0xf]
    %v3094 = vld [vmem:[#allocation32 + $0x4] sm:$0xf]
    %v3095 = vld [vmem:[#allocation32 + $0x8] sm:$0xf]
    %v3096 = vld [vmem:[#allocation32 + $0xc] sm:$0xf]
    %v3097 = vld [vmem:[%s23] sm:$0x1]
    %v3099 = vlaneseq
    %v3100 = vshrl.u32 %v3099, 7
    %v3101 = vsub.s32 0, %v3100
    %v3102 = vrot.slane %v3097, %v3101
    %v3108 = vunpack.c.l.b16 %v3093
    %v3109 = vunpack.c.l.b16 %v3094
    %v3110 = vunpack.c.l.b16 %v3095
    %v3111 = vunpack.c.l.b16 %v3096
    %v3112 = vpack.c.b16 %v3109, %v3108
    %v3113 = vpack.c.b16 %v3111, %v3110
    %3116 = vmatprep.subr.bf16.mxu0 0
    %3117 = vmatpush1.bf16.msra.mxu0 0
    %3118 = vmatprep.subr.bf16.mxu0 0
    %3119 = vmatpush1.bf16.msra.mxu0 0
    %3120 = vmatprep.subr.bf16.mxu0 0
    %3121 = vmatpush1.bf16.msra.mxu0 0
    %3122 = vmatprep.subr.bf16.mxu0 0
    %3123 = vmatpush1.bf16.msra.mxu0 0
    %3124 = vmatprep.subr.bf16.mxu0 0
    %3125 = vmatpush1.bf16.msra.mxu0 0
    %3126 = vmatprep.subr.bf16.mxu0 0
    %3127 = vmatpush1.bf16.msra.mxu0 0
    %3128 = vmatprep.subr.bf16.mxu0 0
    %3129 = vmatpush1.bf16.msra.mxu0 %v3113
    %3130 = vmatprep.subr.bf16.mxu0 0
    %3131 = vmatpush1.bf16.msra.mxu0 %v3112
    %3132 = vmatprep.subr.bf16.mxu0 0
    %3133 = vmatpush2.bf16.msra.mxu0 0
    %3134 = vmatprep.subr.bf16.mxu0 0
    %3135 = vmatpush2.bf16.msra.mxu0 0
    %3136 = vmatprep.subr.bf16.mxu0 0
    %3137 = vmatpush2.bf16.msra.mxu0 0
    %3138 = vmatprep.subr.bf16.mxu0 0
    %3139 = vmatpush2.bf16.msra.mxu0 0
    %3140 = vmatprep.subr.bf16.mxu0 0
    %3141 = vmatpush2.bf16.msra.mxu0 0
    %3142 = vmatprep.subr.bf16.mxu0 0
    %3143 = vmatpush2.bf16.msra.mxu0 0
    %3144 = vmatprep.subr.bf16.mxu0 0
    %3145 = vmatpush2.bf16.msra.mxu0 0
    %3146 = vmatprep.subr.bf16.mxu0 0
    %3147 = vmatpush2.bf16.msra.mxu0 0
    %3148 = vmatprep.mubr.bf16.mxu0 0
    %3149 = vmatmul.mubr.bf16.gmra.mxu0 %v2315
    %v3150 = vpop.f32.mrf.mxu0
    %v3151 = vadd.f32 %v3102, %v3150
    %v3152 = vpop.f32.mrf.mxu0
    %v3153 = vpop.f32.mrf.mxu0
    %v3154 = vadd.f32 %v3102, %v3153
    %v3155 = vpop.f32.mrf.mxu0
    %3156 = vdwg.mxu0
    %v3157 = vadd.f32 %v3091, %v3151
    %v3158 = vadd.f32 %v3092, %v3154
    %v3159 = vxor.u32 %v3157, 2147483648
    %v3160 = vxor.u32 %v3158, 2147483648
    %v3161 = vmul.f32 %v3159, 1.442695
    %v3162 = vpow.pop %v3161
    %v3163 = vmul.f32 %v3160, 1.442695
    %v3164 = vpow.pop %v3163
    %v3165 = vadd.f32 %v3162, 1.0
    %v3166 = vadd.f32 %v3164, 1.0
    %v3167 = vrcp.pop %v3165
    %v3168 = vmul.f32 1.0, %v3167
    %v3169 = vrcp.pop %v3166
    %v3170 = vmul.f32 1.0, %v3169
    %3173 = vrot.lane.b32.xlu0 %v3151, 64
    %v3174 = vpop.permute.xlu0 %3173
    %3175 = vrot.lane.b32.xlu0 %v3154, 64
    %v3176 = vpop.permute.xlu0 %3175
    %v3179 = vmul.f32 %v3168, %v3174
    %v3180 = vmul.f32 %v3170, %v3176
    %3183 = vrot.lane.b32.xlu0 %v3179, 64
    %v3184 = vpop.permute.xlu0 %3183
    %3185 = vrot.lane.b32.xlu0 %v3180, 64
    %v3186 = vpop.permute.xlu0 %3185
    %v3189 = vadd.f32 %v3091, %v3184
    %v3190 = vadd.f32 %v3092, %v3186
    %v3191 = vtanh.pop %v3189
    %v3192 = vtanh.pop %v3190
    %v3193 = vsub.f32 1.0, %v3168
    %v3194 = vsub.f32 1.0, %v3170
    %3197 = vrot.lane.b32.xlu0 %v3191, 96
    %v3198 = vpop.permute.xlu0 %3197
    %3199 = vrot.lane.b32.xlu0 %v3192, 96
    %v3200 = vpop.permute.xlu0 %3199
    %v3203 = vmul.f32 %v3193, %v3198
    %v3204 = vmul.f32 %v3194, %v3200
    %v3205 = vmul.f32 %v3168, %v2274
    %v3206 = vmul.f32 %v3170, %v2275
    %v3207 = vadd.f32 %v3203, %v3205
    %v3208 = vadd.f32 %v3204, %v3206
    %3211 = vrot.lane.b32.xlu0 %v3207, 96
    %v3212 = vpop.permute.xlu0 %3211
    %3213 = vrot.lane.b32.xlu0 %v3208, 96
    %v3214 = vpop.permute.xlu0 %3213
    %s3217 = scalar_lea.vmem [#allocation34], 48
    %3218 = vst.msk [vmem:[%s3217] sm:$0xff] %vm371, %v3212
    %3219 = vst.msk [vmem:[%s3217 + $0x8] sm:$0xff] %vm371, %v3214
    %v3220 = vpack.c.bf16 %v3208, %v3207
    %v3221 = vld [vmem:[#allocation8] sm:$0xf]
    %v3222 = vld [vmem:[#allocation8 + $0x4] sm:$0xf]
    %v3223 = vld [vmem:[#allocation8 + $0x8] sm:$0xf]
    %v3224 = vld [vmem:[#allocation8 + $0xc] sm:$0xf]
    %v3225 = vld [vmem:[#allocation10] sm:$0x1]
    %v3227 = vlaneseq
    %v3228 = vshrl.u32 %v3227, 7
    %v3229 = vsub.s32 0, %v3228
    %v3230 = vrot.slane %v3225, %v3229
    %3233 = vrot.lane.b32.xlu0 %v3220, 96
    %v3234 = vpop.permute.xlu0 %3233
    %v3239 = vunpack.c.l.b16 %v3221
    %v3240 = vunpack.c.l.b16 %v3222
    %v3241 = vunpack.c.l.b16 %v3223
    %v3242 = vunpack.c.l.b16 %v3224
    %v3243 = vpack.c.b16 %v3240, %v3239
    %v3244 = vpack.c.b16 %v3242, %v3241
    %v3248 = vsel %vm371, %v3234, 0
    %3250 = vmatprep.subr.bf16.mxu0 0
    %3251 = vmatpush1.bf16.msra.mxu0 0
    %3252 = vmatprep.subr.bf16.mxu0 0
    %3253 = vmatpush1.bf16.msra.mxu0 0
    %3254 = vmatprep.subr.bf16.mxu0 0
    %3255 = vmatpush1.bf16.msra.mxu0 0
    %3256 = vmatprep.subr.bf16.mxu0 0
    %3257 = vmatpush1.bf16.msra.mxu0 0
    %3258 = vmatprep.subr.bf16.mxu0 0
    %3259 = vmatpush1.bf16.msra.mxu0 0
    %3260 = vmatprep.subr.bf16.mxu0 0
    %3261 = vmatpush1.bf16.msra.mxu0 0
    %3262 = vmatprep.subr.bf16.mxu0 0
    %3263 = vmatpush1.bf16.msra.mxu0 %v3244
    %3264 = vmatprep.subr.bf16.mxu0 0
    %3265 = vmatpush1.bf16.msra.mxu0 %v3243
    %3266 = vmatprep.subr.bf16.mxu0 0
    %3267 = vmatpush2.bf16.msra.mxu0 0
    %3268 = vmatprep.subr.bf16.mxu0 0
    %3269 = vmatpush2.bf16.msra.mxu0 0
    %3270 = vmatprep.subr.bf16.mxu0 0
    %3271 = vmatpush2.bf16.msra.mxu0 0
    %3272 = vmatprep.subr.bf16.mxu0 0
    %3273 = vmatpush2.bf16.msra.mxu0 0
    %3274 = vmatprep.subr.bf16.mxu0 0
    %3275 = vmatpush2.bf16.msra.mxu0 0
    %3276 = vmatprep.subr.bf16.mxu0 0
    %3277 = vmatpush2.bf16.msra.mxu0 0
    %3278 = vmatprep.subr.bf16.mxu0 0
    %3279 = vmatpush2.bf16.msra.mxu0 0
    %3280 = vmatprep.subr.bf16.mxu0 0
    %3281 = vmatpush2.bf16.msra.mxu0 0
    %3282 = vmatprep.mubr.bf16.mxu0 0
    %3283 = vmatmul.mubr.bf16.gmra.mxu0 %v3248
    %v3284 = vpop.f32.mrf.mxu0
    %v3285 = vadd.f32 %v3230, %v3284
    %v3286 = vpop.f32.mrf.mxu0
    %v3287 = vpop.f32.mrf.mxu0
    %v3288 = vadd.f32 %v3230, %v3287
    %v3289 = vpop.f32.mrf.mxu0
    %3290 = vdwg.mxu0
    %v3291 = vmax.f32 %v3285, 0.0
    %v3292 = vmax.f32 %v3288, 0.0
    %v3293 = vpack.c.bf16 %v3292, %v3291
    %v3294 = vld [vmem:[#allocation11] sm:$0xf]
    %v3295 = vld [vmem:[#allocation11 + $0x4] sm:$0xf]
    %v3296 = vld [vmem:[#allocation11 + $0x8] sm:$0xf]
    %v3297 = vld [vmem:[#allocation11 + $0xc] sm:$0xf]
    %v3298 = vld [vmem:[#allocation13] sm:$0x1]
    %v3300 = vlaneseq
    %v3301 = vshrl.u32 %v3300, 7
    %v3302 = vsub.s32 0, %v3301
    %v3303 = vrot.slane %v3298, %v3302
    %v3309 = vunpack.c.l.b16 %v3294
    %v3310 = vunpack.c.l.b16 %v3295
    %v3311 = vunpack.c.l.b16 %v3296
    %v3312 = vunpack.c.l.b16 %v3297
    %v3313 = vpack.c.b16 %v3310, %v3309
    %v3314 = vpack.c.b16 %v3312, %v3311
    %v3318 = vsel %vm371, %v3293, 0
    %3320 = vmatprep.subr.bf16.mxu0 0
    %3321 = vmatpush1.bf16.msra.mxu0 0
    %3322 = vmatprep.subr.bf16.mxu0 0
    %3323 = vmatpush1.bf16.msra.mxu0 0
    %3324 = vmatprep.subr.bf16.mxu0 0
    %3325 = vmatpush1.bf16.msra.mxu0 0
    %3326 = vmatprep.subr.bf16.mxu0 0
    %3327 = vmatpush1.bf16.msra.mxu0 0
    %3328 = vmatprep.subr.bf16.mxu0 0
    %3329 = vmatpush1.bf16.msra.mxu0 0
    %3330 = vmatprep.subr.bf16.mxu0 0
    %3331 = vmatpush1.bf16.msra.mxu0 0
    %3332 = vmatprep.subr.bf16.mxu0 0
    %3333 = vmatpush1.bf16.msra.mxu0 %v3314
    %3334 = vmatprep.subr.bf16.mxu0 0
    %3335 = vmatpush1.bf16.msra.mxu0 %v3313
    %3336 = vmatprep.subr.bf16.mxu0 0
    %3337 = vmatpush2.bf16.msra.mxu0 0
    %3338 = vmatprep.subr.bf16.mxu0 0
    %3339 = vmatpush2.bf16.msra.mxu0 0
    %3340 = vmatprep.subr.bf16.mxu0 0
    %3341 = vmatpush2.bf16.msra.mxu0 0
    %3342 = vmatprep.subr.bf16.mxu0 0
    %3343 = vmatpush2.bf16.msra.mxu0 0
    %3344 = vmatprep.subr.bf16.mxu0 0
    %3345 = vmatpush2.bf16.msra.mxu0 0
    %3346 = vmatprep.subr.bf16.mxu0 0
    %3347 = vmatpush2.bf16.msra.mxu0 0
    %3348 = vmatprep.subr.bf16.mxu0 0
    %3349 = vmatpush2.bf16.msra.mxu0 0
    %3350 = vmatprep.subr.bf16.mxu0 0
    %3351 = vmatpush2.bf16.msra.mxu0 0
    %3352 = vmatprep.mubr.bf16.mxu0 0
    %3353 = vmatmul.mubr.bf16.gmra.mxu0 %v3318
    %v3354 = vpop.f32.mrf.mxu0
    %v3355 = vadd.f32 %v3303, %v3354
    %v3356 = vpop.f32.mrf.mxu0
    %v3357 = vpop.f32.mrf.mxu0
    %v3358 = vadd.f32 %v3303, %v3357
    %v3359 = vpop.f32.mrf.mxu0
    %3360 = vdwg.mxu0
    %v3361 = vpack.c.bf16 %v2910, %v2910
    %v3362 = vld [vmem:[#allocation14] sm:$0xf]
    %v3363 = vld [vmem:[#allocation14 + $0x4] sm:$0xf]
    %v3364 = vld [vmem:[#allocation14 + $0x8] sm:$0xf]
    %v3365 = vld [vmem:[#allocation14 + $0xc] sm:$0xf]
    %v3366 = vld [vmem:[#allocation16] sm:$0x1]
    %v3368 = vlaneseq
    %v3369 = vshrl.u32 %v3368, 7
    %v3370 = vsub.s32 0, %v3369
    %v3371 = vrot.slane %v3366, %v3370
    %3374 = vrot.lane.b32.xlu0 %v3361, 96
    %v3375 = vpop.permute.xlu0 %3374
    %v3380 = vunpack.c.l.b16 %v3362
    %v3381 = vunpack.c.l.b16 %v3363
    %v3382 = vunpack.c.l.b16 %v3364
    %v3383 = vunpack.c.l.b16 %v3365
    %v3384 = vpack.c.b16 %v3381, %v3380
    %v3385 = vpack.c.b16 %v3383, %v3382
    %v3389 = vsel %vm371, %v3375, 0
    %3391 = vmatprep.subr.bf16.mxu0 0
    %3392 = vmatpush1.bf16.msra.mxu0 0
    %3393 = vmatprep.subr.bf16.mxu0 0
    %3394 = vmatpush1.bf16.msra.mxu0 0
    %3395 = vmatprep.subr.bf16.mxu0 0
    %3396 = vmatpush1.bf16.msra.mxu0 0
    %3397 = vmatprep.subr.bf16.mxu0 0
    %3398 = vmatpush1.bf16.msra.mxu0 0
    %3399 = vmatprep.subr.bf16.mxu0 0
    %3400 = vmatpush1.bf16.msra.mxu0 0
    %3401 = vmatprep.subr.bf16.mxu0 0
    %3402 = vmatpush1.bf16.msra.mxu0 0
    %3403 = vmatprep.subr.bf16.mxu0 0
    %3404 = vmatpush1.bf16.msra.mxu0 %v3385
    %3405 = vmatprep.subr.bf16.mxu0 0
    %3406 = vmatpush1.bf16.msra.mxu0 %v3384
    %3407 = vmatprep.subr.bf16.mxu0 0
    %3408 = vmatpush2.bf16.msra.mxu0 0
    %3409 = vmatprep.subr.bf16.mxu0 0
    %3410 = vmatpush2.bf16.msra.mxu0 0
    %3411 = vmatprep.subr.bf16.mxu0 0
    %3412 = vmatpush2.bf16.msra.mxu0 0
    %3413 = vmatprep.subr.bf16.mxu0 0
    %3414 = vmatpush2.bf16.msra.mxu0 0
    %3415 = vmatprep.subr.bf16.mxu0 0
    %3416 = vmatpush2.bf16.msra.mxu0 0
    %3417 = vmatprep.subr.bf16.mxu0 0
    %3418 = vmatpush2.bf16.msra.mxu0 0
    %3419 = vmatprep.subr.bf16.mxu0 0
    %3420 = vmatpush2.bf16.msra.mxu0 0
    %3421 = vmatprep.subr.bf16.mxu0 0
    %3422 = vmatpush2.bf16.msra.mxu0 0
    %3423 = vmatprep.mubr.bf16.mxu0 0
    %3424 = vmatmul.mubr.bf16.gmra.mxu0 %v3389
    %v3425 = vpop.f32.mrf.mxu0
    %v3426 = vadd.f32 %v3371, %v3425
    %v3427 = vpop.f32.mrf.mxu0
    %v3428 = vpop.f32.mrf.mxu0
    %v3429 = vpop.f32.mrf.mxu0
    %3430 = vdwg.mxu0
    %v3431 = vmax.f32 %v3426, 0.0
    %v3432 = vpack.c.bf16 %v3431, %v3431
    %v3433 = vld [vmem:[%s9] sm:$0xf]
    %v3434 = vld [vmem:[%s9 + $0x4] sm:$0xf]
    %v3435 = vld [vmem:[%s9 + $0x8] sm:$0xf]
    %v3436 = vld [vmem:[%s9 + $0xc] sm:$0xf]
    %v3437 = vld [vmem:[#allocation17] sm:$0x1]
    %v3439 = vlaneseq
    %v3440 = vshrl.u32 %v3439, 7
    %v3441 = vsub.s32 0, %v3440
    %v3442 = vrot.slane %v3437, %v3441
    %v3448 = vunpack.c.l.b16 %v3433
    %v3449 = vunpack.c.l.b16 %v3434
    %v3450 = vunpack.c.l.b16 %v3435
    %v3451 = vunpack.c.l.b16 %v3436
    %v3452 = vpack.c.b16 %v3449, %v3448
    %v3453 = vpack.c.b16 %v3451, %v3450
    %v3457 = vsel %vm371, %v3432, 0
    %3459 = vmatprep.subr.bf16.mxu0 0
    %3460 = vmatpush1.bf16.msra.mxu0 0
    %3461 = vmatprep.subr.bf16.mxu0 0
    %3462 = vmatpush1.bf16.msra.mxu0 0
    %3463 = vmatprep.subr.bf16.mxu0 0
    %3464 = vmatpush1.bf16.msra.mxu0 0
    %3465 = vmatprep.subr.bf16.mxu0 0
    %3466 = vmatpush1.bf16.msra.mxu0 0
    %3467 = vmatprep.subr.bf16.mxu0 0
    %3468 = vmatpush1.bf16.msra.mxu0 0
    %3469 = vmatprep.subr.bf16.mxu0 0
    %3470 = vmatpush1.bf16.msra.mxu0 0
    %3471 = vmatprep.subr.bf16.mxu0 0
    %3472 = vmatpush1.bf16.msra.mxu0 %v3453
    %3473 = vmatprep.subr.bf16.mxu0 0
    %3474 = vmatpush1.bf16.msra.mxu0 %v3452
    %3475 = vmatprep.subr.bf16.mxu0 0
    %3476 = vmatpush2.bf16.msra.mxu0 0
    %3477 = vmatprep.subr.bf16.mxu0 0
    %3478 = vmatpush2.bf16.msra.mxu0 0
    %3479 = vmatprep.subr.bf16.mxu0 0
    %3480 = vmatpush2.bf16.msra.mxu0 0
    %3481 = vmatprep.subr.bf16.mxu0 0
    %3482 = vmatpush2.bf16.msra.mxu0 0
    %3483 = vmatprep.subr.bf16.mxu0 0
    %3484 = vmatpush2.bf16.msra.mxu0 0
    %3485 = vmatprep.subr.bf16.mxu0 0
    %3486 = vmatpush2.bf16.msra.mxu0 0
    %3487 = vmatprep.subr.bf16.mxu0 0
    %3488 = vmatpush2.bf16.msra.mxu0 0
    %3489 = vmatprep.subr.bf16.mxu0 0
    %3490 = vmatpush2.bf16.msra.mxu0 0
    %3491 = vmatprep.mubr.bf16.mxu0 0
    %3492 = vmatmul.mubr.bf16.gmra.mxu0 %v3457
    %v3493 = vpop.f32.mrf.mxu0
    %v3494 = vadd.f32 %v3442, %v3493
    %v3495 = vpop.f32.mrf.mxu0
    %v3496 = vpop.f32.mrf.mxu0
    %v3497 = vpop.f32.mrf.mxu0
    %3498 = vdwg.mxu0
    %v3499 = vrot.slane %v3212, 1
    %v3500 = vrot.slane %v3214, 1
    %v3501 = vsel %vm677, %v3499, %v3500
    %v3502 = vsel %vm677, %v3500, %v3499
    %v3503 = vrot.slane %v3212, 7
    %v3504 = vrot.slane %v3214, 7
    %v3505 = vsel %vm682, %v3503, %v3504
    %v3506 = vsel %vm682, %v3504, %v3503
    %v3507 = vsel %vm685, %v3501, %v3506
    %v3508 = vsel %vm686, %v3502, %v3505
    %v3509 = vpack.c.bf16 %v3508, %v3507
    %v3510 = vld [vmem:[#allocation19] sm:$0xf]
    %v3511 = vld [vmem:[#allocation19 + $0x4] sm:$0xf]
    %v3512 = vld [vmem:[#allocation19 + $0x8] sm:$0xf]
    %v3513 = vld [vmem:[#allocation19 + $0xc] sm:$0xf]
    %v3514 = vld [vmem:[#allocation20] sm:$0x1]
    %v3516 = vlaneseq
    %v3517 = vshrl.u32 %v3516, 7
    %v3518 = vsub.s32 0, %v3517
    %v3519 = vrot.slane %v3514, %v3518
    %v3525 = vunpack.c.l.b16 %v3510
    %v3526 = vunpack.c.l.b16 %v3511
    %v3527 = vunpack.c.l.b16 %v3512
    %v3528 = vunpack.c.l.b16 %v3513
    %v3529 = vpack.c.b16 %v3526, %v3525
    %v3530 = vpack.c.b16 %v3528, %v3527
    %v3534 = vsel %vm371, %v3509, 0
    %3536 = vmatprep.subr.bf16.mxu0 0
    %3537 = vmatpush1.bf16.msra.mxu0 0
    %3538 = vmatprep.subr.bf16.mxu0 0
    %3539 = vmatpush1.bf16.msra.mxu0 0
    %3540 = vmatprep.subr.bf16.mxu0 0
    %3541 = vmatpush1.bf16.msra.mxu0 0
    %3542 = vmatprep.subr.bf16.mxu0 0
    %3543 = vmatpush1.bf16.msra.mxu0 0
    %3544 = vmatprep.subr.bf16.mxu0 0
    %3545 = vmatpush1.bf16.msra.mxu0 0
    %3546 = vmatprep.subr.bf16.mxu0 0
    %3547 = vmatpush1.bf16.msra.mxu0 0
    %3548 = vmatprep.subr.bf16.mxu0 0
    %3549 = vmatpush1.bf16.msra.mxu0 %v3530
    %3550 = vmatprep.subr.bf16.mxu0 0
    %3551 = vmatpush1.bf16.msra.mxu0 %v3529
    %3552 = vmatprep.subr.bf16.mxu0 0
    %3553 = vmatpush2.bf16.msra.mxu0 0
    %3554 = vmatprep.subr.bf16.mxu0 0
    %3555 = vmatpush2.bf16.msra.mxu0 0
    %3556 = vmatprep.subr.bf16.mxu0 0
    %3557 = vmatpush2.bf16.msra.mxu0 0
    %3558 = vmatprep.subr.bf16.mxu0 0
    %3559 = vmatpush2.bf16.msra.mxu0 0
    %3560 = vmatprep.subr.bf16.mxu0 0
    %3561 = vmatpush2.bf16.msra.mxu0 0
    %3562 = vmatprep.subr.bf16.mxu0 0
    %3563 = vmatpush2.bf16.msra.mxu0 0
    %3564 = vmatprep.subr.bf16.mxu0 0
    %3565 = vmatpush2.bf16.msra.mxu0 0
    %3566 = vmatprep.subr.bf16.mxu0 0
    %3567 = vmatpush2.bf16.msra.mxu0 0
    %3568 = vmatprep.mubr.bf16.mxu0 0
    %3569 = vmatmul.mubr.bf16.gmra.mxu0 %v3534
    %v3570 = vpop.f32.mrf.mxu0
    %v3571 = vadd.f32 %v3519, %v3570
    %v3572 = vpop.f32.mrf.mxu0
    %v3573 = vpop.f32.mrf.mxu0
    %v3574 = vadd.f32 %v3519, %v3573
    %v3575 = vpop.f32.mrf.mxu0
    %3576 = vdwg.mxu0
    %v3577 = vmax.f32 %v3571, 0.0
    %v3578 = vmax.f32 %v3574, 0.0
    %v3579 = vpack.c.bf16 %v3578, %v3577
    %v3580 = vld [vmem:[#allocation22] sm:$0xf]
    %v3581 = vld [vmem:[#allocation22 + $0x4] sm:$0xf]
    %v3582 = vld [vmem:[#allocation22 + $0x8] sm:$0xf]
    %v3583 = vld [vmem:[#allocation22 + $0xc] sm:$0xf]
    %v3584 = vld [vmem:[#allocation23] sm:$0x1]
    %v3586 = vlaneseq
    %v3587 = vshrl.u32 %v3586, 7
    %v3588 = vsub.s32 0, %v3587
    %v3589 = vrot.slane %v3584, %v3588
    %v3595 = vunpack.c.l.b16 %v3580
    %v3596 = vunpack.c.l.b16 %v3581
    %v3597 = vunpack.c.l.b16 %v3582
    %v3598 = vunpack.c.l.b16 %v3583
    %v3599 = vpack.c.b16 %v3596, %v3595
    %v3600 = vpack.c.b16 %v3598, %v3597
    %v3604 = vsel %vm371, %v3579, 0
    %3606 = vmatprep.subr.bf16.mxu0 0
    %3607 = vmatpush1.bf16.msra.mxu0 0
    %3608 = vmatprep.subr.bf16.mxu0 0
    %3609 = vmatpush1.bf16.msra.mxu0 0
    %3610 = vmatprep.subr.bf16.mxu0 0
    %3611 = vmatpush1.bf16.msra.mxu0 0
    %3612 = vmatprep.subr.bf16.mxu0 0
    %3613 = vmatpush1.bf16.msra.mxu0 0
    %3614 = vmatprep.subr.bf16.mxu0 0
    %3615 = vmatpush1.bf16.msra.mxu0 0
    %3616 = vmatprep.subr.bf16.mxu0 0
    %3617 = vmatpush1.bf16.msra.mxu0 0
    %3618 = vmatprep.subr.bf16.mxu0 0
    %3619 = vmatpush1.bf16.msra.mxu0 %v3600
    %3620 = vmatprep.subr.bf16.mxu0 0
    %3621 = vmatpush1.bf16.msra.mxu0 %v3599
    %3622 = vmatprep.subr.bf16.mxu0 0
    %3623 = vmatpush2.bf16.msra.mxu0 0
    %3624 = vmatprep.subr.bf16.mxu0 0
    %3625 = vmatpush2.bf16.msra.mxu0 0
    %3626 = vmatprep.subr.bf16.mxu0 0
    %3627 = vmatpush2.bf16.msra.mxu0 0
    %3628 = vmatprep.subr.bf16.mxu0 0
    %3629 = vmatpush2.bf16.msra.mxu0 0
    %3630 = vmatprep.subr.bf16.mxu0 0
    %3631 = vmatpush2.bf16.msra.mxu0 0
    %3632 = vmatprep.subr.bf16.mxu0 0
    %3633 = vmatpush2.bf16.msra.mxu0 0
    %3634 = vmatprep.subr.bf16.mxu0 0
    %3635 = vmatpush2.bf16.msra.mxu0 0
    %3636 = vmatprep.subr.bf16.mxu0 0
    %3637 = vmatpush2.bf16.msra.mxu0 0
    %3638 = vmatprep.mubr.bf16.mxu0 0
    %3639 = vmatmul.mubr.bf16.gmra.mxu0 %v3604
    %v3640 = vpop.f32.mrf.mxu0
    %v3641 = vadd.f32 %v3589, %v3640
    %v3642 = vpop.f32.mrf.mxu0
    %v3643 = vpop.f32.mrf.mxu0
    %v3644 = vadd.f32 %v3589, %v3643
    %v3645 = vpop.f32.mrf.mxu0
    %3646 = vdwg.mxu0
    %v3647 = vpack.c.bf16 %v3358, %v3355
    %3648 = vmatprep.subr.bf16.mxu0 0
    %3649 = vmatpush1.bf16.msra.mxu0 0
    %3650 = vmatprep.subr.bf16.mxu0 0
    %3651 = vmatpush1.bf16.msra.mxu0 0
    %3652 = vmatprep.subr.bf16.mxu0 0
    %3653 = vmatpush1.bf16.msra.mxu0 0
    %3654 = vmatprep.subr.bf16.mxu0 0
    %3655 = vmatpush1.bf16.msra.mxu0 0
    %3656 = vmatprep.subr.bf16.mxu0 0
    %3657 = vmatpush1.bf16.msra.mxu0 0
    %3658 = vmatprep.subr.bf16.mxu0 0
    %3659 = vmatpush1.bf16.msra.mxu0 0
    %3660 = vmatprep.subr.bf16.mxu0 0
    %3661 = vmatpush1.bf16.msra.mxu0 0
    %3662 = vmatprep.subr.bf16.mxu0 0
    %3663 = vmatpush1.bf16.msra.mxu0 %v3647
    %3664 = vmatprep.subr.bf16.mxu0 0
    %3665 = vmatpush2.bf16.msra.mxu0 0
    %3666 = vmatprep.subr.bf16.mxu0 0
    %3667 = vmatpush2.bf16.msra.mxu0 0
    %3668 = vmatprep.subr.bf16.mxu0 0
    %3669 = vmatpush2.bf16.msra.mxu0 0
    %3670 = vmatprep.subr.bf16.mxu0 0
    %3671 = vmatpush2.bf16.msra.mxu0 0
    %3672 = vmatprep.subr.bf16.mxu0 0
    %3673 = vmatpush2.bf16.msra.mxu0 0
    %3674 = vmatprep.subr.bf16.mxu0 0
    %3675 = vmatpush2.bf16.msra.mxu0 0
    %3676 = vmatprep.subr.bf16.mxu0 0
    %3677 = vmatpush2.bf16.msra.mxu0 0
    %3678 = vmatprep.subr.bf16.mxu0 0
    %3679 = vmatpush2.bf16.msra.mxu0 0
    %3680 = vmatprep.mubr.bf16.mxu0 0
    %3681 = vmatmul.mubr.bf16.gmra.mxu0 %v830
    %v3682 = vpop.f32.mrf.mxu0
    %v3683 = vadd.f32 0.0, %v3682
    %v3684 = vpop.f32.mrf.mxu0
    %v3685 = vpop.f32.mrf.mxu0
    %v3686 = vpop.f32.mrf.mxu0
    %3687 = vdwg.mxu0
    %v3688 = vpack.c.bf16 %v3683, %v3683
    %v3689 = vld [vmem:[#allocation25] sm:$0xf]
    %v3690 = vld [vmem:[#allocation25 + $0x4] sm:$0xf]
    %v3691 = vld [vmem:[#allocation25 + $0x8] sm:$0xf]
    %v3692 = vld [vmem:[#allocation25 + $0xc] sm:$0xf]
    %v3693 = vld [vmem:[#allocation28] sm:$0x1]
    %v3695 = vlaneseq
    %v3696 = vshrl.u32 %v3695, 7
    %v3697 = vsub.s32 0, %v3696
    %v3698 = vrot.slane %v3693, %v3697
    %v3704 = vunpack.c.l.b16 %v3689
    %v3705 = vunpack.c.l.b16 %v3690
    %v3706 = vunpack.c.l.b16 %v3691
    %v3707 = vunpack.c.l.b16 %v3692
    %v3708 = vpack.c.b16 %v3705, %v3704
    %v3709 = vpack.c.b16 %v3707, %v3706
    %v3713 = vsel %vm371, %v3688, 0
    %3715 = vmatprep.subr.bf16.mxu0 0
    %3716 = vmatpush1.bf16.msra.mxu0 0
    %3717 = vmatprep.subr.bf16.mxu0 0
    %3718 = vmatpush1.bf16.msra.mxu0 0
    %3719 = vmatprep.subr.bf16.mxu0 0
    %3720 = vmatpush1.bf16.msra.mxu0 0
    %3721 = vmatprep.subr.bf16.mxu0 0
    %3722 = vmatpush1.bf16.msra.mxu0 0
    %3723 = vmatprep.subr.bf16.mxu0 0
    %3724 = vmatpush1.bf16.msra.mxu0 0
    %3725 = vmatprep.subr.bf16.mxu0 0
    %3726 = vmatpush1.bf16.msra.mxu0 0
    %3727 = vmatprep.subr.bf16.mxu0 0
    %3728 = vmatpush1.bf16.msra.mxu0 %v3709
    %3729 = vmatprep.subr.bf16.mxu0 0
    %3730 = vmatpush1.bf16.msra.mxu0 %v3708
    %3731 = vmatprep.subr.bf16.mxu0 0
    %3732 = vmatpush2.bf16.msra.mxu0 0
    %3733 = vmatprep.subr.bf16.mxu0 0
    %3734 = vmatpush2.bf16.msra.mxu0 0
    %3735 = vmatprep.subr.bf16.mxu0 0
    %3736 = vmatpush2.bf16.msra.mxu0 0
    %3737 = vmatprep.subr.bf16.mxu0 0
    %3738 = vmatpush2.bf16.msra.mxu0 0
    %3739 = vmatprep.subr.bf16.mxu0 0
    %3740 = vmatpush2.bf16.msra.mxu0 0
    %3741 = vmatprep.subr.bf16.mxu0 0
    %3742 = vmatpush2.bf16.msra.mxu0 0
    %3743 = vmatprep.subr.bf16.mxu0 0
    %3744 = vmatpush2.bf16.msra.mxu0 0
    %3745 = vmatprep.subr.bf16.mxu0 0
    %3746 = vmatpush2.bf16.msra.mxu0 0
    %3747 = vmatprep.mubr.bf16.mxu0 0
    %3748 = vmatmul.mubr.bf16.gmra.mxu0 %v3713
    %v3749 = vpop.f32.mrf.mxu0
    %v3750 = vadd.f32 %v3698, %v3749
    %v3751 = vpop.f32.mrf.mxu0
    %v3752 = vpop.f32.mrf.mxu0
    %v3753 = vpop.f32.mrf.mxu0
    %3754 = vdwg.mxu0
    %v3755 = vld [vmem:[#allocation26] sm:$0xf]
    %v3756 = vld [vmem:[#allocation26 + $0x4] sm:$0xf]
    %v3757 = vld [vmem:[#allocation26 + $0x8] sm:$0xf]
    %v3758 = vld [vmem:[#allocation26 + $0xc] sm:$0xf]
    %v3759 = vld [vmem:[#allocation29] sm:$0x1]
    %v3761 = vlaneseq
    %v3762 = vshrl.u32 %v3761, 7
    %v3763 = vsub.s32 0, %v3762
    %v3764 = vrot.slane %v3759, %v3763
    %v3770 = vunpack.c.l.b16 %v3755
    %v3771 = vunpack.c.l.b16 %v3756
    %v3772 = vunpack.c.l.b16 %v3757
    %v3773 = vunpack.c.l.b16 %v3758
    %v3774 = vpack.c.b16 %v3771, %v3770
    %v3775 = vpack.c.b16 %v3773, %v3772
    %3778 = vmatprep.subr.bf16.mxu0 0
    %3779 = vmatpush1.bf16.msra.mxu0 0
    %3780 = vmatprep.subr.bf16.mxu0 0
    %3781 = vmatpush1.bf16.msra.mxu0 0
    %3782 = vmatprep.subr.bf16.mxu0 0
    %3783 = vmatpush1.bf16.msra.mxu0 0
    %3784 = vmatprep.subr.bf16.mxu0 0
    %3785 = vmatpush1.bf16.msra.mxu0 0
    %3786 = vmatprep.subr.bf16.mxu0 0
    %3787 = vmatpush1.bf16.msra.mxu0 0
    %3788 = vmatprep.subr.bf16.mxu0 0
    %3789 = vmatpush1.bf16.msra.mxu0 0
    %3790 = vmatprep.subr.bf16.mxu0 0
    %3791 = vmatpush1.bf16.msra.mxu0 %v3775
    %3792 = vmatprep.subr.bf16.mxu0 0
    %3793 = vmatpush1.bf16.msra.mxu0 %v3774
    %3794 = vmatprep.subr.bf16.mxu0 0
    %3795 = vmatpush2.bf16.msra.mxu0 0
    %3796 = vmatprep.subr.bf16.mxu0 0
    %3797 = vmatpush2.bf16.msra.mxu0 0
    %3798 = vmatprep.subr.bf16.mxu0 0
    %3799 = vmatpush2.bf16.msra.mxu0 0
    %3800 = vmatprep.subr.bf16.mxu0 0
    %3801 = vmatpush2.bf16.msra.mxu0 0
    %3802 = vmatprep.subr.bf16.mxu0 0
    %3803 = vmatpush2.bf16.msra.mxu0 0
    %3804 = vmatprep.subr.bf16.mxu0 0
    %3805 = vmatpush2.bf16.msra.mxu0 0
    %3806 = vmatprep.subr.bf16.mxu0 0
    %3807 = vmatpush2.bf16.msra.mxu0 0
    %3808 = vmatprep.subr.bf16.mxu0 0
    %3809 = vmatpush2.bf16.msra.mxu0 0
    %3810 = vmatprep.mubr.bf16.mxu0 0
    %3811 = vmatmul.mubr.bf16.gmra.mxu0 %v3389
    %v3812 = vpop.f32.mrf.mxu0
    %v3813 = vadd.f32 %v3764, %v3812
    %v3814 = vpop.f32.mrf.mxu0
    %v3815 = vpop.f32.mrf.mxu0
    %v3816 = vpop.f32.mrf.mxu0
    %3817 = vdwg.mxu0
    %v3818 = vadd.f32 %v3750, %v3813
    %v3819 = vxor.u32 %v3818, 2147483648
    %v3820 = vmul.f32 %v3819, 1.442695
    %v3821 = vpow.pop %v3820
    %v3822 = vadd.f32 %v3821, 1.0
    %v3823 = vrcp.pop %v3822
    %v3824 = vmul.f32 1.0, %v3823
    %3826 = vrot.lane.b32.xlu0 %v3813, 64
    %v3827 = vpop.permute.xlu0 %3826
    %v3829 = vmul.f32 %v3824, %v3827
    %3831 = vrot.lane.b32.xlu0 %v3829, 64
    %v3832 = vpop.permute.xlu0 %3831
    %v3834 = vadd.f32 %v3750, %v3832
    %v3835 = vtanh.pop %v3834
    %v3836 = vsub.f32 1.0, %v3824
    %3838 = vrot.lane.b32.xlu0 %v3835, 96
    %v3839 = vpop.permute.xlu0 %3838
    %v3841 = vmul.f32 %v3836, %v3839
    %v3842 = vmul.f32 %v3824, %v2910
    %v3843 = vadd.f32 %v3841, %v3842
    %3845 = vrot.lane.b32.xlu0 %v3843, 96
    %v3846 = vpop.permute.xlu0 %3845
    %s3848 = scalar_lea.vmem [#allocation35], 32
    %3849 = vst.msk [vmem:[%s3848] sm:$0xff] %vm371, %v3846
    %v3850 = vpack.c.bf16 %v3494, %v3494
    %v3852 = vsel %vm1043, %v3850, 0
    %3854 = vmatprep.subr.bf16.mxu0 0
    %3855 = vmatpush1.bf16.msra.mxu0 0
    %3856 = vmatprep.subr.bf16.mxu0 0
    %3857 = vmatpush1.bf16.msra.mxu0 0
    %3858 = vmatprep.subr.bf16.mxu0 0
    %3859 = vmatpush1.bf16.msra.mxu0 0
    %3860 = vmatprep.subr.bf16.mxu0 0
    %3861 = vmatpush1.bf16.msra.mxu0 0
    %3862 = vmatprep.subr.bf16.mxu0 0
    %3863 = vmatpush1.bf16.msra.mxu0 0
    %3864 = vmatprep.subr.bf16.mxu0 0
    %3865 = vmatpush1.bf16.msra.mxu0 0
    %3866 = vmatprep.subr.bf16.mxu0 0
    %3867 = vmatpush1.bf16.msra.mxu0 0
    %3868 = vmatprep.subr.bf16.mxu0 0
    %3869 = vmatpush1.bf16.msra.mxu0 %v3852
    %3870 = vmatprep.subr.bf16.mxu0 0
    %3871 = vmatpush2.bf16.msra.mxu0 0
    %3872 = vmatprep.subr.bf16.mxu0 0
    %3873 = vmatpush2.bf16.msra.mxu0 0
    %3874 = vmatprep.subr.bf16.mxu0 0
    %3875 = vmatpush2.bf16.msra.mxu0 0
    %3876 = vmatprep.subr.bf16.mxu0 0
    %3877 = vmatpush2.bf16.msra.mxu0 0
    %3878 = vmatprep.subr.bf16.mxu0 0
    %3879 = vmatpush2.bf16.msra.mxu0 0
    %3880 = vmatprep.subr.bf16.mxu0 0
    %3881 = vmatpush2.bf16.msra.mxu0 0
    %3882 = vmatprep.subr.bf16.mxu0 0
    %3883 = vmatpush2.bf16.msra.mxu0 0
    %3884 = vmatprep.subr.bf16.mxu0 0
    %3885 = vmatpush2.bf16.msra.mxu0 0
    %3886 = vmatprep.mubr.bf16.mxu0 0
    %3887 = vmatmul.mubr.bf16.gmra.mxu0 %v1041
    %v3888 = vpop.f32.mrf.mxu0
    %v3889 = vadd.f32 0.0, %v3888
    %v3890 = vpop.f32.mrf.mxu0
    %v3891 = vpop.f32.mrf.mxu0
    %v3892 = vadd.f32 0.0, %v3891
    %v3893 = vpop.f32.mrf.mxu0
    %3894 = vdwg.mxu0
    %v3895 = vpack.c.bf16 %v3892, %v3889
    %v3896 = vld [vmem:[%s19] sm:$0xf]
    %v3897 = vld [vmem:[%s19 + $0x4] sm:$0xf]
    %v3898 = vld [vmem:[%s19 + $0x8] sm:$0xf]
    %v3899 = vld [vmem:[%s19 + $0xc] sm:$0xf]
    %v3900 = vpack.c.bf16 %v3644, %v3641
    %v3901 = vld [vmem:[#allocation31] sm:$0xf]
    %v3902 = vld [vmem:[#allocation31 + $0x4] sm:$0xf]
    %v3903 = vld [vmem:[#allocation31 + $0x8] sm:$0xf]
    %v3904 = vld [vmem:[#allocation31 + $0xc] sm:$0xf]
    %v3909 = vunpack.c.l.b16 %v3901
    %v3910 = vunpack.c.l.b16 %v3902
    %v3911 = vunpack.c.l.b16 %v3903
    %v3912 = vunpack.c.l.b16 %v3904
    %v3913 = vpack.c.b16 %v3910, %v3909
    %v3914 = vpack.c.b16 %v3912, %v3911
    %v3918 = vsel %vm371, %v3900, 0
    %3920 = vmatprep.subr.bf16.mxu0 0
    %3921 = vmatpush1.bf16.msra.mxu0 0
    %3922 = vmatprep.subr.bf16.mxu0 0
    %3923 = vmatpush1.bf16.msra.mxu0 0
    %3924 = vmatprep.subr.bf16.mxu0 0
    %3925 = vmatpush1.bf16.msra.mxu0 0
    %3926 = vmatprep.subr.bf16.mxu0 0
    %3927 = vmatpush1.bf16.msra.mxu0 0
    %3928 = vmatprep.subr.bf16.mxu0 0
    %3929 = vmatpush1.bf16.msra.mxu0 0
    %3930 = vmatprep.subr.bf16.mxu0 0
    %3931 = vmatpush1.bf16.msra.mxu0 0
    %3932 = vmatprep.subr.bf16.mxu0 0
    %3933 = vmatpush1.bf16.msra.mxu0 %v3914
    %3934 = vmatprep.subr.bf16.mxu0 0
    %3935 = vmatpush1.bf16.msra.mxu0 %v3913
    %3936 = vmatprep.subr.bf16.mxu0 0
    %3937 = vmatpush2.bf16.msra.mxu0 0
    %3938 = vmatprep.subr.bf16.mxu0 0
    %3939 = vmatpush2.bf16.msra.mxu0 0
    %3940 = vmatprep.subr.bf16.mxu0 0
    %3941 = vmatpush2.bf16.msra.mxu0 0
    %3942 = vmatprep.subr.bf16.mxu0 0
    %3943 = vmatpush2.bf16.msra.mxu0 0
    %3944 = vmatprep.subr.bf16.mxu0 0
    %3945 = vmatpush2.bf16.msra.mxu0 0
    %3946 = vmatprep.subr.bf16.mxu0 0
    %3947 = vmatpush2.bf16.msra.mxu0 0
    %3948 = vmatprep.subr.bf16.mxu0 0
    %3949 = vmatpush2.bf16.msra.mxu0 0
    %3950 = vmatprep.subr.bf16.mxu0 0
    %3951 = vmatpush2.bf16.msra.mxu0 0
    %3952 = vmatprep.mubr.bf16.mxu0 0
    %3953 = vmatmul.mubr.bf16.gmra.mxu0 %v3918
    %v3954 = vpop.f32.mrf.mxu0
    %v3955 = vadd.f32 0.0, %v3954
    %v3956 = vpop.f32.mrf.mxu0
    %v3957 = vpop.f32.mrf.mxu0
    %v3958 = vadd.f32 0.0, %v3957
    %v3959 = vpop.f32.mrf.mxu0
    %3960 = vdwg.mxu0
    %v3965 = vunpack.c.l.b16 %v3896
    %v3966 = vunpack.c.l.b16 %v3897
    %v3967 = vunpack.c.l.b16 %v3898
    %v3968 = vunpack.c.l.b16 %v3899
    %v3969 = vpack.c.b16 %v3966, %v3965
    %v3970 = vpack.c.b16 %v3968, %v3967
    %v3974 = vsel %vm371, %v3895, 0
    %3976 = vmatprep.subr.bf16.mxu0 0
    %3977 = vmatpush1.bf16.msra.mxu0 0
    %3978 = vmatprep.subr.bf16.mxu0 0
    %3979 = vmatpush1.bf16.msra.mxu0 0
    %3980 = vmatprep.subr.bf16.mxu0 0
    %3981 = vmatpush1.bf16.msra.mxu0 0
    %3982 = vmatprep.subr.bf16.mxu0 0
    %3983 = vmatpush1.bf16.msra.mxu0 0
    %3984 = vmatprep.subr.bf16.mxu0 0
    %3985 = vmatpush1.bf16.msra.mxu0 0
    %3986 = vmatprep.subr.bf16.mxu0 0
    %3987 = vmatpush1.bf16.msra.mxu0 0
    %3988 = vmatprep.subr.bf16.mxu0 0
    %3989 = vmatpush1.bf16.msra.mxu0 %v3970
    %3990 = vmatprep.subr.bf16.mxu0 0
    %3991 = vmatpush1.bf16.msra.mxu0 %v3969
    %3992 = vmatprep.subr.bf16.mxu0 0
    %3993 = vmatpush2.bf16.msra.mxu0 0
    %3994 = vmatprep.subr.bf16.mxu0 0
    %3995 = vmatpush2.bf16.msra.mxu0 0
    %3996 = vmatprep.subr.bf16.mxu0 0
    %3997 = vmatpush2.bf16.msra.mxu0 0
    %3998 = vmatprep.subr.bf16.mxu0 0
    %3999 = vmatpush2.bf16.msra.mxu0 0
    %4000 = vmatprep.subr.bf16.mxu0 0
    %4001 = vmatpush2.bf16.msra.mxu0 0
    %4002 = vmatprep.subr.bf16.mxu0 0
    %4003 = vmatpush2.bf16.msra.mxu0 0
    %4004 = vmatprep.subr.bf16.mxu0 0
    %4005 = vmatpush2.bf16.msra.mxu0 0
    %4006 = vmatprep.subr.bf16.mxu0 0
    %4007 = vmatpush2.bf16.msra.mxu0 0
    %4008 = vmatprep.mubr.bf16.mxu0 0
    %4009 = vmatmul.mubr.bf16.gmra.mxu0 %v3974
    %v4010 = vpop.f32.mrf.mxu0
    %v4011 = vadd.f32 %v3955, %v4010
    %v4012 = vpop.f32.mrf.mxu0
    %v4013 = vpop.f32.mrf.mxu0
    %v4014 = vadd.f32 %v3958, %v4013
    %v4015 = vpop.f32.mrf.mxu0
    %4016 = vdwg.mxu0
    %v4017 = vld [vmem:[%s22] sm:$0x1]
    %v4019 = vlaneseq
    %v4020 = vshrl.u32 %v4019, 7
    %v4021 = vsub.s32 0, %v4020
    %v4022 = vrot.slane %v4017, %v4021
    %v4024 = vadd.f32 %v4011, %v4022
    %v4025 = vadd.f32 %v4014, %v4022
    %v4026 = vld [vmem:[#allocation32] sm:$0xf]
    %v4027 = vld [vmem:[#allocation32 + $0x4] sm:$0xf]
    %v4028 = vld [vmem:[#allocation32 + $0x8] sm:$0xf]
    %v4029 = vld [vmem:[#allocation32 + $0xc] sm:$0xf]
    %v4030 = vld [vmem:[%s23] sm:$0x1]
    %v4032 = vlaneseq
    %v4033 = vshrl.u32 %v4032, 7
    %v4034 = vsub.s32 0, %v4033
    %v4035 = vrot.slane %v4030, %v4034
    %v4041 = vunpack.c.l.b16 %v4026
    %v4042 = vunpack.c.l.b16 %v4027
    %v4043 = vunpack.c.l.b16 %v4028
    %v4044 = vunpack.c.l.b16 %v4029
    %v4045 = vpack.c.b16 %v4042, %v4041
    %v4046 = vpack.c.b16 %v4044, %v4043
    %4049 = vmatprep.subr.bf16.mxu0 0
    %4050 = vmatpush1.bf16.msra.mxu0 0
    %4051 = vmatprep.subr.bf16.mxu0 0
    %4052 = vmatpush1.bf16.msra.mxu0 0
    %4053 = vmatprep.subr.bf16.mxu0 0
    %4054 = vmatpush1.bf16.msra.mxu0 0
    %4055 = vmatprep.subr.bf16.mxu0 0
    %4056 = vmatpush1.bf16.msra.mxu0 0
    %4057 = vmatprep.subr.bf16.mxu0 0
    %4058 = vmatpush1.bf16.msra.mxu0 0
    %4059 = vmatprep.subr.bf16.mxu0 0
    %4060 = vmatpush1.bf16.msra.mxu0 0
    %4061 = vmatprep.subr.bf16.mxu0 0
    %4062 = vmatpush1.bf16.msra.mxu0 %v4046
    %4063 = vmatprep.subr.bf16.mxu0 0
    %4064 = vmatpush1.bf16.msra.mxu0 %v4045
    %4065 = vmatprep.subr.bf16.mxu0 0
    %4066 = vmatpush2.bf16.msra.mxu0 0
    %4067 = vmatprep.subr.bf16.mxu0 0
    %4068 = vmatpush2.bf16.msra.mxu0 0
    %4069 = vmatprep.subr.bf16.mxu0 0
    %4070 = vmatpush2.bf16.msra.mxu0 0
    %4071 = vmatprep.subr.bf16.mxu0 0
    %4072 = vmatpush2.bf16.msra.mxu0 0
    %4073 = vmatprep.subr.bf16.mxu0 0
    %4074 = vmatpush2.bf16.msra.mxu0 0
    %4075 = vmatprep.subr.bf16.mxu0 0
    %4076 = vmatpush2.bf16.msra.mxu0 0
    %4077 = vmatprep.subr.bf16.mxu0 0
    %4078 = vmatpush2.bf16.msra.mxu0 0
    %4079 = vmatprep.subr.bf16.mxu0 0
    %4080 = vmatpush2.bf16.msra.mxu0 0
    %4081 = vmatprep.mubr.bf16.mxu0 0
    %4082 = vmatmul.mubr.bf16.gmra.mxu0 %v3248
    %v4083 = vpop.f32.mrf.mxu0
    %v4084 = vadd.f32 %v4035, %v4083
    %v4085 = vpop.f32.mrf.mxu0
    %v4086 = vpop.f32.mrf.mxu0
    %v4087 = vadd.f32 %v4035, %v4086
    %v4088 = vpop.f32.mrf.mxu0
    %4089 = vdwg.mxu0
    %v4090 = vadd.f32 %v4024, %v4084
    %v4091 = vadd.f32 %v4025, %v4087
    %v4092 = vxor.u32 %v4090, 2147483648
    %v4093 = vxor.u32 %v4091, 2147483648
    %v4094 = vmul.f32 %v4092, 1.442695
    %v4095 = vpow.pop %v4094
    %v4096 = vmul.f32 %v4093, 1.442695
    %v4097 = vpow.pop %v4096
    %v4098 = vadd.f32 %v4095, 1.0
    %v4099 = vadd.f32 %v4097, 1.0
    %v4100 = vrcp.pop %v4098
    %v4101 = vmul.f32 1.0, %v4100
    %v4102 = vrcp.pop %v4099
    %v4103 = vmul.f32 1.0, %v4102
    %4106 = vrot.lane.b32.xlu0 %v4084, 64
    %v4107 = vpop.permute.xlu0 %4106
    %4108 = vrot.lane.b32.xlu0 %v4087, 64
    %v4109 = vpop.permute.xlu0 %4108
    %v4112 = vmul.f32 %v4101, %v4107
    %v4113 = vmul.f32 %v4103, %v4109
    %4116 = vrot.lane.b32.xlu0 %v4112, 64
    %v4117 = vpop.permute.xlu0 %4116
    %4118 = vrot.lane.b32.xlu0 %v4113, 64
    %v4119 = vpop.permute.xlu0 %4118
    %v4122 = vadd.f32 %v4024, %v4117
    %v4123 = vadd.f32 %v4025, %v4119
    %v4124 = vtanh.pop %v4122
    %v4125 = vtanh.pop %v4123
    %v4126 = vsub.f32 1.0, %v4101
    %v4127 = vsub.f32 1.0, %v4103
    %4130 = vrot.lane.b32.xlu0 %v4124, 96
    %v4131 = vpop.permute.xlu0 %4130
    %4132 = vrot.lane.b32.xlu0 %v4125, 96
    %v4133 = vpop.permute.xlu0 %4132
    %v4136 = vmul.f32 %v4126, %v4131
    %v4137 = vmul.f32 %v4127, %v4133
    %v4138 = vmul.f32 %v4101, %v3207
    %v4139 = vmul.f32 %v4103, %v3208
    %v4140 = vadd.f32 %v4136, %v4138
    %v4141 = vadd.f32 %v4137, %v4139
    %4144 = vrot.lane.b32.xlu0 %v4140, 96
    %v4145 = vpop.permute.xlu0 %4144
    %4146 = vrot.lane.b32.xlu0 %v4141, 96
    %v4147 = vpop.permute.xlu0 %4146
    %s4150 = scalar_lea.vmem [#allocation34], 64
    %4151 = vst.msk [vmem:[%s4150] sm:$0xff] %vm371, %v4145
    %4152 = vst.msk [vmem:[%s4150 + $0x8] sm:$0xff] %vm371, %v4147
    // Predicated region
    $region178: #{tpu_custom_call.1} parent=1 // pred_check
      _
    $region179: #{tpu_custom_call.1} parent=1 // pred_check_branch
      %4154 = sbr.rel (0) target = $region181
    $region180: #{tpu_custom_call.1} parent=1 // pred_region
      %s4156 = ssub.s32 1280, 1280
      %4157 = vsyncadd [#allocation4], %s4156
      %s4158 = sshll.u32 [#allocation34], 4
      %s4159 = int_to_ptr.vmem [resolvable:$true] %s4158
      %4164 = dma.vmem_to_hbm [thread:$0]  %s4159, 1280, %s24, [#allocation4], 128, 128, 8
    $region181: #{tpu_custom_call.1} parent=1 // pred_fallthru
      _
    // Predicated region
    $region182: #{tpu_custom_call.1} parent=1 // pred_check
      _
    $region183: #{tpu_custom_call.1} parent=1 // pred_check_branch
      %4166 = sbr.rel (0) target = $region185
    $region184: #{tpu_custom_call.1} parent=1 // pred_region
      %s4168 = ssub.s32 640, 640
      %4169 = vsyncadd [#allocation36], %s4168
      %s4170 = sshll.u32 [#allocation35], 4
      %s4171 = int_to_ptr.vmem [resolvable:$true] %s4170
      %4176 = dma.vmem_to_hbm [thread:$0]  %s4171, 640, %s25, [#allocation36], 128, 128, 8
    $region185: #{tpu_custom_call.1} parent=1 // pred_fallthru
      _
    // Predicated region
    $region186: #{tpu_custom_call.1} parent=1 // pred_check
      _
    $region187: #{tpu_custom_call.1} parent=1 // pred_check_branch
      %4178 = sbr.rel (0) target = $region189
    $region188: #{tpu_custom_call.1} parent=1 // pred_region
      %4179 = dma.done [#allocation4], 1280
    $region189: #{tpu_custom_call.1} parent=1 // pred_fallthru
      _
    // Predicated region
    $region190: #{tpu_custom_call.1} parent=1 // pred_check
      _
    $region191: #{tpu_custom_call.1} parent=1 // pred_check_branch
      %4181 = sbr.rel (0) target = $region193
    $region192: #{tpu_custom_call.1} parent=1 // pred_region
      %4182 = dma.done [#allocation36], 640
    $region193: #{tpu_custom_call.1} parent=1 // pred_fallthru
      _
    %4183 = vsyncpa [#allocation3], 1
    %4184 = vsyncpa [#allocation6], 1
    %4185 = vsyncpa [#allocation9], 1
    %4186 = vsyncpa [#allocation12], 1
    %4187 = vsyncpa [#allocation15], 1
    %4188 = vsyncpa [#allocation18], 1
    %4189 = vsyncpa [#allocation21], 1
    %4190 = vsyncpa [#allocation24], 1
    %4191 = vsyncpa [#allocation27], 1
    %4192 = vsyncpa [#allocation30], 1
    %4193 = vsyncpa [#allocation33], 1
    %4194 = vsyncpa [#allocation4], 1
    %4195 = vsyncpa [#allocation36], 1

</llo_original>
